<compile_context>
chip_gen: v6e
topology: v6e:2x2x1
jax: 0.10.0
libtpu: 0.0.40
codegen_flags: <defaults>
</compile_context>

<pallas_src>
import functools

import jax
import jax.numpy as jnp
from jax.experimental import pallas as pl
from jax.experimental.pallas import tpu as pltpu


_LANES = 128          # TPU lane width
_TM_MAX = 512         # M-tile rows (sized for v7x 64 MiB VMEM w/ double buffering)
_VMEM_LIMIT = 48 * 1024 * 1024
_BN_EPS = 1e-5


def _round_up(x, m):
    return (x + m - 1) // m * m


# ----------------------------------------------------------------------------
# Pallas kernels
# ----------------------------------------------------------------------------
def conv_act_kernel(p_ref, w_ref, o_ref, *, act):
    """Tiled matmul + activation (no BN).  p: (TM, K) bf16, w: (K, N) bf16."""
    y = jnp.dot(p_ref[...], w_ref[...], preferred_element_type=jnp.float32)
    if act == "lrelu":
        y = jnp.where(y >= 0.0, y, 0.2 * y)
    elif act == "sigmoid":
        y = jax.nn.sigmoid(y)
    else:
        raise ValueError(act)
    o_ref[...] = y.astype(o_ref.dtype)


def conv_stats_kernel(p_ref, w_ref, y_ref, sum_ref, ssq_ref):
    """Pass 1 for BN layers: tiled matmul, emit raw conv output plus resident
    per-channel sum / sum-of-squares accumulators."""
    y = jnp.dot(p_ref[...], w_ref[...], preferred_element_type=jnp.float32)
    y_ref[...] = y

    @pl.when(pl.program_id(0) == 0)
    def _():
        sum_ref[...] = jnp.zeros_like(sum_ref)
        ssq_ref[...] = jnp.zeros_like(ssq_ref)

    sum_ref[...] += jnp.sum(y, axis=0, keepdims=True)
    ssq_ref[...] += jnp.sum(y * y, axis=0, keepdims=True)


def bn_lrelu_kernel(y_ref, scale_ref, shift_ref, o_ref):
    """Pass 2 for BN layers: per-channel affine (folded mean/var/gamma/beta)
    + LeakyReLU(0.2), tiled over M."""
    y = y_ref[...] * scale_ref[...] + shift_ref[...]
    o_ref[...] = jnp.where(y >= 0.0, y, 0.2 * y).astype(o_ref.dtype)


# ----------------------------------------------------------------------------
# im2col (JAX side) + per-layer wrapper
# ----------------------------------------------------------------------------
def _im2col(x_nhwc, kh, kw, stride, pad):
    x = jnp.pad(x_nhwc, ((0, 0), (pad, pad), (pad, pad), (0, 0)))
    B, H, W, C = x.shape
    OH = (H - kh) // stride + 1
    OW = (W - kw) // stride + 1
    patches = []
    for i in range(kh):
        for j in range(kw):
            patches.append(
                x[:, i:i + stride * (OH - 1) + 1:stride,
                     j:j + stride * (OW - 1) + 1:stride, :]
            )
    # (B, OH, OW, KH*KW, C) -> (B*OH*OW, KH*KW*C); K order = (kh, kw, cin)
    p = jnp.stack(patches, axis=3)
    return p.reshape(B * OH * OW, kh * kw * C).astype(jnp.bfloat16), B, OH, OW


def conv_layer(x_nhwc, w_oihw, gamma=None, beta=None, *, stride, pad, mode):
    Cout, Cin, KH, KW = w_oihw.shape
    patches, B, OH, OW = _im2col(x_nhwc, KH, KW, stride, pad)
    M, K = patches.shape
    N = Cout
    N_pad = _round_up(N, _LANES)

    # M tiling: single (8-aligned) tile if small, else fixed TM with zero-pad.
    if M <= _TM_MAX:
        TM = _round_up(M, 8)
    else:
        TM = _TM_MAX
    M_pad = _round_up(M, TM)
    if M_pad != M:
        patches = jnp.pad(patches, ((0, M_pad - M), (0, 0)))
    grid_m = M_pad // TM

    # PyTorch weight (Cout, Cin, KH, KW) -> (KH, KW, Cin, Cout) -> (K, N_pad) bf16
    w2d = jnp.transpose(w_oihw, (2, 3, 1, 0)).reshape(K, N).astype(jnp.bfloat16)
    if N_pad != N:
        w2d = jnp.pad(w2d, ((0, 0), (0, N_pad - N)))

    p_spec = pl.BlockSpec((TM, K), lambda i: (i, 0))
    w_spec = pl.BlockSpec((K, N_pad), lambda i: (0, 0))
    row_spec = pl.BlockSpec((1, N_pad), lambda i: (0, 0))
    y_spec = pl.BlockSpec((TM, N_pad), lambda i: (i, 0))

    if mode in ("lrelu", "sigmoid"):
        y = pl.pallas_call(
            functools.partial(conv_act_kernel, act=mode),
            grid=(grid_m,),
            out_shape=jax.ShapeDtypeStruct((M_pad, N_pad), jnp.float32),
            in_specs=[p_spec, w_spec],
            out_specs=y_spec,
            compiler_params=pltpu.CompilerParams(
                dimension_semantics=("parallel",),
                vmem_limit_bytes=_VMEM_LIMIT),
        )(patches, w2d)

    elif mode == "bn_lrelu":
        # Pass 1: tiled conv + per-channel sum / sum-of-squares accumulators.
        y_raw, ch_sum, ch_ssq = pl.pallas_call(
            conv_stats_kernel,
            grid=(grid_m,),
            out_shape=(jax.ShapeDtypeStruct((M_pad, N_pad), jnp.float32),
                       jax.ShapeDtypeStruct((1, N_pad), jnp.float32),
                       jax.ShapeDtypeStruct((1, N_pad), jnp.float32)),
            in_specs=[p_spec, w_spec],
            out_specs=(y_spec, row_spec, row_spec),
            compiler_params=pltpu.CompilerParams(
                dimension_semantics=("arbitrary",),   # resident accumulators
                vmem_limit_bytes=_VMEM_LIMIT),
        )(patches, w2d)

        # Fold batch statistics + gamma/beta into a single per-channel affine
        # (tiny (1, N) math; zero-padded rows contributed exactly 0 to sums).
        g = jnp.pad(gamma.astype(jnp.float32), (0, N_pad - N),
                    constant_values=1.0).reshape(1, N_pad)
        b = jnp.pad(beta.astype(jnp.float32), (0, N_pad - N)).reshape(1, N_pad)
        mean = ch_sum / float(M)
        var = jnp.maximum(ch_ssq / float(M) - mean * mean, 0.0)
        inv_std = jax.lax.rsqrt(var + _BN_EPS)
        scale = g * inv_std
        shift = b - mean * scale

        # Pass 2: tiled normalize + LeakyReLU.
        y = pl.pallas_call(
            bn_lrelu_kernel,
            grid=(grid_m,),
            out_shape=jax.ShapeDtypeStruct((M_pad, N_pad), jnp.float32),
            in_specs=[y_spec, row_spec, row_spec],
            out_specs=y_spec,
            compiler_params=pltpu.CompilerParams(
                dimension_semantics=("parallel",),
                vmem_limit_bytes=_VMEM_LIMIT),
        )(y_raw, scale, shift)
    else:
        raise ValueError(mode)

    # Drop M / channel padding and restore NHWC.
    return y[:M, :N].reshape(B, OH, OW, N)


# ----------------------------------------------------------------------------
# _netD parameters + forward
# ----------------------------------------------------------------------------
def init_netd_params(key, input_nc, target_nc, ndf):
    c_in = input_nc + target_nc
    shapes = [
        (ndf,     c_in,    4, 4),
        (ndf * 2, ndf,     4, 4),
        (ndf * 4, ndf * 2, 4, 4),
        (ndf * 8, ndf * 4, 4, 4),
        (1,       ndf * 8, 4, 4),
    ]
    params = {}
    keys = jax.random.split(key, len(shapes))
    for idx, (k, shp) in enumerate(zip(keys, shapes)):
        params[f"w{idx}"] = 0.05 * jax.random.normal(k, shp, dtype=jnp.float32)
        cout = shp[0]
        # BatchNorm affine params (PyTorch init: gamma=1, beta=0); layers 1-3 use BN.
        params[f"g{idx}"] = jnp.ones((cout,), jnp.float32)
        params[f"b{idx}"] = jnp.zeros((cout,), jnp.float32)
    return params


def netd_forward(params, inp_nchw, tgt_nchw):
    # torch.cat((input, target), dim=1)  then NCHW -> NHWC for the kernel path
    x = jnp.concatenate([inp_nchw, tgt_nchw], axis=1)
    x = jnp.transpose(x, (0, 2, 3, 1))  # NHWC

    x = conv_layer(x, params["w0"], stride=2, pad=1, mode="lrelu")
    x = conv_layer(x, params["w1"], params["g1"], params["b1"],
                   stride=2, pad=1, mode="bn_lrelu")
    x = conv_layer(x, params["w2"], params["g2"], params["b2"],
                   stride=2, pad=1, mode="bn_lrelu")
    x = conv_layer(x, params["w3"], params["g3"], params["b3"],
                   stride=1, pad=1, mode="bn_lrelu")
    x = conv_layer(x, params["w4"], stride=1, pad=1, mode="sigmoid")

    return jnp.transpose(x, (0, 3, 1, 2))  # back to NCHW


if __name__ == "__main__":
    B, input_nc, target_nc, ndf, H, W = 2, 2, 2, 8, 32, 32

    key = jax.random.PRNGKey(0)
    k_in, k_tgt, k_par = jax.random.split(key, 3)

    inp = jax.random.normal(k_in, (B, input_nc, H, W), dtype=jnp.float32)
    tgt = jax.random.normal(k_tgt, (B, target_nc, H, W), dtype=jnp.float32)
    params = init_netd_params(k_par, input_nc, target_nc, ndf)

    out = jax.jit(netd_forward)(params, inp, tgt)
    out = jax.block_until_ready(out)

    # Expected output shape for 32x32 inputs: (B, 1, 2, 2), sigmoid range.
    assert out.shape == (B, 1, 2, 2), out.shape
    assert bool(jnp.all(jnp.isfinite(out)))
    assert bool(jnp.all((out >= 0.0) & (out <= 1.0)))
    print("KERNEL_OK")
</pallas_src>

<mosaic_0001>
module attributes {stable_mosaic.version = 11 : i64} {
  func.func @conv_act_kernel(%arg0: i32, %arg1: memref<512x64xbf16, #tpu.memory_space<vmem>>, %arg2: memref<64x128xbf16, #tpu.memory_space<vmem>>, %arg3: memref<512x128xf32, #tpu.memory_space<vmem>>) attributes {dimension_semantics = [#tpu.dimension_semantics<parallel>], iteration_bounds = array<i64: 1>, scalar_prefetch = 0 : i64, scratch_operands = 0 : i64, tpu.core_type = #tpu.core_type<tc>, window_params = [{transform_indices = @transform_0, window_bounds = array<i64: 512, 64>}, {pipeline_mode = #tpu.pipeline_mode<synchronous>, transform_indices = @transform_1, window_bounds = array<i64: 64, 128>}, {transform_indices = @transform_2, window_bounds = array<i64: 512, 128>}]} {
    %c0 = arith.constant 0 : index
    %c0_0 = arith.constant 0 : index
    %0 = vector.load %arg1[%c0, %c0_0] : memref<512x64xbf16, #tpu.memory_space<vmem>>, vector<512x64xbf16>
    %c0_1 = arith.constant 0 : index
    %c0_2 = arith.constant 0 : index
    %1 = vector.load %arg2[%c0_1, %c0_2] : memref<64x128xbf16, #tpu.memory_space<vmem>>, vector<64x128xbf16>
    %cst = arith.constant dense<0.000000e+00> : vector<512x128xf32>
    %2 = tpu.matmul %0, %1, %cst {dimension_numbers = #tpu.dot_dimension_numbers<[1], [0], [0], [1], [0, 0, 1, 1], [], []>} : vector<512x64xbf16>, vector<64x128xbf16>, vector<512x128xf32> -> vector<512x128xf32>
    %cst_3 = arith.constant 0.000000e+00 : f32
    %3 = vector.broadcast %cst_3 : f32 to vector<512x128xf32>
    %4 = arith.cmpf oge, %2, %3 : vector<512x128xf32>
    %cst_4 = arith.constant 2.000000e-01 : f32
    %5 = vector.broadcast %cst_4 : f32 to vector<512x128xf32>
    %6 = arith.mulf %5, %2 : vector<512x128xf32>
    %7 = arith.select %4, %2, %6 : vector<512x128xi1>, vector<512x128xf32>
    %c0_5 = arith.constant 0 : index
    %c0_6 = arith.constant 0 : index
    %8 = vector.load %arg3[%c0_5, %c0_6] : memref<512x128xf32, #tpu.memory_space<vmem>>, vector<512x128xf32>
    tpu.vector_store %arg3[%c0_5, %c0_6], %7 {strides = array<i32>} : memref<512x128xf32, #tpu.memory_space<vmem>>, vector<512x128xf32>,
    return
  }
  func.func @transform_0(%arg0: i32) -> (i32, i32) {
    %c0_i32 = arith.constant 0 : i32
    %c0_i32_0 = arith.constant 0 : i32
    return %arg0, %c0_i32 : i32, i32
  }
  func.func @transform_1(%arg0: i32) -> (i32, i32) {
    %c0_i32 = arith.constant 0 : i32
    %c0_i32_0 = arith.constant 0 : i32
    %c0_i32_1 = arith.constant 0 : i32
    return %c0_i32, %c0_i32_0 : i32, i32
  }
  func.func @transform_2(%arg0: i32) -> (i32, i32) {
    %c0_i32 = arith.constant 0 : i32
    %c0_i32_0 = arith.constant 0 : i32
    return %arg0, %c0_i32 : i32, i32
  }
}

module attributes {stable_mosaic.version = 11 : i64} {
  func.func @conv_stats_kernel(%arg0: i32, %arg1: memref<128x128xbf16, #tpu.memory_space<vmem>>, %arg2: memref<128x128xbf16, #tpu.memory_space<vmem>>, %arg3: memref<128x128xf32, #tpu.memory_space<vmem>>, %arg4: memref<1x128xf32, #tpu.memory_space<vmem>>, %arg5: memref<1x128xf32, #tpu.memory_space<vmem>>) attributes {dimension_semantics = [#tpu.dimension_semantics<arbitrary>], iteration_bounds = array<i64: 1>, scalar_prefetch = 0 : i64, scratch_operands = 0 : i64, tpu.core_type = #tpu.core_type<tc>, window_params = [{transform_indices = @transform_0, window_bounds = array<i64: 128, 128>}, {pipeline_mode = #tpu.pipeline_mode<synchronous>, transform_indices = @transform_1, window_bounds = array<i64: 128, 128>}, {transform_indices = @transform_2, window_bounds = array<i64: 128, 128>}, {pipeline_mode = #tpu.pipeline_mode<synchronous>, transform_indices = @transform_3, window_bounds = array<i64: 1, 128>}, {pipeline_mode = #tpu.pipeline_mode<synchronous>, transform_indices = @transform_4, window_bounds = array<i64: 1, 128>}]} {
    %c0 = arith.constant 0 : index
    %c0_0 = arith.constant 0 : index
    %0 = vector.load %arg1[%c0, %c0_0] : memref<128x128xbf16, #tpu.memory_space<vmem>>, vector<128x128xbf16>
    %c0_1 = arith.constant 0 : index
    %c0_2 = arith.constant 0 : index
    %1 = vector.load %arg2[%c0_1, %c0_2] : memref<128x128xbf16, #tpu.memory_space<vmem>>, vector<128x128xbf16>
    %cst = arith.constant dense<0.000000e+00> : vector<128x128xf32>
    %2 = tpu.matmul %0, %1, %cst {dimension_numbers = #tpu.dot_dimension_numbers<[1], [0], [0], [1], [0, 0, 1, 1], [], []>} : vector<128x128xbf16>, vector<128x128xbf16>, vector<128x128xf32> -> vector<128x128xf32>
    %c0_3 = arith.constant 0 : index
    %c0_4 = arith.constant 0 : index
    %3 = vector.load %arg3[%c0_3, %c0_4] : memref<128x128xf32, #tpu.memory_space<vmem>>, vector<128x128xf32>
    tpu.vector_store %arg3[%c0_3, %c0_4], %2 {strides = array<i32>} : memref<128x128xf32, #tpu.memory_space<vmem>>, vector<128x128xf32>,
    %c0_i32 = arith.constant 0 : i32
    %4 = arith.cmpi eq, %arg0, %c0_i32 : i32
    %5 = arith.extui %4 : i1 to i32
    %c0_i32_5 = arith.constant 0 : i32
    %6 = arith.cmpi ne, %5, %c0_i32_5 : i32
    scf.if %6 {
      %cst_16 = arith.constant 0.000000e+00 : f32
      %18 = vector.broadcast %cst_16 : f32 to vector<1x128xf32>
      %c0_17 = arith.constant 0 : index
      %c0_18 = arith.constant 0 : index
      %19 = vector.load %arg4[%c0_17, %c0_18] : memref<1x128xf32, #tpu.memory_space<vmem>>, vector<1x128xf32>
      tpu.vector_store %arg4[%c0_17, %c0_18], %18 {strides = array<i32>} : memref<1x128xf32, #tpu.memory_space<vmem>>, vector<1x128xf32>,
      %cst_19 = arith.constant 0.000000e+00 : f32
      %20 = vector.broadcast %cst_19 : f32 to vector<1x128xf32>
      %c0_20 = arith.constant 0 : index
      %c0_21 = arith.constant 0 : index
      %21 = vector.load %arg5[%c0_20, %c0_21] : memref<1x128xf32, #tpu.memory_space<vmem>>, vector<1x128xf32>
      tpu.vector_store %arg5[%c0_20, %c0_21], %20 {strides = array<i32>} : memref<1x128xf32, #tpu.memory_space<vmem>>, vector<1x128xf32>,
    } else {
    }
    %c0_6 = arith.constant 0 : index
    %c0_7 = arith.constant 0 : index
    %7 = vector.load %arg4[%c0_6, %c0_7] : memref<1x128xf32, #tpu.memory_space<vmem>>, vector<1x128xf32>
    %cst_8 = arith.constant dense<0.000000e+00> : vector<128xf32>
    %8 = vector.multi_reduction <add>, %2, %cst_8 [0] : vector<128x128xf32> to vector<128xf32>
    %9 = vector.shape_cast %8 : vector<128xf32> to vector<1x128xf32>
    %10 = arith.addf %7, %9 : vector<1x128xf32>
    %c0_9 = arith.constant 0 : index
    %c0_10 = arith.constant 0 : index
    %11 = vector.load %arg4[%c0_9, %c0_10] : memref<1x128xf32, #tpu.memory_space<vmem>>, vector<1x128xf32>
    tpu.vector_store %arg4[%c0_9, %c0_10], %10 {strides = array<i32>} : memref<1x128xf32, #tpu.memory_space<vmem>>, vector<1x128xf32>,
    %c0_11 = arith.constant 0 : index
    %c0_12 = arith.constant 0 : index
    %12 = vector.load %arg5[%c0_11, %c0_12] : memref<1x128xf32, #tpu.memory_space<vmem>>, vector<1x128xf32>
    %13 = arith.mulf %2, %2 : vector<128x128xf32>
    %cst_13 = arith.constant dense<0.000000e+00> : vector<128xf32>
    %14 = vector.multi_reduction <add>, %13, %cst_13 [0] : vector<128x128xf32> to vector<128xf32>
    %15 = vector.shape_cast %14 : vector<128xf32> to vector<1x128xf32>
    %16 = arith.addf %12, %15 : vector<1x128xf32>
    %c0_14 = arith.constant 0 : index
    %c0_15 = arith.constant 0 : index
    %17 = vector.load %arg5[%c0_14, %c0_15] : memref<1x128xf32, #tpu.memory_space<vmem>>, vector<1x128xf32>
    tpu.vector_store %arg5[%c0_14, %c0_15], %16 {strides = array<i32>} : memref<1x128xf32, #tpu.memory_space<vmem>>, vector<1x128xf32>,
    return
  }
  func.func @transform_0(%arg0: i32) -> (i32, i32) {
    %c0_i32 = arith.constant 0 : i32
    %c0_i32_0 = arith.constant 0 : i32
    return %arg0, %c0_i32 : i32, i32
  }
  func.func @transform_1(%arg0: i32) -> (i32, i32) {
    %c0_i32 = arith.constant 0 : i32
    %c0_i32_0 = arith.constant 0 : i32
    %c0_i32_1 = arith.constant 0 : i32
    return %c0_i32, %c0_i32_0 : i32, i32
  }
  func.func @transform_2(%arg0: i32) -> (i32, i32) {
    %c0_i32 = arith.constant 0 : i32
    %c0_i32_0 = arith.constant 0 : i32
    return %arg0, %c0_i32 : i32, i32
  }
  func.func @transform_3(%arg0: i32) -> (i32, i32) {
    %c0_i32 = arith.constant 0 : i32
    %c0_i32_0 = arith.constant 0 : i32
    %c0_i32_1 = arith.constant 0 : i32
    return %c0_i32, %c0_i32_0 : i32, i32
  }
  func.func @transform_4(%arg0: i32) -> (i32, i32) {
    %c0_i32 = arith.constant 0 : i32
    %c0_i32_0 = arith.constant 0 : i32
    %c0_i32_1 = arith.constant 0 : i32
    return %c0_i32, %c0_i32_0 : i32, i32
  }
}

module attributes {stable_mosaic.version = 11 : i64} {
  func.func @bn_lrelu_kernel(%arg0: i32, %arg1: memref<128x128xf32, #tpu.memory_space<vmem>>, %arg2: memref<1x128xf32, #tpu.memory_space<vmem>>, %arg3: memref<1x128xf32, #tpu.memory_space<vmem>>, %arg4: memref<128x128xf32, #tpu.memory_space<vmem>>) attributes {dimension_semantics = [#tpu.dimension_semantics<parallel>], iteration_bounds = array<i64: 1>, scalar_prefetch = 0 : i64, scratch_operands = 0 : i64, tpu.core_type = #tpu.core_type<tc>, window_params = [{transform_indices = @transform_0, window_bounds = array<i64: 128, 128>}, {pipeline_mode = #tpu.pipeline_mode<synchronous>, transform_indices = @transform_1, window_bounds = array<i64: 1, 128>}, {pipeline_mode = #tpu.pipeline_mode<synchronous>, transform_indices = @transform_2, window_bounds = array<i64: 1, 128>}, {transform_indices = @transform_3, window_bounds = array<i64: 128, 128>}]} {
    %c0 = arith.constant 0 : index
    %c0_0 = arith.constant 0 : index
    %0 = vector.load %arg1[%c0, %c0_0] : memref<128x128xf32, #tpu.memory_space<vmem>>, vector<128x128xf32>
    %c0_1 = arith.constant 0 : index
    %c0_2 = arith.constant 0 : index
    %1 = vector.load %arg2[%c0_1, %c0_2] : memref<1x128xf32, #tpu.memory_space<vmem>>, vector<1x128xf32>
    %2 = vector.broadcast %1 : vector<1x128xf32> to vector<128x128xf32>
    %3 = arith.mulf %0, %2 : vector<128x128xf32>
    %c0_3 = arith.constant 0 : index
    %c0_4 = arith.constant 0 : index
    %4 = vector.load %arg3[%c0_3, %c0_4] : memref<1x128xf32, #tpu.memory_space<vmem>>, vector<1x128xf32>
    %5 = vector.broadcast %4 : vector<1x128xf32> to vector<128x128xf32>
    %6 = arith.addf %3, %5 : vector<128x128xf32>
    %cst = arith.constant 0.000000e+00 : f32
    %7 = vector.broadcast %cst : f32 to vector<128x128xf32>
    %8 = arith.cmpf oge, %6, %7 : vector<128x128xf32>
    %cst_5 = arith.constant 2.000000e-01 : f32
    %9 = vector.broadcast %cst_5 : f32 to vector<128x128xf32>
    %10 = arith.mulf %9, %6 : vector<128x128xf32>
    %11 = arith.select %8, %6, %10 : vector<128x128xi1>, vector<128x128xf32>
    %c0_6 = arith.constant 0 : index
    %c0_7 = arith.constant 0 : index
    %12 = vector.load %arg4[%c0_6, %c0_7] : memref<128x128xf32, #tpu.memory_space<vmem>>, vector<128x128xf32>
    tpu.vector_store %arg4[%c0_6, %c0_7], %11 {strides = array<i32>} : memref<128x128xf32, #tpu.memory_space<vmem>>, vector<128x128xf32>,
    return
  }
  func.func @transform_0(%arg0: i32) -> (i32, i32) {
    %c0_i32 = arith.constant 0 : i32
    %c0_i32_0 = arith.constant 0 : i32
    return %arg0, %c0_i32 : i32, i32
  }
  func.func @transform_1(%arg0: i32) -> (i32, i32) {
    %c0_i32 = arith.constant 0 : i32
    %c0_i32_0 = arith.constant 0 : i32
    %c0_i32_1 = arith.constant 0 : i32
    return %c0_i32, %c0_i32_0 : i32, i32
  }
  func.func @transform_2(%arg0: i32) -> (i32, i32) {
    %c0_i32 = arith.constant 0 : i32
    %c0_i32_0 = arith.constant 0 : i32
    %c0_i32_1 = arith.constant 0 : i32
    return %c0_i32, %c0_i32_0 : i32, i32
  }
  func.func @transform_3(%arg0: i32) -> (i32, i32) {
    %c0_i32 = arith.constant 0 : i32
    %c0_i32_0 = arith.constant 0 : i32
    return %arg0, %c0_i32 : i32, i32
  }
}

module attributes {stable_mosaic.version = 11 : i64} {
  func.func @bn_lrelu_kernel(%arg0: i32, %arg1: memref<32x128xf32, #tpu.memory_space<vmem>>, %arg2: memref<1x128xf32, #tpu.memory_space<vmem>>, %arg3: memref<1x128xf32, #tpu.memory_space<vmem>>, %arg4: memref<32x128xf32, #tpu.memory_space<vmem>>) attributes {dimension_semantics = [#tpu.dimension_semantics<parallel>], iteration_bounds = array<i64: 1>, scalar_prefetch = 0 : i64, scratch_operands = 0 : i64, tpu.core_type = #tpu.core_type<tc>, window_params = [{transform_indices = @transform_0, window_bounds = array<i64: 32, 128>}, {pipeline_mode = #tpu.pipeline_mode<synchronous>, transform_indices = @transform_1, window_bounds = array<i64: 1, 128>}, {pipeline_mode = #tpu.pipeline_mode<synchronous>, transform_indices = @transform_2, window_bounds = array<i64: 1, 128>}, {transform_indices = @transform_3, window_bounds = array<i64: 32, 128>}]} {
    %c0 = arith.constant 0 : index
    %c0_0 = arith.constant 0 : index
    %0 = vector.load %arg1[%c0, %c0_0] : memref<32x128xf32, #tpu.memory_space<vmem>>, vector<32x128xf32>
    %c0_1 = arith.constant 0 : index
    %c0_2 = arith.constant 0 : index
    %1 = vector.load %arg2[%c0_1, %c0_2] : memref<1x128xf32, #tpu.memory_space<vmem>>, vector<1x128xf32>
    %2 = vector.broadcast %1 : vector<1x128xf32> to vector<32x128xf32>
    %3 = arith.mulf %0, %2 : vector<32x128xf32>
    %c0_3 = arith.constant 0 : index
    %c0_4 = arith.constant 0 : index
    %4 = vector.load %arg3[%c0_3, %c0_4] : memref<1x128xf32, #tpu.memory_space<vmem>>, vector<1x128xf32>
    %5 = vector.broadcast %4 : vector<1x128xf32> to vector<32x128xf32>
    %6 = arith.addf %3, %5 : vector<32x128xf32>
    %cst = arith.constant 0.000000e+00 : f32
    %7 = vector.broadcast %cst : f32 to vector<32x128xf32>
    %8 = arith.cmpf oge, %6, %7 : vector<32x128xf32>
    %cst_5 = arith.constant 2.000000e-01 : f32
    %9 = vector.broadcast %cst_5 : f32 to vector<32x128xf32>
    %10 = arith.mulf %9, %6 : vector<32x128xf32>
    %11 = arith.select %8, %6, %10 : vector<32x128xi1>, vector<32x128xf32>
    %c0_6 = arith.constant 0 : index
    %c0_7 = arith.constant 0 : index
    %12 = vector.load %arg4[%c0_6, %c0_7] : memref<32x128xf32, #tpu.memory_space<vmem>>, vector<32x128xf32>
    tpu.vector_store %arg4[%c0_6, %c0_7], %11 {strides = array<i32>} : memref<32x128xf32, #tpu.memory_space<vmem>>, vector<32x128xf32>,
    return
  }
  func.func @transform_0(%arg0: i32) -> (i32, i32) {
    %c0_i32 = arith.constant 0 : i32
    %c0_i32_0 = arith.constant 0 : i32
    return %arg0, %c0_i32 : i32, i32
  }
  func.func @transform_1(%arg0: i32) -> (i32, i32) {
    %c0_i32 = arith.constant 0 : i32
    %c0_i32_0 = arith.constant 0 : i32
    %c0_i32_1 = arith.constant 0 : i32
    return %c0_i32, %c0_i32_0 : i32, i32
  }
  func.func @transform_2(%arg0: i32) -> (i32, i32) {
    %c0_i32 = arith.constant 0 : i32
    %c0_i32_0 = arith.constant 0 : i32
    %c0_i32_1 = arith.constant 0 : i32
    return %c0_i32, %c0_i32_0 : i32, i32
  }
  func.func @transform_3(%arg0: i32) -> (i32, i32) {
    %c0_i32 = arith.constant 0 : i32
    %c0_i32_0 = arith.constant 0 : i32
    return %arg0, %c0_i32 : i32, i32
  }
}

module attributes {stable_mosaic.version = 11 : i64} {
  func.func @conv_stats_kernel(%arg0: i32, %arg1: memref<32x256xbf16, #tpu.memory_space<vmem>>, %arg2: memref<256x128xbf16, #tpu.memory_space<vmem>>, %arg3: memref<32x128xf32, #tpu.memory_space<vmem>>, %arg4: memref<1x128xf32, #tpu.memory_space<vmem>>, %arg5: memref<1x128xf32, #tpu.memory_space<vmem>>) attributes {dimension_semantics = [#tpu.dimension_semantics<arbitrary>], iteration_bounds = array<i64: 1>, scalar_prefetch = 0 : i64, scratch_operands = 0 : i64, tpu.core_type = #tpu.core_type<tc>, window_params = [{transform_indices = @transform_0, window_bounds = array<i64: 32, 256>}, {pipeline_mode = #tpu.pipeline_mode<synchronous>, transform_indices = @transform_1, window_bounds = array<i64: 256, 128>}, {transform_indices = @transform_2, window_bounds = array<i64: 32, 128>}, {pipeline_mode = #tpu.pipeline_mode<synchronous>, transform_indices = @transform_3, window_bounds = array<i64: 1, 128>}, {pipeline_mode = #tpu.pipeline_mode<synchronous>, transform_indices = @transform_4, window_bounds = array<i64: 1, 128>}]} {
    %c0 = arith.constant 0 : index
    %c0_0 = arith.constant 0 : index
    %0 = vector.load %arg1[%c0, %c0_0] : memref<32x256xbf16, #tpu.memory_space<vmem>>, vector<32x256xbf16>
    %c0_1 = arith.constant 0 : index
    %c0_2 = arith.constant 0 : index
    %1 = vector.load %arg2[%c0_1, %c0_2] : memref<256x128xbf16, #tpu.memory_space<vmem>>, vector<256x128xbf16>
    %cst = arith.constant dense<0.000000e+00> : vector<32x128xf32>
    %2 = tpu.matmul %0, %1, %cst {dimension_numbers = #tpu.dot_dimension_numbers<[1], [0], [0], [1], [0, 0, 1, 1], [], []>} : vector<32x256xbf16>, vector<256x128xbf16>, vector<32x128xf32> -> vector<32x128xf32>
    %c0_3 = arith.constant 0 : index
    %c0_4 = arith.constant 0 : index
    %3 = vector.load %arg3[%c0_3, %c0_4] : memref<32x128xf32, #tpu.memory_space<vmem>>, vector<32x128xf32>
    tpu.vector_store %arg3[%c0_3, %c0_4], %2 {strides = array<i32>} : memref<32x128xf32, #tpu.memory_space<vmem>>, vector<32x128xf32>,
    %c0_i32 = arith.constant 0 : i32
    %4 = arith.cmpi eq, %arg0, %c0_i32 : i32
    %5 = arith.extui %4 : i1 to i32
    %c0_i32_5 = arith.constant 0 : i32
    %6 = arith.cmpi ne, %5, %c0_i32_5 : i32
    scf.if %6 {
      %cst_16 = arith.constant 0.000000e+00 : f32
      %18 = vector.broadcast %cst_16 : f32 to vector<1x128xf32>
      %c0_17 = arith.constant 0 : index
      %c0_18 = arith.constant 0 : index
      %19 = vector.load %arg4[%c0_17, %c0_18] : memref<1x128xf32, #tpu.memory_space<vmem>>, vector<1x128xf32>
      tpu.vector_store %arg4[%c0_17, %c0_18], %18 {strides = array<i32>} : memref<1x128xf32, #tpu.memory_space<vmem>>, vector<1x128xf32>,
      %cst_19 = arith.constant 0.000000e+00 : f32
      %20 = vector.broadcast %cst_19 : f32 to vector<1x128xf32>
      %c0_20 = arith.constant 0 : index
      %c0_21 = arith.constant 0 : index
      %21 = vector.load %arg5[%c0_20, %c0_21] : memref<1x128xf32, #tpu.memory_space<vmem>>, vector<1x128xf32>
      tpu.vector_store %arg5[%c0_20, %c0_21], %20 {strides = array<i32>} : memref<1x128xf32, #tpu.memory_space<vmem>>, vector<1x128xf32>,
    } else {
    }
    %c0_6 = arith.constant 0 : index
    %c0_7 = arith.constant 0 : index
    %7 = vector.load %arg4[%c0_6, %c0_7] : memref<1x128xf32, #tpu.memory_space<vmem>>, vector<1x128xf32>
    %cst_8 = arith.constant dense<0.000000e+00> : vector<128xf32>
    %8 = vector.multi_reduction <add>, %2, %cst_8 [0] : vector<32x128xf32> to vector<128xf32>
    %9 = vector.shape_cast %8 : vector<128xf32> to vector<1x128xf32>
    %10 = arith.addf %7, %9 : vector<1x128xf32>
    %c0_9 = arith.constant 0 : index
    %c0_10 = arith.constant 0 : index
    %11 = vector.load %arg4[%c0_9, %c0_10] : memref<1x128xf32, #tpu.memory_space<vmem>>, vector<1x128xf32>
    tpu.vector_store %arg4[%c0_9, %c0_10], %10 {strides = array<i32>} : memref<1x128xf32, #tpu.memory_space<vmem>>, vector<1x128xf32>,
    %c0_11 = arith.constant 0 : index
    %c0_12 = arith.constant 0 : index
    %12 = vector.load %arg5[%c0_11, %c0_12] : memref<1x128xf32, #tpu.memory_space<vmem>>, vector<1x128xf32>
    %13 = arith.mulf %2, %2 : vector<32x128xf32>
    %cst_13 = arith.constant dense<0.000000e+00> : vector<128xf32>
    %14 = vector.multi_reduction <add>, %13, %cst_13 [0] : vector<32x128xf32> to vector<128xf32>
    %15 = vector.shape_cast %14 : vector<128xf32> to vector<1x128xf32>
    %16 = arith.addf %12, %15 : vector<1x128xf32>
    %c0_14 = arith.constant 0 : index
    %c0_15 = arith.constant 0 : index
    %17 = vector.load %arg5[%c0_14, %c0_15] : memref<1x128xf32, #tpu.memory_space<vmem>>, vector<1x128xf32>
    tpu.vector_store %arg5[%c0_14, %c0_15], %16 {strides = array<i32>} : memref<1x128xf32, #tpu.memory_space<vmem>>, vector<1x128xf32>,
    return
  }
  func.func @transform_0(%arg0: i32) -> (i32, i32) {
    %c0_i32 = arith.constant 0 : i32
    %c0_i32_0 = arith.constant 0 : i32
    return %arg0, %c0_i32 : i32, i32
  }
  func.func @transform_1(%arg0: i32) -> (i32, i32) {
    %c0_i32 = arith.constant 0 : i32
    %c0_i32_0 = arith.constant 0 : i32
    %c0_i32_1 = arith.constant 0 : i32
    return %c0_i32, %c0_i32_0 : i32, i32
  }
  func.func @transform_2(%arg0: i32) -> (i32, i32) {
    %c0_i32 = arith.constant 0 : i32
    %c0_i32_0 = arith.constant 0 : i32
    return %arg0, %c0_i32 : i32, i32
  }
  func.func @transform_3(%arg0: i32) -> (i32, i32) {
    %c0_i32 = arith.constant 0 : i32
    %c0_i32_0 = arith.constant 0 : i32
    %c0_i32_1 = arith.constant 0 : i32
    return %c0_i32, %c0_i32_0 : i32, i32
  }
  func.func @transform_4(%arg0: i32) -> (i32, i32) {
    %c0_i32 = arith.constant 0 : i32
    %c0_i32_0 = arith.constant 0 : i32
    %c0_i32_1 = arith.constant 0 : i32
    return %c0_i32, %c0_i32_0 : i32, i32
  }
}

module attributes {stable_mosaic.version = 11 : i64} {
  func.func @conv_stats_kernel(%arg0: i32, %arg1: memref<24x512xbf16, #tpu.memory_space<vmem>>, %arg2: memref<512x128xbf16, #tpu.memory_space<vmem>>, %arg3: memref<24x128xf32, #tpu.memory_space<vmem>>, %arg4: memref<1x128xf32, #tpu.memory_space<vmem>>, %arg5: memref<1x128xf32, #tpu.memory_space<vmem>>) attributes {dimension_semantics = [#tpu.dimension_semantics<arbitrary>], iteration_bounds = array<i64: 1>, scalar_prefetch = 0 : i64, scratch_operands = 0 : i64, tpu.core_type = #tpu.core_type<tc>, window_params = [{transform_indices = @transform_0, window_bounds = array<i64: 24, 512>}, {pipeline_mode = #tpu.pipeline_mode<synchronous>, transform_indices = @transform_1, window_bounds = array<i64: 512, 128>}, {transform_indices = @transform_2, window_bounds = array<i64: 24, 128>}, {pipeline_mode = #tpu.pipeline_mode<synchronous>, transform_indices = @transform_3, window_bounds = array<i64: 1, 128>}, {pipeline_mode = #tpu.pipeline_mode<synchronous>, transform_indices = @transform_4, window_bounds = array<i64: 1, 128>}]} {
    %c0 = arith.constant 0 : index
    %c0_0 = arith.constant 0 : index
    %0 = vector.load %arg1[%c0, %c0_0] : memref<24x512xbf16, #tpu.memory_space<vmem>>, vector<24x512xbf16>
    %c0_1 = arith.constant 0 : index
    %c0_2 = arith.constant 0 : index
    %1 = vector.load %arg2[%c0_1, %c0_2] : memref<512x128xbf16, #tpu.memory_space<vmem>>, vector<512x128xbf16>
    %cst = arith.constant dense<0.000000e+00> : vector<24x128xf32>
    %2 = tpu.matmul %0, %1, %cst {dimension_numbers = #tpu.dot_dimension_numbers<[1], [0], [0], [1], [0, 0, 1, 1], [], []>} : vector<24x512xbf16>, vector<512x128xbf16>, vector<24x128xf32> -> vector<24x128xf32>
    %c0_3 = arith.constant 0 : index
    %c0_4 = arith.constant 0 : index
    %3 = vector.load %arg3[%c0_3, %c0_4] : memref<24x128xf32, #tpu.memory_space<vmem>>, vector<24x128xf32>
    tpu.vector_store %arg3[%c0_3, %c0_4], %2 {strides = array<i32>} : memref<24x128xf32, #tpu.memory_space<vmem>>, vector<24x128xf32>,
    %c0_i32 = arith.constant 0 : i32
    %4 = arith.cmpi eq, %arg0, %c0_i32 : i32
    %5 = arith.extui %4 : i1 to i32
    %c0_i32_5 = arith.constant 0 : i32
    %6 = arith.cmpi ne, %5, %c0_i32_5 : i32
    scf.if %6 {
      %cst_16 = arith.constant 0.000000e+00 : f32
      %18 = vector.broadcast %cst_16 : f32 to vector<1x128xf32>
      %c0_17 = arith.constant 0 : index
      %c0_18 = arith.constant 0 : index
      %19 = vector.load %arg4[%c0_17, %c0_18] : memref<1x128xf32, #tpu.memory_space<vmem>>, vector<1x128xf32>
      tpu.vector_store %arg4[%c0_17, %c0_18], %18 {strides = array<i32>} : memref<1x128xf32, #tpu.memory_space<vmem>>, vector<1x128xf32>,
      %cst_19 = arith.constant 0.000000e+00 : f32
      %20 = vector.broadcast %cst_19 : f32 to vector<1x128xf32>
      %c0_20 = arith.constant 0 : index
      %c0_21 = arith.constant 0 : index
      %21 = vector.load %arg5[%c0_20, %c0_21] : memref<1x128xf32, #tpu.memory_space<vmem>>, vector<1x128xf32>
      tpu.vector_store %arg5[%c0_20, %c0_21], %20 {strides = array<i32>} : memref<1x128xf32, #tpu.memory_space<vmem>>, vector<1x128xf32>,
    } else {
    }
    %c0_6 = arith.constant 0 : index
    %c0_7 = arith.constant 0 : index
    %7 = vector.load %arg4[%c0_6, %c0_7] : memref<1x128xf32, #tpu.memory_space<vmem>>, vector<1x128xf32>
    %cst_8 = arith.constant dense<0.000000e+00> : vector<128xf32>
    %8 = vector.multi_reduction <add>, %2, %cst_8 [0] : vector<24x128xf32> to vector<128xf32>
    %9 = vector.shape_cast %8 : vector<128xf32> to vector<1x128xf32>
    %10 = arith.addf %7, %9 : vector<1x128xf32>
    %c0_9 = arith.constant 0 : index
    %c0_10 = arith.constant 0 : index
    %11 = vector.load %arg4[%c0_9, %c0_10] : memref<1x128xf32, #tpu.memory_space<vmem>>, vector<1x128xf32>
    tpu.vector_store %arg4[%c0_9, %c0_10], %10 {strides = array<i32>} : memref<1x128xf32, #tpu.memory_space<vmem>>, vector<1x128xf32>,
    %c0_11 = arith.constant 0 : index
    %c0_12 = arith.constant 0 : index
    %12 = vector.load %arg5[%c0_11, %c0_12] : memref<1x128xf32, #tpu.memory_space<vmem>>, vector<1x128xf32>
    %13 = arith.mulf %2, %2 : vector<24x128xf32>
    %cst_13 = arith.constant dense<0.000000e+00> : vector<128xf32>
    %14 = vector.multi_reduction <add>, %13, %cst_13 [0] : vector<24x128xf32> to vector<128xf32>
    %15 = vector.shape_cast %14 : vector<128xf32> to vector<1x128xf32>
    %16 = arith.addf %12, %15 : vector<1x128xf32>
    %c0_14 = arith.constant 0 : index
    %c0_15 = arith.constant 0 : index
    %17 = vector.load %arg5[%c0_14, %c0_15] : memref<1x128xf32, #tpu.memory_space<vmem>>, vector<1x128xf32>
    tpu.vector_store %arg5[%c0_14, %c0_15], %16 {strides = array<i32>} : memref<1x128xf32, #tpu.memory_space<vmem>>, vector<1x128xf32>,
    return
  }
  func.func @transform_0(%arg0: i32) -> (i32, i32) {
    %c0_i32 = arith.constant 0 : i32
    %c0_i32_0 = arith.constant 0 : i32
    return %arg0, %c0_i32 : i32, i32
  }
  func.func @transform_1(%arg0: i32) -> (i32, i32) {
    %c0_i32 = arith.constant 0 : i32
    %c0_i32_0 = arith.constant 0 : i32
    %c0_i32_1 = arith.constant 0 : i32
    return %c0_i32, %c0_i32_0 : i32, i32
  }
  func.func @transform_2(%arg0: i32) -> (i32, i32) {
    %c0_i32 = arith.constant 0 : i32
    %c0_i32_0 = arith.constant 0 : i32
    return %arg0, %c0_i32 : i32, i32
  }
  func.func @transform_3(%arg0: i32) -> (i32, i32) {
    %c0_i32 = arith.constant 0 : i32
    %c0_i32_0 = arith.constant 0 : i32
    %c0_i32_1 = arith.constant 0 : i32
    return %c0_i32, %c0_i32_0 : i32, i32
  }
  func.func @transform_4(%arg0: i32) -> (i32, i32) {
    %c0_i32 = arith.constant 0 : i32
    %c0_i32_0 = arith.constant 0 : i32
    %c0_i32_1 = arith.constant 0 : i32
    return %c0_i32, %c0_i32_0 : i32, i32
  }
}

module attributes {stable_mosaic.version = 11 : i64} {
  func.func @bn_lrelu_kernel(%arg0: i32, %arg1: memref<24x128xf32, #tpu.memory_space<vmem>>, %arg2: memref<1x128xf32, #tpu.memory_space<vmem>>, %arg3: memref<1x128xf32, #tpu.memory_space<vmem>>, %arg4: memref<24x128xf32, #tpu.memory_space<vmem>>) attributes {dimension_semantics = [#tpu.dimension_semantics<parallel>], iteration_bounds = array<i64: 1>, scalar_prefetch = 0 : i64, scratch_operands = 0 : i64, tpu.core_type = #tpu.core_type<tc>, window_params = [{transform_indices = @transform_0, window_bounds = array<i64: 24, 128>}, {pipeline_mode = #tpu.pipeline_mode<synchronous>, transform_indices = @transform_1, window_bounds = array<i64: 1, 128>}, {pipeline_mode = #tpu.pipeline_mode<synchronous>, transform_indices = @transform_2, window_bounds = array<i64: 1, 128>}, {transform_indices = @transform_3, window_bounds = array<i64: 24, 128>}]} {
    %c0 = arith.constant 0 : index
    %c0_0 = arith.constant 0 : index
    %0 = vector.load %arg1[%c0, %c0_0] : memref<24x128xf32, #tpu.memory_space<vmem>>, vector<24x128xf32>
    %c0_1 = arith.constant 0 : index
    %c0_2 = arith.constant 0 : index
    %1 = vector.load %arg2[%c0_1, %c0_2] : memref<1x128xf32, #tpu.memory_space<vmem>>, vector<1x128xf32>
    %2 = vector.broadcast %1 : vector<1x128xf32> to vector<24x128xf32>
    %3 = arith.mulf %0, %2 : vector<24x128xf32>
    %c0_3 = arith.constant 0 : index
    %c0_4 = arith.constant 0 : index
    %4 = vector.load %arg3[%c0_3, %c0_4] : memref<1x128xf32, #tpu.memory_space<vmem>>, vector<1x128xf32>
    %5 = vector.broadcast %4 : vector<1x128xf32> to vector<24x128xf32>
    %6 = arith.addf %3, %5 : vector<24x128xf32>
    %cst = arith.constant 0.000000e+00 : f32
    %7 = vector.broadcast %cst : f32 to vector<24x128xf32>
    %8 = arith.cmpf oge, %6, %7 : vector<24x128xf32>
    %cst_5 = arith.constant 2.000000e-01 : f32
    %9 = vector.broadcast %cst_5 : f32 to vector<24x128xf32>
    %10 = arith.mulf %9, %6 : vector<24x128xf32>
    %11 = arith.select %8, %6, %10 : vector<24x128xi1>, vector<24x128xf32>
    %c0_6 = arith.constant 0 : index
    %c0_7 = arith.constant 0 : index
    %12 = vector.load %arg4[%c0_6, %c0_7] : memref<24x128xf32, #tpu.memory_space<vmem>>, vector<24x128xf32>
    tpu.vector_store %arg4[%c0_6, %c0_7], %11 {strides = array<i32>} : memref<24x128xf32, #tpu.memory_space<vmem>>, vector<24x128xf32>,
    return
  }
  func.func @transform_0(%arg0: i32) -> (i32, i32) {
    %c0_i32 = arith.constant 0 : i32
    %c0_i32_0 = arith.constant 0 : i32
    return %arg0, %c0_i32 : i32, i32
  }
  func.func @transform_1(%arg0: i32) -> (i32, i32) {
    %c0_i32 = arith.constant 0 : i32
    %c0_i32_0 = arith.constant 0 : i32
    %c0_i32_1 = arith.constant 0 : i32
    return %c0_i32, %c0_i32_0 : i32, i32
  }
  func.func @transform_2(%arg0: i32) -> (i32, i32) {
    %c0_i32 = arith.constant 0 : i32
    %c0_i32_0 = arith.constant 0 : i32
    %c0_i32_1 = arith.constant 0 : i32
    return %c0_i32, %c0_i32_0 : i32, i32
  }
  func.func @transform_3(%arg0: i32) -> (i32, i32) {
    %c0_i32 = arith.constant 0 : i32
    %c0_i32_0 = arith.constant 0 : i32
    return %arg0, %c0_i32 : i32, i32
  }
}

module attributes {stable_mosaic.version = 11 : i64} {
  func.func @conv_act_kernel(%arg0: i32, %arg1: memref<8x1024xbf16, #tpu.memory_space<vmem>>, %arg2: memref<1024x128xbf16, #tpu.memory_space<vmem>>, %arg3: memref<8x128xf32, #tpu.memory_space<vmem>>) attributes {dimension_semantics = [#tpu.dimension_semantics<parallel>], iteration_bounds = array<i64: 1>, scalar_prefetch = 0 : i64, scratch_operands = 0 : i64, tpu.core_type = #tpu.core_type<tc>, window_params = [{transform_indices = @transform_0, window_bounds = array<i64: 8, 1024>}, {pipeline_mode = #tpu.pipeline_mode<synchronous>, transform_indices = @transform_1, window_bounds = array<i64: 1024, 128>}, {transform_indices = @transform_2, window_bounds = array<i64: 8, 128>}]} {
    %c0 = arith.constant 0 : index
    %c0_0 = arith.constant 0 : index
    %0 = vector.load %arg1[%c0, %c0_0] : memref<8x1024xbf16, #tpu.memory_space<vmem>>, vector<8x1024xbf16>
    %c0_1 = arith.constant 0 : index
    %c0_2 = arith.constant 0 : index
    %1 = vector.load %arg2[%c0_1, %c0_2] : memref<1024x128xbf16, #tpu.memory_space<vmem>>, vector<1024x128xbf16>
    %cst = arith.constant dense<0.000000e+00> : vector<8x128xf32>
    %2 = tpu.matmul %0, %1, %cst {dimension_numbers = #tpu.dot_dimension_numbers<[1], [0], [0], [1], [0, 0, 1, 1], [], []>} : vector<8x1024xbf16>, vector<1024x128xbf16>, vector<8x128xf32> -> vector<8x128xf32>
    %3 = arith.negf %2 : vector<8x128xf32>
    %4 = math.exp %3 : vector<8x128xf32>
    %cst_3 = arith.constant 1.000000e+00 : f32
    %5 = vector.broadcast %cst_3 : f32 to vector<8x128xf32>
    %6 = arith.addf %5, %4 : vector<8x128xf32>
    %7 = arith.divf %5, %6 : vector<8x128xf32>
    %c0_4 = arith.constant 0 : index
    %c0_5 = arith.constant 0 : index
    %8 = vector.load %arg3[%c0_4, %c0_5] : memref<8x128xf32, #tpu.memory_space<vmem>>, vector<8x128xf32>
    tpu.vector_store %arg3[%c0_4, %c0_5], %7 {strides = array<i32>} : memref<8x128xf32, #tpu.memory_space<vmem>>, vector<8x128xf32>,
    return
  }
  func.func @transform_0(%arg0: i32) -> (i32, i32) {
    %c0_i32 = arith.constant 0 : i32
    %c0_i32_0 = arith.constant 0 : i32
    return %arg0, %c0_i32 : i32, i32
  }
  func.func @transform_1(%arg0: i32) -> (i32, i32) {
    %c0_i32 = arith.constant 0 : i32
    %c0_i32_0 = arith.constant 0 : i32
    %c0_i32_1 = arith.constant 0 : i32
    return %c0_i32, %c0_i32_0 : i32, i32
  }
  func.func @transform_2(%arg0: i32) -> (i32, i32) {
    %c0_i32 = arith.constant 0 : i32
    %c0_i32_0 = arith.constant 0 : i32
    return %arg0, %c0_i32 : i32, i32
  }
}

</mosaic_0001>

<llo_original>
// kernel: netd_forward.8
$region0: #{netd_forward.8}
  #allocation0 [shape = 'u32[]', space=smem, size = 0x4, offset = 0x4, fixed_abs, tag = 'smem constant byte address 0x4 - core index']
  #allocation1 [shape = 'u32[144,128]{1,0:T(1,128)}', space=vmem, size = 0x12000, scoped, tag = 'internal scratch']
  %s0 = inlined_call_operand.vmem [shape: bf16[512,64], index: 0, kind: input, shape index: {}]
  %s1 = inlined_call_operand.vmem [shape: bf16[64,128], index: 1, kind: input, shape index: {}]
  %s2 = inlined_call_operand.vmem [shape: f32[512,128], index: 2, kind: output, shape index: {}]
  %s3 = sld [smem:[#allocation0]]
  $region18: #{netd_forward.8} parent=0
    _
  %s5 = ssub.s32 1, %s3
  %s6 = scalar_select 0, %s5, %s3
  // Predicated region
  $region2: #{netd_forward.8} parent=0 // pred_check
    _
  $region3: #{netd_forward.8} parent=0 // pred_check_branch
    %8 = sbr.rel (0) target = $region5
  $region4: #{netd_forward.8} parent=0 // pred_region
    _
  $region5: #{netd_forward.8} parent=0 // pred_fallthru
    _
  // Predicated region
  $region6: #{netd_forward.8} parent=0 // pred_check
    _
  $region7: #{netd_forward.8} parent=0 // pred_check_branch
    %10 = sbr.rel (0) target = $region9
  $region8: #{netd_forward.8} parent=0 // pred_region
    _
  $region9: #{netd_forward.8} parent=0 // pred_fallthru
    _
  %v12 = vld [vmem:[%s0] sm:$0xf]
  %v13 = vld [vmem:[%s0 + $0x4] sm:$0xf]
  %v14 = vld [vmem:[%s0 + $0x8] sm:$0xf]
  %v15 = vld [vmem:[%s0 + $0xc] sm:$0xf]
  %v16 = vld [vmem:[%s0 + $0x10] sm:$0xf]
  %v17 = vld [vmem:[%s0 + $0x14] sm:$0xf]
  %v18 = vld [vmem:[%s0 + $0x18] sm:$0xf]
  %v19 = vld [vmem:[%s0 + $0x1c] sm:$0xf]
  %v20 = vld [vmem:[%s0 + $0x20] sm:$0xf]
  %v21 = vld [vmem:[%s0 + $0x24] sm:$0xf]
  %v22 = vld [vmem:[%s0 + $0x28] sm:$0xf]
  %v23 = vld [vmem:[%s0 + $0x2c] sm:$0xf]
  %v24 = vld [vmem:[%s0 + $0x30] sm:$0xf]
  %v25 = vld [vmem:[%s0 + $0x34] sm:$0xf]
  %v26 = vld [vmem:[%s0 + $0x38] sm:$0xf]
  %v27 = vld [vmem:[%s0 + $0x3c] sm:$0xf]
  %v28 = vld [vmem:[%s0 + $0x40] sm:$0xf]
  %v29 = vld [vmem:[%s0 + $0x44] sm:$0xf]
  %v30 = vld [vmem:[%s0 + $0x48] sm:$0xf]
  %v31 = vld [vmem:[%s0 + $0x4c] sm:$0xf]
  %v32 = vld [vmem:[%s0 + $0x50] sm:$0xf]
  %v33 = vld [vmem:[%s0 + $0x54] sm:$0xf]
  %v34 = vld [vmem:[%s0 + $0x58] sm:$0xf]
  %v35 = vld [vmem:[%s0 + $0x5c] sm:$0xf]
  %v36 = vld [vmem:[%s0 + $0x60] sm:$0xf]
  %v37 = vld [vmem:[%s0 + $0x64] sm:$0xf]
  %v38 = vld [vmem:[%s0 + $0x68] sm:$0xf]
  %v39 = vld [vmem:[%s0 + $0x6c] sm:$0xf]
  %v40 = vld [vmem:[%s0 + $0x70] sm:$0xf]
  %v41 = vld [vmem:[%s0 + $0x74] sm:$0xf]
  %v42 = vld [vmem:[%s0 + $0x78] sm:$0xf]
  %v43 = vld [vmem:[%s0 + $0x7c] sm:$0xf]
  %v44 = vld [vmem:[%s0 + $0x80] sm:$0xf]
  %v45 = vld [vmem:[%s0 + $0x84] sm:$0xf]
  %v46 = vld [vmem:[%s0 + $0x88] sm:$0xf]
  %v47 = vld [vmem:[%s0 + $0x8c] sm:$0xf]
  %v48 = vld [vmem:[%s0 + $0x90] sm:$0xf]
  %v49 = vld [vmem:[%s0 + $0x94] sm:$0xf]
  %v50 = vld [vmem:[%s0 + $0x98] sm:$0xf]
  %v51 = vld [vmem:[%s0 + $0x9c] sm:$0xf]
  %v52 = vld [vmem:[%s0 + $0xa0] sm:$0xf]
  %v53 = vld [vmem:[%s0 + $0xa4] sm:$0xf]
  %v54 = vld [vmem:[%s0 + $0xa8] sm:$0xf]
  %v55 = vld [vmem:[%s0 + $0xac] sm:$0xf]
  %v56 = vld [vmem:[%s0 + $0xb0] sm:$0xf]
  %v57 = vld [vmem:[%s0 + $0xb4] sm:$0xf]
  %v58 = vld [vmem:[%s0 + $0xb8] sm:$0xf]
  %v59 = vld [vmem:[%s0 + $0xbc] sm:$0xf]
  %v60 = vld [vmem:[%s0 + $0xc0] sm:$0xf]
  %v61 = vld [vmem:[%s0 + $0xc4] sm:$0xf]
  %v62 = vld [vmem:[%s0 + $0xc8] sm:$0xf]
  %v63 = vld [vmem:[%s0 + $0xcc] sm:$0xf]
  %v64 = vld [vmem:[%s0 + $0xd0] sm:$0xf]
  %v65 = vld [vmem:[%s0 + $0xd4] sm:$0xf]
  %v66 = vld [vmem:[%s0 + $0xd8] sm:$0xf]
  %v67 = vld [vmem:[%s0 + $0xdc] sm:$0xf]
  %v68 = vld [vmem:[%s0 + $0xe0] sm:$0xf]
  %v69 = vld [vmem:[%s0 + $0xe4] sm:$0xf]
  %v70 = vld [vmem:[%s0 + $0xe8] sm:$0xf]
  %v71 = vld [vmem:[%s0 + $0xec] sm:$0xf]
  %v72 = vld [vmem:[%s0 + $0xf0] sm:$0xf]
  %v73 = vld [vmem:[%s0 + $0xf4] sm:$0xf]
  %v74 = vld [vmem:[%s0 + $0xf8] sm:$0xf]
  %v75 = vld [vmem:[%s0 + $0xfc] sm:$0xf]
  %v76 = vld [vmem:[%s1] sm:$0xf]
  %v77 = vld [vmem:[%s1 + $0x4] sm:$0xf]
  %v78 = vld [vmem:[%s1 + $0x8] sm:$0xf]
  %v79 = vld [vmem:[%s1 + $0xc] sm:$0xf]
  %v80 = vld [vmem:[%s1 + $0x10] sm:$0xf]
  %v81 = vld [vmem:[%s1 + $0x14] sm:$0xf]
  %v82 = vld [vmem:[%s1 + $0x18] sm:$0xf]
  %v83 = vld [vmem:[%s1 + $0x1c] sm:$0xf]
  %v148 = vunpack.c.l.b16 %v12
  %v149 = vunpack.c.l.b16 %v13
  %v150 = vunpack.c.l.b16 %v14
  %v151 = vunpack.c.l.b16 %v15
  %v152 = vunpack.c.l.b16 %v16
  %v153 = vunpack.c.l.b16 %v17
  %v154 = vunpack.c.l.b16 %v18
  %v155 = vunpack.c.l.b16 %v19
  %v156 = vunpack.c.l.b16 %v20
  %v157 = vunpack.c.l.b16 %v21
  %v158 = vunpack.c.l.b16 %v22
  %v159 = vunpack.c.l.b16 %v23
  %v160 = vunpack.c.l.b16 %v24
  %v161 = vunpack.c.l.b16 %v25
  %v162 = vunpack.c.l.b16 %v26
  %v163 = vunpack.c.l.b16 %v27
  %v164 = vunpack.c.l.b16 %v28
  %v165 = vunpack.c.l.b16 %v29
  %v166 = vunpack.c.l.b16 %v30
  %v167 = vunpack.c.l.b16 %v31
  %v168 = vunpack.c.l.b16 %v32
  %v169 = vunpack.c.l.b16 %v33
  %v170 = vunpack.c.l.b16 %v34
  %v171 = vunpack.c.l.b16 %v35
  %v172 = vunpack.c.l.b16 %v36
  %v173 = vunpack.c.l.b16 %v37
  %v174 = vunpack.c.l.b16 %v38
  %v175 = vunpack.c.l.b16 %v39
  %v176 = vunpack.c.l.b16 %v40
  %v177 = vunpack.c.l.b16 %v41
  %v178 = vunpack.c.l.b16 %v42
  %v179 = vunpack.c.l.b16 %v43
  %v180 = vunpack.c.l.b16 %v44
  %v181 = vunpack.c.l.b16 %v45
  %v182 = vunpack.c.l.b16 %v46
  %v183 = vunpack.c.l.b16 %v47
  %v184 = vunpack.c.l.b16 %v48
  %v185 = vunpack.c.l.b16 %v49
  %v186 = vunpack.c.l.b16 %v50
  %v187 = vunpack.c.l.b16 %v51
  %v188 = vunpack.c.l.b16 %v52
  %v189 = vunpack.c.l.b16 %v53
  %v190 = vunpack.c.l.b16 %v54
  %v191 = vunpack.c.l.b16 %v55
  %v192 = vunpack.c.l.b16 %v56
  %v193 = vunpack.c.l.b16 %v57
  %v194 = vunpack.c.l.b16 %v58
  %v195 = vunpack.c.l.b16 %v59
  %v196 = vunpack.c.l.b16 %v60
  %v197 = vunpack.c.l.b16 %v61
  %v198 = vunpack.c.l.b16 %v62
  %v199 = vunpack.c.l.b16 %v63
  %v200 = vunpack.c.l.b16 %v64
  %v201 = vunpack.c.l.b16 %v65
  %v202 = vunpack.c.l.b16 %v66
  %v203 = vunpack.c.l.b16 %v67
  %v204 = vunpack.c.l.b16 %v68
  %v205 = vunpack.c.l.b16 %v69
  %v206 = vunpack.c.l.b16 %v70
  %v207 = vunpack.c.l.b16 %v71
  %v208 = vunpack.c.l.b16 %v72
  %v209 = vunpack.c.l.b16 %v73
  %v210 = vunpack.c.l.b16 %v74
  %v211 = vunpack.c.l.b16 %v75
  %v212 = vpack.c.b16 %v149, %v148
  %v213 = vpack.c.b16 %v151, %v150
  %v214 = vpack.c.b16 %v153, %v152
  %v215 = vpack.c.b16 %v155, %v154
  %v216 = vpack.c.b16 %v157, %v156
  %v217 = vpack.c.b16 %v159, %v158
  %v218 = vpack.c.b16 %v161, %v160
  %v219 = vpack.c.b16 %v163, %v162
  %v220 = vpack.c.b16 %v165, %v164
  %v221 = vpack.c.b16 %v167, %v166
  %v222 = vpack.c.b16 %v169, %v168
  %v223 = vpack.c.b16 %v171, %v170
  %v224 = vpack.c.b16 %v173, %v172
  %v225 = vpack.c.b16 %v175, %v174
  %v226 = vpack.c.b16 %v177, %v176
  %v227 = vpack.c.b16 %v179, %v178
  %v228 = vpack.c.b16 %v181, %v180
  %v229 = vpack.c.b16 %v183, %v182
  %v230 = vpack.c.b16 %v185, %v184
  %v231 = vpack.c.b16 %v187, %v186
  %v232 = vpack.c.b16 %v189, %v188
  %v233 = vpack.c.b16 %v191, %v190
  %v234 = vpack.c.b16 %v193, %v192
  %v235 = vpack.c.b16 %v195, %v194
  %v236 = vpack.c.b16 %v197, %v196
  %v237 = vpack.c.b16 %v199, %v198
  %v238 = vpack.c.b16 %v201, %v200
  %v239 = vpack.c.b16 %v203, %v202
  %v240 = vpack.c.b16 %v205, %v204
  %v241 = vpack.c.b16 %v207, %v206
  %v242 = vpack.c.b16 %v209, %v208
  %v243 = vpack.c.b16 %v211, %v210
  %v252 = vunpack.c.l.b16 %v76
  %v253 = vunpack.c.l.b16 %v77
  %v254 = vunpack.c.l.b16 %v78
  %v255 = vunpack.c.l.b16 %v79
  %v256 = vunpack.c.l.b16 %v80
  %v257 = vunpack.c.l.b16 %v81
  %v258 = vunpack.c.l.b16 %v82
  %v259 = vunpack.c.l.b16 %v83
  %v260 = vpack.c.b16 %v253, %v252
  %v261 = vpack.c.b16 %v255, %v254
  %v262 = vpack.c.b16 %v257, %v256
  %v263 = vpack.c.b16 %v259, %v258
  %vm268 = vcmask 523264
  %v270 = vsel %vm268, %v212, 0
  %v273 = vsel %vm268, %v213, 0
  %v276 = vsel %vm268, %v214, 0
  %v279 = vsel %vm268, %v215, 0
  %v282 = vsel %vm268, %v216, 0
  %v285 = vsel %vm268, %v217, 0
  %v288 = vsel %vm268, %v218, 0
  %v291 = vsel %vm268, %v219, 0
  %v294 = vsel %vm268, %v220, 0
  %v297 = vsel %vm268, %v221, 0
  %v300 = vsel %vm268, %v222, 0
  %v303 = vsel %vm268, %v223, 0
  %v306 = vsel %vm268, %v224, 0
  %v309 = vsel %vm268, %v225, 0
  %v312 = vsel %vm268, %v226, 0
  %v315 = vsel %vm268, %v227, 0
  %v318 = vsel %vm268, %v228, 0
  %v321 = vsel %vm268, %v229, 0
  %v324 = vsel %vm268, %v230, 0
  %v327 = vsel %vm268, %v231, 0
  %v330 = vsel %vm268, %v232, 0
  %v333 = vsel %vm268, %v233, 0
  %v336 = vsel %vm268, %v234, 0
  %v339 = vsel %vm268, %v235, 0
  %v342 = vsel %vm268, %v236, 0
  %v345 = vsel %vm268, %v237, 0
  %v348 = vsel %vm268, %v238, 0
  %v351 = vsel %vm268, %v239, 0
  %v354 = vsel %vm268, %v240, 0
  %v357 = vsel %vm268, %v241, 0
  %v360 = vsel %vm268, %v242, 0
  %v363 = vsel %vm268, %v243, 0
  %365 = vmatprep.subr.bf16.mxu0 0
  %366 = vmatpush1.bf16.msra.mxu0 0
  %367 = vmatprep.subr.bf16.mxu0 0
  %368 = vmatpush1.bf16.msra.mxu0 0
  %369 = vmatprep.subr.bf16.mxu0 0
  %370 = vmatpush1.bf16.msra.mxu0 0
  %371 = vmatprep.subr.bf16.mxu0 0
  %372 = vmatpush1.bf16.msra.mxu0 0
  %373 = vmatprep.subr.bf16.mxu0 0
  %374 = vmatpush1.bf16.msra.mxu0 %v263
  %375 = vmatprep.subr.bf16.mxu0 0
  %376 = vmatpush1.bf16.msra.mxu0 %v262
  %377 = vmatprep.subr.bf16.mxu0 0
  %378 = vmatpush1.bf16.msra.mxu0 %v261
  %379 = vmatprep.subr.bf16.mxu0 0
  %380 = vmatpush1.bf16.msra.mxu0 %v260
  %381 = vmatprep.subr.bf16.mxu0 0
  %382 = vmatpush2.bf16.msra.mxu0 0
  %383 = vmatprep.subr.bf16.mxu0 0
  %384 = vmatpush2.bf16.msra.mxu0 0
  %385 = vmatprep.subr.bf16.mxu0 0
  %386 = vmatpush2.bf16.msra.mxu0 0
  %387 = vmatprep.subr.bf16.mxu0 0
  %388 = vmatpush2.bf16.msra.mxu0 0
  %389 = vmatprep.subr.bf16.mxu0 0
  %390 = vmatpush2.bf16.msra.mxu0 0
  %391 = vmatprep.subr.bf16.mxu0 0
  %392 = vmatpush2.bf16.msra.mxu0 0
  %393 = vmatprep.subr.bf16.mxu0 0
  %394 = vmatpush2.bf16.msra.mxu0 0
  %395 = vmatprep.subr.bf16.mxu0 0
  %396 = vmatpush2.bf16.msra.mxu0 0
  %397 = vmatprep.mubr.bf16.mxu0 0
  %398 = vmatmul.mubr.bf16.gmra.mxu0 %v270
  %v399 = vpop.f32.mrf.mxu0
  %v400 = vadd.f32 0.0, %v399
  %v401 = vpop.f32.mrf.mxu0
  %v402 = vpop.f32.mrf.mxu0
  %v403 = vadd.f32 0.0, %v402
  %v404 = vpop.f32.mrf.mxu0
  %405 = vmatprep.mubr.bf16.mxu0 0
  %406 = vmatmul.mubr.bf16.gmra.mxu0 %v273
  %v407 = vpop.f32.mrf.mxu0
  %v408 = vadd.f32 0.0, %v407
  %v409 = vpop.f32.mrf.mxu0
  %v410 = vpop.f32.mrf.mxu0
  %v411 = vadd.f32 0.0, %v410
  %v412 = vpop.f32.mrf.mxu0
  %413 = vmatprep.mubr.bf16.mxu0 0
  %414 = vmatmul.mubr.bf16.gmra.mxu0 %v276
  %v415 = vpop.f32.mrf.mxu0
  %v416 = vadd.f32 0.0, %v415
  %v417 = vpop.f32.mrf.mxu0
  %v418 = vpop.f32.mrf.mxu0
  %v419 = vadd.f32 0.0, %v418
  %v420 = vpop.f32.mrf.mxu0
  %421 = vmatprep.mubr.bf16.mxu0 0
  %422 = vmatmul.mubr.bf16.gmra.mxu0 %v279
  %v423 = vpop.f32.mrf.mxu0
  %v424 = vadd.f32 0.0, %v423
  %v425 = vpop.f32.mrf.mxu0
  %v426 = vpop.f32.mrf.mxu0
  %v427 = vadd.f32 0.0, %v426
  %v428 = vpop.f32.mrf.mxu0
  %429 = vmatprep.mubr.bf16.mxu0 0
  %430 = vmatmul.mubr.bf16.gmra.mxu0 %v282
  %v431 = vpop.f32.mrf.mxu0
  %v432 = vadd.f32 0.0, %v431
  %v433 = vpop.f32.mrf.mxu0
  %v434 = vpop.f32.mrf.mxu0
  %v435 = vadd.f32 0.0, %v434
  %v436 = vpop.f32.mrf.mxu0
  %437 = vmatprep.mubr.bf16.mxu0 0
  %438 = vmatmul.mubr.bf16.gmra.mxu0 %v285
  %v439 = vpop.f32.mrf.mxu0
  %v440 = vadd.f32 0.0, %v439
  %v441 = vpop.f32.mrf.mxu0
  %v442 = vpop.f32.mrf.mxu0
  %v443 = vadd.f32 0.0, %v442
  %v444 = vpop.f32.mrf.mxu0
  %445 = vmatprep.mubr.bf16.mxu0 0
  %446 = vmatmul.mubr.bf16.gmra.mxu0 %v288
  %v447 = vpop.f32.mrf.mxu0
  %v448 = vadd.f32 0.0, %v447
  %v449 = vpop.f32.mrf.mxu0
  %v450 = vpop.f32.mrf.mxu0
  %v451 = vadd.f32 0.0, %v450
  %v452 = vpop.f32.mrf.mxu0
  %453 = vmatprep.mubr.bf16.mxu0 0
  %454 = vmatmul.mubr.bf16.gmra.mxu0 %v291
  %v455 = vpop.f32.mrf.mxu0
  %v456 = vadd.f32 0.0, %v455
  %v457 = vpop.f32.mrf.mxu0
  %v458 = vpop.f32.mrf.mxu0
  %v459 = vadd.f32 0.0, %v458
  %v460 = vpop.f32.mrf.mxu0
  %461 = vmatprep.mubr.bf16.mxu0 0
  %462 = vmatmul.mubr.bf16.gmra.mxu0 %v294
  %v463 = vpop.f32.mrf.mxu0
  %v464 = vadd.f32 0.0, %v463
  %v465 = vpop.f32.mrf.mxu0
  %v466 = vpop.f32.mrf.mxu0
  %v467 = vadd.f32 0.0, %v466
  %v468 = vpop.f32.mrf.mxu0
  %469 = vmatprep.mubr.bf16.mxu0 0
  %470 = vmatmul.mubr.bf16.gmra.mxu0 %v297
  %v471 = vpop.f32.mrf.mxu0
  %v472 = vadd.f32 0.0, %v471
  %v473 = vpop.f32.mrf.mxu0
  %v474 = vpop.f32.mrf.mxu0
  %v475 = vadd.f32 0.0, %v474
  %v476 = vpop.f32.mrf.mxu0
  %477 = vmatprep.mubr.bf16.mxu0 0
  %478 = vmatmul.mubr.bf16.gmra.mxu0 %v300
  %v479 = vpop.f32.mrf.mxu0
  %v480 = vadd.f32 0.0, %v479
  %v481 = vpop.f32.mrf.mxu0
  %v482 = vpop.f32.mrf.mxu0
  %v483 = vadd.f32 0.0, %v482
  %v484 = vpop.f32.mrf.mxu0
  %485 = vmatprep.mubr.bf16.mxu0 0
  %486 = vmatmul.mubr.bf16.gmra.mxu0 %v303
  %v487 = vpop.f32.mrf.mxu0
  %v488 = vadd.f32 0.0, %v487
  %v489 = vpop.f32.mrf.mxu0
  %v490 = vpop.f32.mrf.mxu0
  %v491 = vadd.f32 0.0, %v490
  %v492 = vpop.f32.mrf.mxu0
  %493 = vmatprep.mubr.bf16.mxu0 0
  %494 = vmatmul.mubr.bf16.gmra.mxu0 %v306
  %v495 = vpop.f32.mrf.mxu0
  %v496 = vadd.f32 0.0, %v495
  %v497 = vpop.f32.mrf.mxu0
  %v498 = vpop.f32.mrf.mxu0
  %v499 = vadd.f32 0.0, %v498
  %v500 = vpop.f32.mrf.mxu0
  %501 = vmatprep.mubr.bf16.mxu0 0
  %502 = vmatmul.mubr.bf16.gmra.mxu0 %v309
  %v503 = vpop.f32.mrf.mxu0
  %v504 = vadd.f32 0.0, %v503
  %v505 = vpop.f32.mrf.mxu0
  %v506 = vpop.f32.mrf.mxu0
  %v507 = vadd.f32 0.0, %v506
  %v508 = vpop.f32.mrf.mxu0
  %509 = vmatprep.mubr.bf16.mxu0 0
  %510 = vmatmul.mubr.bf16.gmra.mxu0 %v312
  %v511 = vpop.f32.mrf.mxu0
  %v512 = vadd.f32 0.0, %v511
  %v513 = vpop.f32.mrf.mxu0
  %v514 = vpop.f32.mrf.mxu0
  %v515 = vadd.f32 0.0, %v514
  %v516 = vpop.f32.mrf.mxu0
  %517 = vmatprep.mubr.bf16.mxu0 0
  %518 = vmatmul.mubr.bf16.gmra.mxu0 %v315
  %v519 = vpop.f32.mrf.mxu0
  %v520 = vadd.f32 0.0, %v519
  %v521 = vpop.f32.mrf.mxu0
  %v522 = vpop.f32.mrf.mxu0
  %v523 = vadd.f32 0.0, %v522
  %v524 = vpop.f32.mrf.mxu0
  %525 = vmatprep.mubr.bf16.mxu0 0
  %526 = vmatmul.mubr.bf16.gmra.mxu0 %v318
  %v527 = vpop.f32.mrf.mxu0
  %v528 = vadd.f32 0.0, %v527
  %v529 = vpop.f32.mrf.mxu0
  %v530 = vpop.f32.mrf.mxu0
  %v531 = vadd.f32 0.0, %v530
  %v532 = vpop.f32.mrf.mxu0
  %533 = vmatprep.mubr.bf16.mxu0 0
  %534 = vmatmul.mubr.bf16.gmra.mxu0 %v321
  %v535 = vpop.f32.mrf.mxu0
  %v536 = vadd.f32 0.0, %v535
  %v537 = vpop.f32.mrf.mxu0
  %v538 = vpop.f32.mrf.mxu0
  %v539 = vadd.f32 0.0, %v538
  %v540 = vpop.f32.mrf.mxu0
  %541 = vmatprep.mubr.bf16.mxu0 0
  %542 = vmatmul.mubr.bf16.gmra.mxu0 %v324
  %v543 = vpop.f32.mrf.mxu0
  %v544 = vadd.f32 0.0, %v543
  %v545 = vpop.f32.mrf.mxu0
  %v546 = vpop.f32.mrf.mxu0
  %v547 = vadd.f32 0.0, %v546
  %v548 = vpop.f32.mrf.mxu0
  %549 = vmatprep.mubr.bf16.mxu0 0
  %550 = vmatmul.mubr.bf16.gmra.mxu0 %v327
  %v551 = vpop.f32.mrf.mxu0
  %v552 = vadd.f32 0.0, %v551
  %v553 = vpop.f32.mrf.mxu0
  %v554 = vpop.f32.mrf.mxu0
  %v555 = vadd.f32 0.0, %v554
  %v556 = vpop.f32.mrf.mxu0
  %557 = vmatprep.mubr.bf16.mxu0 0
  %558 = vmatmul.mubr.bf16.gmra.mxu0 %v330
  %v559 = vpop.f32.mrf.mxu0
  %v560 = vadd.f32 0.0, %v559
  %v561 = vpop.f32.mrf.mxu0
  %v562 = vpop.f32.mrf.mxu0
  %v563 = vadd.f32 0.0, %v562
  %v564 = vpop.f32.mrf.mxu0
  %565 = vmatprep.mubr.bf16.mxu0 0
  %566 = vmatmul.mubr.bf16.gmra.mxu0 %v333
  %v567 = vpop.f32.mrf.mxu0
  %v568 = vadd.f32 0.0, %v567
  %v569 = vpop.f32.mrf.mxu0
  %v570 = vpop.f32.mrf.mxu0
  %v571 = vadd.f32 0.0, %v570
  %v572 = vpop.f32.mrf.mxu0
  %573 = vmatprep.mubr.bf16.mxu0 0
  %574 = vmatmul.mubr.bf16.gmra.mxu0 %v336
  %v575 = vpop.f32.mrf.mxu0
  %v576 = vadd.f32 0.0, %v575
  %v577 = vpop.f32.mrf.mxu0
  %v578 = vpop.f32.mrf.mxu0
  %v579 = vadd.f32 0.0, %v578
  %v580 = vpop.f32.mrf.mxu0
  %581 = vmatprep.mubr.bf16.mxu0 0
  %582 = vmatmul.mubr.bf16.gmra.mxu0 %v339
  %v583 = vpop.f32.mrf.mxu0
  %v584 = vadd.f32 0.0, %v583
  %v585 = vpop.f32.mrf.mxu0
  %v586 = vpop.f32.mrf.mxu0
  %v587 = vadd.f32 0.0, %v586
  %v588 = vpop.f32.mrf.mxu0
  %589 = vmatprep.mubr.bf16.mxu0 0
  %590 = vmatmul.mubr.bf16.gmra.mxu0 %v342
  %v591 = vpop.f32.mrf.mxu0
  %v592 = vadd.f32 0.0, %v591
  %v593 = vpop.f32.mrf.mxu0
  %v594 = vpop.f32.mrf.mxu0
  %v595 = vadd.f32 0.0, %v594
  %v596 = vpop.f32.mrf.mxu0
  %597 = vmatprep.mubr.bf16.mxu0 0
  %598 = vmatmul.mubr.bf16.gmra.mxu0 %v345
  %v599 = vpop.f32.mrf.mxu0
  %v600 = vadd.f32 0.0, %v599
  %v601 = vpop.f32.mrf.mxu0
  %v602 = vpop.f32.mrf.mxu0
  %v603 = vadd.f32 0.0, %v602
  %v604 = vpop.f32.mrf.mxu0
  %605 = vmatprep.mubr.bf16.mxu0 0
  %606 = vmatmul.mubr.bf16.gmra.mxu0 %v348
  %v607 = vpop.f32.mrf.mxu0
  %v608 = vadd.f32 0.0, %v607
  %v609 = vpop.f32.mrf.mxu0
  %v610 = vpop.f32.mrf.mxu0
  %v611 = vadd.f32 0.0, %v610
  %v612 = vpop.f32.mrf.mxu0
  %613 = vmatprep.mubr.bf16.mxu0 0
  %614 = vmatmul.mubr.bf16.gmra.mxu0 %v351
  %v615 = vpop.f32.mrf.mxu0
  %v616 = vadd.f32 0.0, %v615
  %v617 = vpop.f32.mrf.mxu0
  %v618 = vpop.f32.mrf.mxu0
  %v619 = vadd.f32 0.0, %v618
  %v620 = vpop.f32.mrf.mxu0
  %621 = vmatprep.mubr.bf16.mxu0 0
  %622 = vmatmul.mubr.bf16.gmra.mxu0 %v354
  %v623 = vpop.f32.mrf.mxu0
  %v624 = vadd.f32 0.0, %v623
  %v625 = vpop.f32.mrf.mxu0
  %v626 = vpop.f32.mrf.mxu0
  %v627 = vadd.f32 0.0, %v626
  %v628 = vpop.f32.mrf.mxu0
  %629 = vmatprep.mubr.bf16.mxu0 0
  %630 = vmatmul.mubr.bf16.gmra.mxu0 %v357
  %v631 = vpop.f32.mrf.mxu0
  %v632 = vadd.f32 0.0, %v631
  %v633 = vpop.f32.mrf.mxu0
  %v634 = vpop.f32.mrf.mxu0
  %v635 = vadd.f32 0.0, %v634
  %v636 = vpop.f32.mrf.mxu0
  %637 = vmatprep.mubr.bf16.mxu0 0
  %638 = vmatmul.mubr.bf16.gmra.mxu0 %v360
  %v639 = vpop.f32.mrf.mxu0
  %v640 = vadd.f32 0.0, %v639
  %v641 = vpop.f32.mrf.mxu0
  %v642 = vpop.f32.mrf.mxu0
  %v643 = vadd.f32 0.0, %v642
  %v644 = vpop.f32.mrf.mxu0
  %645 = vmatprep.mubr.bf16.mxu0 0
  %646 = vmatmul.mubr.bf16.gmra.mxu0 %v363
  %v647 = vpop.f32.mrf.mxu0
  %v648 = vadd.f32 0.0, %v647
  %v649 = vpop.f32.mrf.mxu0
  %v650 = vpop.f32.mrf.mxu0
  %v651 = vadd.f32 0.0, %v650
  %v652 = vpop.f32.mrf.mxu0
  %653 = vdwg.mxu0
  %vm654 = vcmp.ge.f32.partialorder %v400, 0.0
  %vm655 = vcmp.ge.f32.partialorder %v403, 0.0
  %vm656 = vcmp.ge.f32.partialorder %v408, 0.0
  %vm657 = vcmp.ge.f32.partialorder %v411, 0.0
  %vm658 = vcmp.ge.f32.partialorder %v416, 0.0
  %vm659 = vcmp.ge.f32.partialorder %v419, 0.0
  %vm660 = vcmp.ge.f32.partialorder %v424, 0.0
  %vm661 = vcmp.ge.f32.partialorder %v427, 0.0
  %vm662 = vcmp.ge.f32.partialorder %v432, 0.0
  %vm663 = vcmp.ge.f32.partialorder %v435, 0.0
  %vm664 = vcmp.ge.f32.partialorder %v440, 0.0
  %vm665 = vcmp.ge.f32.partialorder %v443, 0.0
  %vm666 = vcmp.ge.f32.partialorder %v448, 0.0
  %vm667 = vcmp.ge.f32.partialorder %v451, 0.0
  %vm668 = vcmp.ge.f32.partialorder %v456, 0.0
  %vm669 = vcmp.ge.f32.partialorder %v459, 0.0
  %vm670 = vcmp.ge.f32.partialorder %v464, 0.0
  %vm671 = vcmp.ge.f32.partialorder %v467, 0.0
  %vm672 = vcmp.ge.f32.partialorder %v472, 0.0
  %vm673 = vcmp.ge.f32.partialorder %v475, 0.0
  %vm674 = vcmp.ge.f32.partialorder %v480, 0.0
  %vm675 = vcmp.ge.f32.partialorder %v483, 0.0
  %vm676 = vcmp.ge.f32.partialorder %v488, 0.0
  %vm677 = vcmp.ge.f32.partialorder %v491, 0.0
  %vm678 = vcmp.ge.f32.partialorder %v496, 0.0
  %vm679 = vcmp.ge.f32.partialorder %v499, 0.0
  %vm680 = vcmp.ge.f32.partialorder %v504, 0.0
  %vm681 = vcmp.ge.f32.partialorder %v507, 0.0
  %vm682 = vcmp.ge.f32.partialorder %v512, 0.0
  %vm683 = vcmp.ge.f32.partialorder %v515, 0.0
  %vm684 = vcmp.ge.f32.partialorder %v520, 0.0
  %vm685 = vcmp.ge.f32.partialorder %v523, 0.0
  %vm686 = vcmp.ge.f32.partialorder %v528, 0.0
  %vm687 = vcmp.ge.f32.partialorder %v531, 0.0
  %vm688 = vcmp.ge.f32.partialorder %v536, 0.0
  %vm689 = vcmp.ge.f32.partialorder %v539, 0.0
  %vm690 = vcmp.ge.f32.partialorder %v544, 0.0
  %vm691 = vcmp.ge.f32.partialorder %v547, 0.0
  %vm692 = vcmp.ge.f32.partialorder %v552, 0.0
  %vm693 = vcmp.ge.f32.partialorder %v555, 0.0
  %vm694 = vcmp.ge.f32.partialorder %v560, 0.0
  %vm695 = vcmp.ge.f32.partialorder %v563, 0.0
  %vm696 = vcmp.ge.f32.partialorder %v568, 0.0
  %vm697 = vcmp.ge.f32.partialorder %v571, 0.0
  %vm698 = vcmp.ge.f32.partialorder %v576, 0.0
  %vm699 = vcmp.ge.f32.partialorder %v579, 0.0
  %vm700 = vcmp.ge.f32.partialorder %v584, 0.0
  %vm701 = vcmp.ge.f32.partialorder %v587, 0.0
  %vm702 = vcmp.ge.f32.partialorder %v592, 0.0
  %vm703 = vcmp.ge.f32.partialorder %v595, 0.0
  %vm704 = vcmp.ge.f32.partialorder %v600, 0.0
  %vm705 = vcmp.ge.f32.partialorder %v603, 0.0
  %vm706 = vcmp.ge.f32.partialorder %v608, 0.0
  %vm707 = vcmp.ge.f32.partialorder %v611, 0.0
  %vm708 = vcmp.ge.f32.partialorder %v616, 0.0
  %vm709 = vcmp.ge.f32.partialorder %v619, 0.0
  %vm710 = vcmp.ge.f32.partialorder %v624, 0.0
  %vm711 = vcmp.ge.f32.partialorder %v627, 0.0
  %vm712 = vcmp.ge.f32.partialorder %v632, 0.0
  %vm713 = vcmp.ge.f32.partialorder %v635, 0.0
  %vm714 = vcmp.ge.f32.partialorder %v640, 0.0
  %vm715 = vcmp.ge.f32.partialorder %v643, 0.0
  %vm716 = vcmp.ge.f32.partialorder %v648, 0.0
  %vm717 = vcmp.ge.f32.partialorder %v651, 0.0
  %v718 = vmul.f32 %v400, 0.2
  %v719 = vmul.f32 %v403, 0.2
  %v720 = vmul.f32 %v408, 0.2
  %v721 = vmul.f32 %v411, 0.2
  %v722 = vmul.f32 %v416, 0.2
  %v723 = vmul.f32 %v419, 0.2
  %v724 = vmul.f32 %v424, 0.2
  %v725 = vmul.f32 %v427, 0.2
  %v726 = vmul.f32 %v432, 0.2
  %v727 = vmul.f32 %v435, 0.2
  %v728 = vmul.f32 %v440, 0.2
  %v729 = vmul.f32 %v443, 0.2
  %v730 = vmul.f32 %v448, 0.2
  %v731 = vmul.f32 %v451, 0.2
  %v732 = vmul.f32 %v456, 0.2
  %v733 = vmul.f32 %v459, 0.2
  %v734 = vmul.f32 %v464, 0.2
  %v735 = vmul.f32 %v467, 0.2
  %v736 = vmul.f32 %v472, 0.2
  %v737 = vmul.f32 %v475, 0.2
  %v738 = vmul.f32 %v480, 0.2
  %v739 = vmul.f32 %v483, 0.2
  %v740 = vmul.f32 %v488, 0.2
  %v741 = vmul.f32 %v491, 0.2
  %v742 = vmul.f32 %v496, 0.2
  %v743 = vmul.f32 %v499, 0.2
  %v744 = vmul.f32 %v504, 0.2
  %v745 = vmul.f32 %v507, 0.2
  %v746 = vmul.f32 %v512, 0.2
  %v747 = vmul.f32 %v515, 0.2
  %v748 = vmul.f32 %v520, 0.2
  %v749 = vmul.f32 %v523, 0.2
  %v750 = vmul.f32 %v528, 0.2
  %v751 = vmul.f32 %v531, 0.2
  %v752 = vmul.f32 %v536, 0.2
  %v753 = vmul.f32 %v539, 0.2
  %v754 = vmul.f32 %v544, 0.2
  %v755 = vmul.f32 %v547, 0.2
  %v756 = vmul.f32 %v552, 0.2
  %v757 = vmul.f32 %v555, 0.2
  %v758 = vmul.f32 %v560, 0.2
  %v759 = vmul.f32 %v563, 0.2
  %v760 = vmul.f32 %v568, 0.2
  %v761 = vmul.f32 %v571, 0.2
  %v762 = vmul.f32 %v576, 0.2
  %v763 = vmul.f32 %v579, 0.2
  %v764 = vmul.f32 %v584, 0.2
  %v765 = vmul.f32 %v587, 0.2
  %v766 = vmul.f32 %v592, 0.2
  %v767 = vmul.f32 %v595, 0.2
  %v768 = vmul.f32 %v600, 0.2
  %v769 = vmul.f32 %v603, 0.2
  %v770 = vmul.f32 %v608, 0.2
  %v771 = vmul.f32 %v611, 0.2
  %v772 = vmul.f32 %v616, 0.2
  %v773 = vmul.f32 %v619, 0.2
  %v774 = vmul.f32 %v624, 0.2
  %v775 = vmul.f32 %v627, 0.2
  %v776 = vmul.f32 %v632, 0.2
  %v777 = vmul.f32 %v635, 0.2
  %v778 = vmul.f32 %v640, 0.2
  %v779 = vmul.f32 %v643, 0.2
  %v780 = vmul.f32 %v648, 0.2
  %v781 = vmul.f32 %v651, 0.2
  %v782 = vsel %vm654, %v400, %v718
  %v783 = vsel %vm655, %v403, %v719
  %v784 = vsel %vm656, %v408, %v720
  %v785 = vsel %vm657, %v411, %v721
  %v786 = vsel %vm658, %v416, %v722
  %v787 = vsel %vm659, %v419, %v723
  %v788 = vsel %vm660, %v424, %v724
  %v789 = vsel %vm661, %v427, %v725
  %v790 = vsel %vm662, %v432, %v726
  %v791 = vsel %vm663, %v435, %v727
  %v792 = vsel %vm664, %v440, %v728
  %v793 = vsel %vm665, %v443, %v729
  %v794 = vsel %vm666, %v448, %v730
  %v795 = vsel %vm667, %v451, %v731
  %v796 = vsel %vm668, %v456, %v732
  %v797 = vsel %vm669, %v459, %v733
  %v798 = vsel %vm670, %v464, %v734
  %v799 = vsel %vm671, %v467, %v735
  %v800 = vsel %vm672, %v472, %v736
  %v801 = vsel %vm673, %v475, %v737
  %v802 = vsel %vm674, %v480, %v738
  %v803 = vsel %vm675, %v483, %v739
  %v804 = vsel %vm676, %v488, %v740
  %v805 = vsel %vm677, %v491, %v741
  %v806 = vsel %vm678, %v496, %v742
  %v807 = vsel %vm679, %v499, %v743
  %v808 = vsel %vm680, %v504, %v744
  %v809 = vsel %vm681, %v507, %v745
  %v810 = vsel %vm682, %v512, %v746
  %v811 = vsel %vm683, %v515, %v747
  %v812 = vsel %vm684, %v520, %v748
  %v813 = vsel %vm685, %v523, %v749
  %v814 = vsel %vm686, %v528, %v750
  %v815 = vsel %vm687, %v531, %v751
  %v816 = vsel %vm688, %v536, %v752
  %v817 = vsel %vm689, %v539, %v753
  %v818 = vsel %vm690, %v544, %v754
  %v819 = vsel %vm691, %v547, %v755
  %v820 = vsel %vm692, %v552, %v756
  %v821 = vsel %vm693, %v555, %v757
  %v822 = vsel %vm694, %v560, %v758
  %v823 = vsel %vm695, %v563, %v759
  %v824 = vsel %vm696, %v568, %v760
  %v825 = vsel %vm697, %v571, %v761
  %v826 = vsel %vm698, %v576, %v762
  %v827 = vsel %vm699, %v579, %v763
  %v828 = vsel %vm700, %v584, %v764
  %v829 = vsel %vm701, %v587, %v765
  %v830 = vsel %vm702, %v592, %v766
  %v831 = vsel %vm703, %v595, %v767
  %v832 = vsel %vm704, %v600, %v768
  %v833 = vsel %vm705, %v603, %v769
  %v834 = vsel %vm706, %v608, %v770
  %v835 = vsel %vm707, %v611, %v771
  %v836 = vsel %vm708, %v616, %v772
  %v837 = vsel %vm709, %v619, %v773
  %v838 = vsel %vm710, %v624, %v774
  %v839 = vsel %vm711, %v627, %v775
  %v840 = vsel %vm712, %v632, %v776
  %v841 = vsel %vm713, %v635, %v777
  %v842 = vsel %vm714, %v640, %v778
  %v843 = vsel %vm715, %v643, %v779
  %v844 = vsel %vm716, %v648, %v780
  %v845 = vsel %vm717, %v651, %v781
  %846 = vst [vmem:[%s2] sm:$0xff] %v782
  %847 = vst [vmem:[%s2 + $0x8] sm:$0xff] %v783
  %848 = vst [vmem:[%s2 + $0x10] sm:$0xff] %v784
  %849 = vst [vmem:[%s2 + $0x18] sm:$0xff] %v785
  %850 = vst [vmem:[%s2 + $0x20] sm:$0xff] %v786
  %851 = vst [vmem:[%s2 + $0x28] sm:$0xff] %v787
  %852 = vst [vmem:[%s2 + $0x30] sm:$0xff] %v788
  %853 = vst [vmem:[%s2 + $0x38] sm:$0xff] %v789
  %854 = vst [vmem:[%s2 + $0x40] sm:$0xff] %v790
  %855 = vst [vmem:[%s2 + $0x48] sm:$0xff] %v791
  %856 = vst [vmem:[%s2 + $0x50] sm:$0xff] %v792
  %857 = vst [vmem:[%s2 + $0x58] sm:$0xff] %v793
  %858 = vst [vmem:[%s2 + $0x60] sm:$0xff] %v794
  %859 = vst [vmem:[%s2 + $0x68] sm:$0xff] %v795
  %860 = vst [vmem:[%s2 + $0x70] sm:$0xff] %v796
  %861 = vst [vmem:[%s2 + $0x78] sm:$0xff] %v797
  %862 = vst [vmem:[%s2 + $0x80] sm:$0xff] %v798
  %863 = vst [vmem:[%s2 + $0x88] sm:$0xff] %v799
  %864 = vst [vmem:[%s2 + $0x90] sm:$0xff] %v800
  %865 = vst [vmem:[%s2 + $0x98] sm:$0xff] %v801
  %866 = vst [vmem:[%s2 + $0xa0] sm:$0xff] %v802
  %867 = vst [vmem:[%s2 + $0xa8] sm:$0xff] %v803
  %868 = vst [vmem:[%s2 + $0xb0] sm:$0xff] %v804
  %869 = vst [vmem:[%s2 + $0xb8] sm:$0xff] %v805
  %870 = vst [vmem:[%s2 + $0xc0] sm:$0xff] %v806
  %871 = vst [vmem:[%s2 + $0xc8] sm:$0xff] %v807
  %872 = vst [vmem:[%s2 + $0xd0] sm:$0xff] %v808
  %873 = vst [vmem:[%s2 + $0xd8] sm:$0xff] %v809
  %874 = vst [vmem:[%s2 + $0xe0] sm:$0xff] %v810
  %875 = vst [vmem:[%s2 + $0xe8] sm:$0xff] %v811
  %876 = vst [vmem:[%s2 + $0xf0] sm:$0xff] %v812
  %877 = vst [vmem:[%s2 + $0xf8] sm:$0xff] %v813
  %878 = vst [vmem:[%s2 + $0x100] sm:$0xff] %v814
  %879 = vst [vmem:[%s2 + $0x108] sm:$0xff] %v815
  %880 = vst [vmem:[%s2 + $0x110] sm:$0xff] %v816
  %881 = vst [vmem:[%s2 + $0x118] sm:$0xff] %v817
  %882 = vst [vmem:[%s2 + $0x120] sm:$0xff] %v818
  %883 = vst [vmem:[%s2 + $0x128] sm:$0xff] %v819
  %884 = vst [vmem:[%s2 + $0x130] sm:$0xff] %v820
  %885 = vst [vmem:[%s2 + $0x138] sm:$0xff] %v821
  %886 = vst [vmem:[%s2 + $0x140] sm:$0xff] %v822
  %887 = vst [vmem:[%s2 + $0x148] sm:$0xff] %v823
  %888 = vst [vmem:[%s2 + $0x150] sm:$0xff] %v824
  %889 = vst [vmem:[%s2 + $0x158] sm:$0xff] %v825
  %890 = vst [vmem:[%s2 + $0x160] sm:$0xff] %v826
  %891 = vst [vmem:[%s2 + $0x168] sm:$0xff] %v827
  %892 = vst [vmem:[%s2 + $0x170] sm:$0xff] %v828
  %893 = vst [vmem:[%s2 + $0x178] sm:$0xff] %v829
  %894 = vst [vmem:[%s2 + $0x180] sm:$0xff] %v830
  %895 = vst [vmem:[%s2 + $0x188] sm:$0xff] %v831
  %896 = vst [vmem:[%s2 + $0x190] sm:$0xff] %v832
  %897 = vst [vmem:[%s2 + $0x198] sm:$0xff] %v833
  %898 = vst [vmem:[%s2 + $0x1a0] sm:$0xff] %v834
  %899 = vst [vmem:[%s2 + $0x1a8] sm:$0xff] %v835
  %900 = vst [vmem:[%s2 + $0x1b0] sm:$0xff] %v836
  %901 = vst [vmem:[%s2 + $0x1b8] sm:$0xff] %v837
  %902 = vst [vmem:[%s2 + $0x1c0] sm:$0xff] %v838
  %903 = vst [vmem:[%s2 + $0x1c8] sm:$0xff] %v839
  %904 = vst [vmem:[%s2 + $0x1d0] sm:$0xff] %v840
  %905 = vst [vmem:[%s2 + $0x1d8] sm:$0xff] %v841
  %906 = vst [vmem:[%s2 + $0x1e0] sm:$0xff] %v842
  %907 = vst [vmem:[%s2 + $0x1e8] sm:$0xff] %v843
  %908 = vst [vmem:[%s2 + $0x1f0] sm:$0xff] %v844
  %909 = vst [vmem:[%s2 + $0x1f8] sm:$0xff] %v845
  // Predicated region
  $region10: #{netd_forward.8} parent=0 // pred_check
    _
  $region11: #{netd_forward.8} parent=0 // pred_check_branch
    %911 = sbr.rel (0) target = $region13
  $region12: #{netd_forward.8} parent=0 // pred_region
    _
  $region13: #{netd_forward.8} parent=0 // pred_fallthru
    _
  // Predicated region
  $region14: #{netd_forward.8} parent=0 // pred_check
    _
  $region15: #{netd_forward.8} parent=0 // pred_check_branch
    %913 = sbr.rel (0) target = $region17
  $region16: #{netd_forward.8} parent=0 // pred_region
    _
  $region17: #{netd_forward.8} parent=0 // pred_fallthru
    _

// kernel: netd_forward.9
$region0: #{netd_forward.9}
  #allocation0 [shape = 'u32[]', space=smem, size = 0x4, offset = 0x4, fixed_abs, tag = 'smem constant byte address 0x4 - core index']
  #allocation1 [shape = 'u32[144,128]{1,0:T(1,128)}', space=vmem, size = 0x12000, scoped, tag = 'internal scratch']
  %s0 = inlined_call_operand.vmem [shape: bf16[128,128], index: 0, kind: input, shape index: {}]
  %s1 = inlined_call_operand.vmem [shape: bf16[128,128], index: 1, kind: input, shape index: {}]
  %s2 = inlined_call_operand.vmem [shape: f32[128,128], index: 2, kind: output, shape index: {0}]
  %s3 = inlined_call_operand.vmem [shape: f32[1,128], index: 3, kind: output, shape index: {1}]
  %s4 = inlined_call_operand.vmem [shape: f32[1,128], index: 4, kind: output, shape index: {2}]
  %5 = xla_tuple %s2, %s3, %s4
  %s6 = sld [smem:[#allocation0]]
  $region38: #{netd_forward.9} parent=0
    _
  %s8 = ssub.s32 1, %s6
  %s9 = scalar_select 0, %s8, %s6
  // Predicated region
  $region2: #{netd_forward.9} parent=0 // pred_check
    _
  $region3: #{netd_forward.9} parent=0 // pred_check_branch
    %11 = sbr.rel (0) target = $region5
  $region4: #{netd_forward.9} parent=0 // pred_region
    _
  $region5: #{netd_forward.9} parent=0 // pred_fallthru
    _
  // Predicated region
  $region6: #{netd_forward.9} parent=0 // pred_check
    _
  $region7: #{netd_forward.9} parent=0 // pred_check_branch
    %13 = sbr.rel (0) target = $region9
  $region8: #{netd_forward.9} parent=0 // pred_region
    _
  $region9: #{netd_forward.9} parent=0 // pred_fallthru
    _
  %v15 = vld [vmem:[%s0] sm:$0xf]
  %v16 = vld [vmem:[%s0 + $0x4] sm:$0xf]
  %v17 = vld [vmem:[%s0 + $0x8] sm:$0xf]
  %v18 = vld [vmem:[%s0 + $0xc] sm:$0xf]
  %v19 = vld [vmem:[%s0 + $0x10] sm:$0xf]
  %v20 = vld [vmem:[%s0 + $0x14] sm:$0xf]
  %v21 = vld [vmem:[%s0 + $0x18] sm:$0xf]
  %v22 = vld [vmem:[%s0 + $0x1c] sm:$0xf]
  %v23 = vld [vmem:[%s0 + $0x20] sm:$0xf]
  %v24 = vld [vmem:[%s0 + $0x24] sm:$0xf]
  %v25 = vld [vmem:[%s0 + $0x28] sm:$0xf]
  %v26 = vld [vmem:[%s0 + $0x2c] sm:$0xf]
  %v27 = vld [vmem:[%s0 + $0x30] sm:$0xf]
  %v28 = vld [vmem:[%s0 + $0x34] sm:$0xf]
  %v29 = vld [vmem:[%s0 + $0x38] sm:$0xf]
  %v30 = vld [vmem:[%s0 + $0x3c] sm:$0xf]
  %v31 = vld [vmem:[%s1] sm:$0xf]
  %v32 = vld [vmem:[%s1 + $0x4] sm:$0xf]
  %v33 = vld [vmem:[%s1 + $0x8] sm:$0xf]
  %v34 = vld [vmem:[%s1 + $0xc] sm:$0xf]
  %v35 = vld [vmem:[%s1 + $0x10] sm:$0xf]
  %v36 = vld [vmem:[%s1 + $0x14] sm:$0xf]
  %v37 = vld [vmem:[%s1 + $0x18] sm:$0xf]
  %v38 = vld [vmem:[%s1 + $0x1c] sm:$0xf]
  %v39 = vld [vmem:[%s1 + $0x20] sm:$0xf]
  %v40 = vld [vmem:[%s1 + $0x24] sm:$0xf]
  %v41 = vld [vmem:[%s1 + $0x28] sm:$0xf]
  %v42 = vld [vmem:[%s1 + $0x2c] sm:$0xf]
  %v43 = vld [vmem:[%s1 + $0x30] sm:$0xf]
  %v44 = vld [vmem:[%s1 + $0x34] sm:$0xf]
  %v45 = vld [vmem:[%s1 + $0x38] sm:$0xf]
  %v46 = vld [vmem:[%s1 + $0x3c] sm:$0xf]
  %v63 = vunpack.c.l.b16 %v15
  %v64 = vunpack.c.l.b16 %v16
  %v65 = vunpack.c.l.b16 %v17
  %v66 = vunpack.c.l.b16 %v18
  %v67 = vunpack.c.l.b16 %v19
  %v68 = vunpack.c.l.b16 %v20
  %v69 = vunpack.c.l.b16 %v21
  %v70 = vunpack.c.l.b16 %v22
  %v71 = vunpack.c.l.b16 %v23
  %v72 = vunpack.c.l.b16 %v24
  %v73 = vunpack.c.l.b16 %v25
  %v74 = vunpack.c.l.b16 %v26
  %v75 = vunpack.c.l.b16 %v27
  %v76 = vunpack.c.l.b16 %v28
  %v77 = vunpack.c.l.b16 %v29
  %v78 = vunpack.c.l.b16 %v30
  %v79 = vpack.c.b16 %v64, %v63
  %v80 = vpack.c.b16 %v66, %v65
  %v81 = vpack.c.b16 %v68, %v67
  %v82 = vpack.c.b16 %v70, %v69
  %v83 = vpack.c.b16 %v72, %v71
  %v84 = vpack.c.b16 %v74, %v73
  %v85 = vpack.c.b16 %v76, %v75
  %v86 = vpack.c.b16 %v78, %v77
  %v111 = vunpack.c.l.b16 %v31
  %v112 = vunpack.c.l.b16 %v32
  %v113 = vunpack.c.l.b16 %v33
  %v114 = vunpack.c.l.b16 %v34
  %v115 = vunpack.c.l.b16 %v35
  %v116 = vunpack.c.l.b16 %v36
  %v117 = vunpack.c.l.b16 %v37
  %v118 = vunpack.c.l.b16 %v38
  %v119 = vunpack.c.l.b16 %v39
  %v120 = vunpack.c.l.b16 %v40
  %v121 = vunpack.c.l.b16 %v41
  %v122 = vunpack.c.l.b16 %v42
  %v123 = vunpack.c.l.b16 %v43
  %v124 = vunpack.c.l.b16 %v44
  %v125 = vunpack.c.l.b16 %v45
  %v126 = vunpack.c.l.b16 %v46
  %v127 = vpack.c.b16 %v112, %v111
  %v128 = vpack.c.b16 %v114, %v113
  %v129 = vpack.c.b16 %v116, %v115
  %v130 = vpack.c.b16 %v118, %v117
  %v131 = vpack.c.b16 %v120, %v119
  %v132 = vpack.c.b16 %v122, %v121
  %v133 = vpack.c.b16 %v124, %v123
  %v134 = vpack.c.b16 %v126, %v125
  %143 = vmatprep.subr.bf16.mxu0 0
  %144 = vmatpush1.bf16.msra.mxu0 %v134
  %145 = vmatprep.subr.bf16.mxu0 0
  %146 = vmatpush1.bf16.msra.mxu0 %v133
  %147 = vmatprep.subr.bf16.mxu0 0
  %148 = vmatpush1.bf16.msra.mxu0 %v132
  %149 = vmatprep.subr.bf16.mxu0 0
  %150 = vmatpush1.bf16.msra.mxu0 %v131
  %151 = vmatprep.subr.bf16.mxu0 0
  %152 = vmatpush1.bf16.msra.mxu0 %v130
  %153 = vmatprep.subr.bf16.mxu0 0
  %154 = vmatpush1.bf16.msra.mxu0 %v129
  %155 = vmatprep.subr.bf16.mxu0 0
  %156 = vmatpush1.bf16.msra.mxu0 %v128
  %157 = vmatprep.subr.bf16.mxu0 0
  %158 = vmatpush1.bf16.msra.mxu0 %v127
  %159 = vmatprep.subr.bf16.mxu0 0
  %160 = vmatpush2.bf16.msra.mxu0 0
  %161 = vmatprep.subr.bf16.mxu0 0
  %162 = vmatpush2.bf16.msra.mxu0 0
  %163 = vmatprep.subr.bf16.mxu0 0
  %164 = vmatpush2.bf16.msra.mxu0 0
  %165 = vmatprep.subr.bf16.mxu0 0
  %166 = vmatpush2.bf16.msra.mxu0 0
  %167 = vmatprep.subr.bf16.mxu0 0
  %168 = vmatpush2.bf16.msra.mxu0 0
  %169 = vmatprep.subr.bf16.mxu0 0
  %170 = vmatpush2.bf16.msra.mxu0 0
  %171 = vmatprep.subr.bf16.mxu0 0
  %172 = vmatpush2.bf16.msra.mxu0 0
  %173 = vmatprep.subr.bf16.mxu0 0
  %174 = vmatpush2.bf16.msra.mxu0 0
  %175 = vmatprep.mubr.bf16.mxu0 0
  %176 = vmatmul.mubr.bf16.gmra.mxu0 %v79
  %v177 = vpop.f32.mrf.mxu0
  %v178 = vadd.f32 0.0, %v177
  %v179 = vpop.f32.mrf.mxu0
  %v180 = vpop.f32.mrf.mxu0
  %v181 = vadd.f32 0.0, %v180
  %v182 = vpop.f32.mrf.mxu0
  %183 = vmatprep.mubr.bf16.mxu0 0
  %184 = vmatmul.mubr.bf16.gmra.mxu0 %v80
  %v185 = vpop.f32.mrf.mxu0
  %v186 = vadd.f32 0.0, %v185
  %v187 = vpop.f32.mrf.mxu0
  %v188 = vpop.f32.mrf.mxu0
  %v189 = vadd.f32 0.0, %v188
  %v190 = vpop.f32.mrf.mxu0
  %191 = vmatprep.mubr.bf16.mxu0 0
  %192 = vmatmul.mubr.bf16.gmra.mxu0 %v81
  %v193 = vpop.f32.mrf.mxu0
  %v194 = vadd.f32 0.0, %v193
  %v195 = vpop.f32.mrf.mxu0
  %v196 = vpop.f32.mrf.mxu0
  %v197 = vadd.f32 0.0, %v196
  %v198 = vpop.f32.mrf.mxu0
  %199 = vmatprep.mubr.bf16.mxu0 0
  %200 = vmatmul.mubr.bf16.gmra.mxu0 %v82
  %v201 = vpop.f32.mrf.mxu0
  %v202 = vadd.f32 0.0, %v201
  %v203 = vpop.f32.mrf.mxu0
  %v204 = vpop.f32.mrf.mxu0
  %v205 = vadd.f32 0.0, %v204
  %v206 = vpop.f32.mrf.mxu0
  %207 = vmatprep.mubr.bf16.mxu0 0
  %208 = vmatmul.mubr.bf16.gmra.mxu0 %v83
  %v209 = vpop.f32.mrf.mxu0
  %v210 = vadd.f32 0.0, %v209
  %v211 = vpop.f32.mrf.mxu0
  %v212 = vpop.f32.mrf.mxu0
  %v213 = vadd.f32 0.0, %v212
  %v214 = vpop.f32.mrf.mxu0
  %215 = vmatprep.mubr.bf16.mxu0 0
  %216 = vmatmul.mubr.bf16.gmra.mxu0 %v84
  %v217 = vpop.f32.mrf.mxu0
  %v218 = vadd.f32 0.0, %v217
  %v219 = vpop.f32.mrf.mxu0
  %v220 = vpop.f32.mrf.mxu0
  %v221 = vadd.f32 0.0, %v220
  %v222 = vpop.f32.mrf.mxu0
  %223 = vmatprep.mubr.bf16.mxu0 0
  %224 = vmatmul.mubr.bf16.gmra.mxu0 %v85
  %v225 = vpop.f32.mrf.mxu0
  %v226 = vadd.f32 0.0, %v225
  %v227 = vpop.f32.mrf.mxu0
  %v228 = vpop.f32.mrf.mxu0
  %v229 = vadd.f32 0.0, %v228
  %v230 = vpop.f32.mrf.mxu0
  %231 = vmatprep.mubr.bf16.mxu0 0
  %232 = vmatmul.mubr.bf16.gmra.mxu0 %v86
  %v233 = vpop.f32.mrf.mxu0
  %v234 = vadd.f32 0.0, %v233
  %v235 = vpop.f32.mrf.mxu0
  %v236 = vpop.f32.mrf.mxu0
  %v237 = vadd.f32 0.0, %v236
  %v238 = vpop.f32.mrf.mxu0
  %239 = vdwg.mxu0
  %240 = vst [vmem:[%s2] sm:$0xff] %v178
  %241 = vst [vmem:[%s2 + $0x8] sm:$0xff] %v181
  %242 = vst [vmem:[%s2 + $0x10] sm:$0xff] %v186
  %243 = vst [vmem:[%s2 + $0x18] sm:$0xff] %v189
  %244 = vst [vmem:[%s2 + $0x20] sm:$0xff] %v194
  %245 = vst [vmem:[%s2 + $0x28] sm:$0xff] %v197
  %246 = vst [vmem:[%s2 + $0x30] sm:$0xff] %v202
  %247 = vst [vmem:[%s2 + $0x38] sm:$0xff] %v205
  %248 = vst [vmem:[%s2 + $0x40] sm:$0xff] %v210
  %249 = vst [vmem:[%s2 + $0x48] sm:$0xff] %v213
  %250 = vst [vmem:[%s2 + $0x50] sm:$0xff] %v218
  %251 = vst [vmem:[%s2 + $0x58] sm:$0xff] %v221
  %252 = vst [vmem:[%s2 + $0x60] sm:$0xff] %v226
  %253 = vst [vmem:[%s2 + $0x68] sm:$0xff] %v229
  %254 = vst [vmem:[%s2 + $0x70] sm:$0xff] %v234
  %255 = vst [vmem:[%s2 + $0x78] sm:$0xff] %v237
  %p256 = scmp.eq.s32.totalorder 0, 0
  // Predicated region
  $region10: #{netd_forward.9} parent=0 // pred_check
    %p257 = pneg %p256
  $region11: #{netd_forward.9} parent=0 // pred_check_branch
    %259 = sbr.rel (%p257) target = $region13
  $region12: #{netd_forward.9} parent=0 // pred_region
    %260 = vst [vmem:[%s3] sm:$0x1] 0.0
    %261 = vst [vmem:[%s4] sm:$0x1] 0.0
  $region13: #{netd_forward.9} parent=0 // pred_fallthru
    _
  %v262 = vld [vmem:[%s3] sm:$0x1]
  %v263 = vadd.f32 %v178, %v181
  %v264 = vadd.f32 %v263, %v186
  %v265 = vadd.f32 %v264, %v189
  %v266 = vadd.f32 %v265, %v194
  %v267 = vadd.f32 %v266, %v197
  %v268 = vadd.f32 %v267, %v202
  %v269 = vadd.f32 %v268, %v205
  %v270 = vadd.f32 %v269, %v210
  %v271 = vadd.f32 %v270, %v213
  %v272 = vadd.f32 %v271, %v218
  %v273 = vadd.f32 %v272, %v221
  %v274 = vadd.f32 %v273, %v226
  %v275 = vadd.f32 %v274, %v229
  %v276 = vadd.f32 %v275, %v234
  %v277 = vadd.f32 %v276, %v237
  %v278 = vrot.slane %v277, 4
  %v279 = vadd.f32 %v277, %v278
  %v280 = vrot.slane %v279, 2
  %v281 = vadd.f32 %v279, %v280
  %v282 = vrot.slane %v281, 1
  %v283 = vadd.f32 %v281, %v282
  %v284 = vadd.f32 %v262, %v283
  %285 = vst [vmem:[%s3] sm:$0x1] %v284
  %v286 = vld [vmem:[%s4] sm:$0x1]
  %v287 = vmul.f32 %v178, %v178
  %v288 = vmul.f32 %v181, %v181
  %v289 = vmul.f32 %v186, %v186
  %v290 = vmul.f32 %v189, %v189
  %v291 = vmul.f32 %v194, %v194
  %v292 = vmul.f32 %v197, %v197
  %v293 = vmul.f32 %v202, %v202
  %v294 = vmul.f32 %v205, %v205
  %v295 = vmul.f32 %v210, %v210
  %v296 = vmul.f32 %v213, %v213
  %v297 = vmul.f32 %v218, %v218
  %v298 = vmul.f32 %v221, %v221
  %v299 = vmul.f32 %v226, %v226
  %v300 = vmul.f32 %v229, %v229
  %v301 = vmul.f32 %v234, %v234
  %v302 = vmul.f32 %v237, %v237
  %v303 = vadd.f32 %v287, %v288
  %v304 = vadd.f32 %v303, %v289
  %v305 = vadd.f32 %v304, %v290
  %v306 = vadd.f32 %v305, %v291
  %v307 = vadd.f32 %v306, %v292
  %v308 = vadd.f32 %v307, %v293
  %v309 = vadd.f32 %v308, %v294
  %v310 = vadd.f32 %v309, %v295
  %v311 = vadd.f32 %v310, %v296
  %v312 = vadd.f32 %v311, %v297
  %v313 = vadd.f32 %v312, %v298
  %v314 = vadd.f32 %v313, %v299
  %v315 = vadd.f32 %v314, %v300
  %v316 = vadd.f32 %v315, %v301
  %v317 = vadd.f32 %v316, %v302
  %v318 = vrot.slane %v317, 4
  %v319 = vadd.f32 %v317, %v318
  %v320 = vrot.slane %v319, 2
  %v321 = vadd.f32 %v319, %v320
  %v322 = vrot.slane %v321, 1
  %v323 = vadd.f32 %v321, %v322
  %v324 = vadd.f32 %v286, %v323
  %325 = vst [vmem:[%s4] sm:$0x1] %v324
  // Predicated region
  $region14: #{netd_forward.9} parent=0 // pred_check
    _
  $region15: #{netd_forward.9} parent=0 // pred_check_branch
    %327 = sbr.rel (0) target = $region17
  $region16: #{netd_forward.9} parent=0 // pred_region
    _
  $region17: #{netd_forward.9} parent=0 // pred_fallthru
    _
  // Predicated region
  $region18: #{netd_forward.9} parent=0 // pred_check
    _
  $region19: #{netd_forward.9} parent=0 // pred_check_branch
    %329 = sbr.rel (0) target = $region21
  $region20: #{netd_forward.9} parent=0 // pred_region
    _
  $region21: #{netd_forward.9} parent=0 // pred_fallthru
    _
  // Predicated region
  $region22: #{netd_forward.9} parent=0 // pred_check
    _
  $region23: #{netd_forward.9} parent=0 // pred_check_branch
    %331 = sbr.rel (0) target = $region25
  $region24: #{netd_forward.9} parent=0 // pred_region
    _
  $region25: #{netd_forward.9} parent=0 // pred_fallthru
    _
  // Predicated region
  $region26: #{netd_forward.9} parent=0 // pred_check
    _
  $region27: #{netd_forward.9} parent=0 // pred_check_branch
    %333 = sbr.rel (0) target = $region29
  $region28: #{netd_forward.9} parent=0 // pred_region
    _
  $region29: #{netd_forward.9} parent=0 // pred_fallthru
    _
  // Predicated region
  $region30: #{netd_forward.9} parent=0 // pred_check
    _
  $region31: #{netd_forward.9} parent=0 // pred_check_branch
    %335 = sbr.rel (0) target = $region33
  $region32: #{netd_forward.9} parent=0 // pred_region
    _
  $region33: #{netd_forward.9} parent=0 // pred_fallthru
    _
  // Predicated region
  $region34: #{netd_forward.9} parent=0 // pred_check
    _
  $region35: #{netd_forward.9} parent=0 // pred_check_branch
    %337 = sbr.rel (0) target = $region37
  $region36: #{netd_forward.9} parent=0 // pred_region
    _
  $region37: #{netd_forward.9} parent=0 // pred_fallthru
    _

// kernel: netd_forward.10
$region0: #{netd_forward.10}
  #allocation0 [shape = 'u32[]', space=smem, size = 0x4, offset = 0x4, fixed_abs, tag = 'smem constant byte address 0x4 - core index']
  #allocation1 [shape = 'u32[144,128]{1,0:T(1,128)}', space=vmem, size = 0x12000, scoped, tag = 'internal scratch']
  %s0 = inlined_call_operand.vmem [shape: f32[128,128], index: 0, kind: input, shape index: {}]
  %s1 = inlined_call_operand.vmem [shape: f32[1,128], index: 1, kind: input, shape index: {}]
  %s2 = inlined_call_operand.vmem [shape: f32[1,128], index: 2, kind: input, shape index: {}]
  %s3 = inlined_call_operand.vmem [shape: f32[128,128], index: 3, kind: output, shape index: {}]
  %s4 = sld [smem:[#allocation0]]
  $region22: #{netd_forward.10} parent=0
    _
  %s6 = ssub.s32 1, %s4
  %s7 = scalar_select 0, %s6, %s4
  // Predicated region
  $region2: #{netd_forward.10} parent=0 // pred_check
    _
  $region3: #{netd_forward.10} parent=0 // pred_check_branch
    %9 = sbr.rel (0) target = $region5
  $region4: #{netd_forward.10} parent=0 // pred_region
    _
  $region5: #{netd_forward.10} parent=0 // pred_fallthru
    _
  // Predicated region
  $region6: #{netd_forward.10} parent=0 // pred_check
    _
  $region7: #{netd_forward.10} parent=0 // pred_check_branch
    %11 = sbr.rel (0) target = $region9
  $region8: #{netd_forward.10} parent=0 // pred_region
    _
  $region9: #{netd_forward.10} parent=0 // pred_fallthru
    _
  // Predicated region
  $region10: #{netd_forward.10} parent=0 // pred_check
    _
  $region11: #{netd_forward.10} parent=0 // pred_check_branch
    %13 = sbr.rel (0) target = $region13
  $region12: #{netd_forward.10} parent=0 // pred_region
    _
  $region13: #{netd_forward.10} parent=0 // pred_fallthru
    _
  %v14 = vld [vmem:[%s0] sm:$0xff]
  %v15 = vld [vmem:[%s0 + $0x8] sm:$0xff]
  %v16 = vld [vmem:[%s0 + $0x10] sm:$0xff]
  %v17 = vld [vmem:[%s0 + $0x18] sm:$0xff]
  %v18 = vld [vmem:[%s0 + $0x20] sm:$0xff]
  %v19 = vld [vmem:[%s0 + $0x28] sm:$0xff]
  %v20 = vld [vmem:[%s0 + $0x30] sm:$0xff]
  %v21 = vld [vmem:[%s0 + $0x38] sm:$0xff]
  %v22 = vld [vmem:[%s0 + $0x40] sm:$0xff]
  %v23 = vld [vmem:[%s0 + $0x48] sm:$0xff]
  %v24 = vld [vmem:[%s0 + $0x50] sm:$0xff]
  %v25 = vld [vmem:[%s0 + $0x58] sm:$0xff]
  %v26 = vld [vmem:[%s0 + $0x60] sm:$0xff]
  %v27 = vld [vmem:[%s0 + $0x68] sm:$0xff]
  %v28 = vld [vmem:[%s0 + $0x70] sm:$0xff]
  %v29 = vld [vmem:[%s0 + $0x78] sm:$0xff]
  %v30 = vld [vmem:[%s1] sm:$0x1]
  %v32 = vlaneseq
  %v33 = vshrl.u32 %v32, 7
  %v34 = vsub.s32 0, %v33
  %v35 = vrot.slane %v30, %v34
  %v37 = vmul.f32 %v14, %v35
  %v38 = vmul.f32 %v15, %v35
  %v39 = vmul.f32 %v16, %v35
  %v40 = vmul.f32 %v17, %v35
  %v41 = vmul.f32 %v18, %v35
  %v42 = vmul.f32 %v19, %v35
  %v43 = vmul.f32 %v20, %v35
  %v44 = vmul.f32 %v21, %v35
  %v45 = vmul.f32 %v22, %v35
  %v46 = vmul.f32 %v23, %v35
  %v47 = vmul.f32 %v24, %v35
  %v48 = vmul.f32 %v25, %v35
  %v49 = vmul.f32 %v26, %v35
  %v50 = vmul.f32 %v27, %v35
  %v51 = vmul.f32 %v28, %v35
  %v52 = vmul.f32 %v29, %v35
  %v53 = vld [vmem:[%s2] sm:$0x1]
  %v55 = vlaneseq
  %v56 = vshrl.u32 %v55, 7
  %v57 = vsub.s32 0, %v56
  %v58 = vrot.slane %v53, %v57
  %v60 = vadd.f32 %v37, %v58
  %v61 = vadd.f32 %v38, %v58
  %v62 = vadd.f32 %v39, %v58
  %v63 = vadd.f32 %v40, %v58
  %v64 = vadd.f32 %v41, %v58
  %v65 = vadd.f32 %v42, %v58
  %v66 = vadd.f32 %v43, %v58
  %v67 = vadd.f32 %v44, %v58
  %v68 = vadd.f32 %v45, %v58
  %v69 = vadd.f32 %v46, %v58
  %v70 = vadd.f32 %v47, %v58
  %v71 = vadd.f32 %v48, %v58
  %v72 = vadd.f32 %v49, %v58
  %v73 = vadd.f32 %v50, %v58
  %v74 = vadd.f32 %v51, %v58
  %v75 = vadd.f32 %v52, %v58
  %vm76 = vcmp.ge.f32.partialorder %v60, 0.0
  %vm77 = vcmp.ge.f32.partialorder %v61, 0.0
  %vm78 = vcmp.ge.f32.partialorder %v62, 0.0
  %vm79 = vcmp.ge.f32.partialorder %v63, 0.0
  %vm80 = vcmp.ge.f32.partialorder %v64, 0.0
  %vm81 = vcmp.ge.f32.partialorder %v65, 0.0
  %vm82 = vcmp.ge.f32.partialorder %v66, 0.0
  %vm83 = vcmp.ge.f32.partialorder %v67, 0.0
  %vm84 = vcmp.ge.f32.partialorder %v68, 0.0
  %vm85 = vcmp.ge.f32.partialorder %v69, 0.0
  %vm86 = vcmp.ge.f32.partialorder %v70, 0.0
  %vm87 = vcmp.ge.f32.partialorder %v71, 0.0
  %vm88 = vcmp.ge.f32.partialorder %v72, 0.0
  %vm89 = vcmp.ge.f32.partialorder %v73, 0.0
  %vm90 = vcmp.ge.f32.partialorder %v74, 0.0
  %vm91 = vcmp.ge.f32.partialorder %v75, 0.0
  %v92 = vmul.f32 %v60, 0.2
  %v93 = vmul.f32 %v61, 0.2
  %v94 = vmul.f32 %v62, 0.2
  %v95 = vmul.f32 %v63, 0.2
  %v96 = vmul.f32 %v64, 0.2
  %v97 = vmul.f32 %v65, 0.2
  %v98 = vmul.f32 %v66, 0.2
  %v99 = vmul.f32 %v67, 0.2
  %v100 = vmul.f32 %v68, 0.2
  %v101 = vmul.f32 %v69, 0.2
  %v102 = vmul.f32 %v70, 0.2
  %v103 = vmul.f32 %v71, 0.2
  %v104 = vmul.f32 %v72, 0.2
  %v105 = vmul.f32 %v73, 0.2
  %v106 = vmul.f32 %v74, 0.2
  %v107 = vmul.f32 %v75, 0.2
  %v108 = vsel %vm76, %v60, %v92
  %v109 = vsel %vm77, %v61, %v93
  %v110 = vsel %vm78, %v62, %v94
  %v111 = vsel %vm79, %v63, %v95
  %v112 = vsel %vm80, %v64, %v96
  %v113 = vsel %vm81, %v65, %v97
  %v114 = vsel %vm82, %v66, %v98
  %v115 = vsel %vm83, %v67, %v99
  %v116 = vsel %vm84, %v68, %v100
  %v117 = vsel %vm85, %v69, %v101
  %v118 = vsel %vm86, %v70, %v102
  %v119 = vsel %vm87, %v71, %v103
  %v120 = vsel %vm88, %v72, %v104
  %v121 = vsel %vm89, %v73, %v105
  %v122 = vsel %vm90, %v74, %v106
  %v123 = vsel %vm91, %v75, %v107
  %124 = vst [vmem:[%s3] sm:$0xff] %v108
  %125 = vst [vmem:[%s3 + $0x8] sm:$0xff] %v109
  %126 = vst [vmem:[%s3 + $0x10] sm:$0xff] %v110
  %127 = vst [vmem:[%s3 + $0x18] sm:$0xff] %v111
  %128 = vst [vmem:[%s3 + $0x20] sm:$0xff] %v112
  %129 = vst [vmem:[%s3 + $0x28] sm:$0xff] %v113
  %130 = vst [vmem:[%s3 + $0x30] sm:$0xff] %v114
  %131 = vst [vmem:[%s3 + $0x38] sm:$0xff] %v115
  %132 = vst [vmem:[%s3 + $0x40] sm:$0xff] %v116
  %133 = vst [vmem:[%s3 + $0x48] sm:$0xff] %v117
  %134 = vst [vmem:[%s3 + $0x50] sm:$0xff] %v118
  %135 = vst [vmem:[%s3 + $0x58] sm:$0xff] %v119
  %136 = vst [vmem:[%s3 + $0x60] sm:$0xff] %v120
  %137 = vst [vmem:[%s3 + $0x68] sm:$0xff] %v121
  %138 = vst [vmem:[%s3 + $0x70] sm:$0xff] %v122
  %139 = vst [vmem:[%s3 + $0x78] sm:$0xff] %v123
  // Predicated region
  $region14: #{netd_forward.10} parent=0 // pred_check
    _
  $region15: #{netd_forward.10} parent=0 // pred_check_branch
    %141 = sbr.rel (0) target = $region17
  $region16: #{netd_forward.10} parent=0 // pred_region
    _
  $region17: #{netd_forward.10} parent=0 // pred_fallthru
    _
  // Predicated region
  $region18: #{netd_forward.10} parent=0 // pred_check
    _
  $region19: #{netd_forward.10} parent=0 // pred_check_branch
    %143 = sbr.rel (0) target = $region21
  $region20: #{netd_forward.10} parent=0 // pred_region
    _
  $region21: #{netd_forward.10} parent=0 // pred_fallthru
    _

// kernel: netd_forward.12
$region0: #{netd_forward.12}
  #allocation0 [shape = 'u32[]', space=smem, size = 0x4, offset = 0x4, fixed_abs, tag = 'smem constant byte address 0x4 - core index']
  #allocation1 [shape = 'u32[144,128]{1,0:T(1,128)}', space=vmem, size = 0x12000, scoped, tag = 'internal scratch']
  %s0 = inlined_call_operand.vmem [shape: f32[32,128], index: 0, kind: input, shape index: {}]
  %s1 = inlined_call_operand.vmem [shape: f32[1,128], index: 1, kind: input, shape index: {}]
  %s2 = inlined_call_operand.vmem [shape: f32[1,128], index: 2, kind: input, shape index: {}]
  %s3 = inlined_call_operand.vmem [shape: f32[32,128], index: 3, kind: output, shape index: {}]
  %s4 = sld [smem:[#allocation0]]
  $region22: #{netd_forward.12} parent=0
    _
  %s6 = ssub.s32 1, %s4
  %s7 = scalar_select 0, %s6, %s4
  // Predicated region
  $region2: #{netd_forward.12} parent=0 // pred_check
    _
  $region3: #{netd_forward.12} parent=0 // pred_check_branch
    %9 = sbr.rel (0) target = $region5
  $region4: #{netd_forward.12} parent=0 // pred_region
    _
  $region5: #{netd_forward.12} parent=0 // pred_fallthru
    _
  // Predicated region
  $region6: #{netd_forward.12} parent=0 // pred_check
    _
  $region7: #{netd_forward.12} parent=0 // pred_check_branch
    %11 = sbr.rel (0) target = $region9
  $region8: #{netd_forward.12} parent=0 // pred_region
    _
  $region9: #{netd_forward.12} parent=0 // pred_fallthru
    _
  // Predicated region
  $region10: #{netd_forward.12} parent=0 // pred_check
    _
  $region11: #{netd_forward.12} parent=0 // pred_check_branch
    %13 = sbr.rel (0) target = $region13
  $region12: #{netd_forward.12} parent=0 // pred_region
    _
  $region13: #{netd_forward.12} parent=0 // pred_fallthru
    _
  %v14 = vld [vmem:[%s0] sm:$0xff]
  %v15 = vld [vmem:[%s0 + $0x8] sm:$0xff]
  %v16 = vld [vmem:[%s0 + $0x10] sm:$0xff]
  %v17 = vld [vmem:[%s0 + $0x18] sm:$0xff]
  %v18 = vld [vmem:[%s1] sm:$0x1]
  %v20 = vlaneseq
  %v21 = vshrl.u32 %v20, 7
  %v22 = vsub.s32 0, %v21
  %v23 = vrot.slane %v18, %v22
  %v25 = vmul.f32 %v14, %v23
  %v26 = vmul.f32 %v15, %v23
  %v27 = vmul.f32 %v16, %v23
  %v28 = vmul.f32 %v17, %v23
  %v29 = vld [vmem:[%s2] sm:$0x1]
  %v31 = vlaneseq
  %v32 = vshrl.u32 %v31, 7
  %v33 = vsub.s32 0, %v32
  %v34 = vrot.slane %v29, %v33
  %v36 = vadd.f32 %v25, %v34
  %v37 = vadd.f32 %v26, %v34
  %v38 = vadd.f32 %v27, %v34
  %v39 = vadd.f32 %v28, %v34
  %vm40 = vcmp.ge.f32.partialorder %v36, 0.0
  %vm41 = vcmp.ge.f32.partialorder %v37, 0.0
  %vm42 = vcmp.ge.f32.partialorder %v38, 0.0
  %vm43 = vcmp.ge.f32.partialorder %v39, 0.0
  %v44 = vmul.f32 %v36, 0.2
  %v45 = vmul.f32 %v37, 0.2
  %v46 = vmul.f32 %v38, 0.2
  %v47 = vmul.f32 %v39, 0.2
  %v48 = vsel %vm40, %v36, %v44
  %v49 = vsel %vm41, %v37, %v45
  %v50 = vsel %vm42, %v38, %v46
  %v51 = vsel %vm43, %v39, %v47
  %52 = vst [vmem:[%s3] sm:$0xff] %v48
  %53 = vst [vmem:[%s3 + $0x8] sm:$0xff] %v49
  %54 = vst [vmem:[%s3 + $0x10] sm:$0xff] %v50
  %55 = vst [vmem:[%s3 + $0x18] sm:$0xff] %v51
  // Predicated region
  $region14: #{netd_forward.12} parent=0 // pred_check
    _
  $region15: #{netd_forward.12} parent=0 // pred_check_branch
    %57 = sbr.rel (0) target = $region17
  $region16: #{netd_forward.12} parent=0 // pred_region
    _
  $region17: #{netd_forward.12} parent=0 // pred_fallthru
    _
  // Predicated region
  $region18: #{netd_forward.12} parent=0 // pred_check
    _
  $region19: #{netd_forward.12} parent=0 // pred_check_branch
    %59 = sbr.rel (0) target = $region21
  $region20: #{netd_forward.12} parent=0 // pred_region
    _
  $region21: #{netd_forward.12} parent=0 // pred_fallthru
    _

// kernel: netd_forward.11
$region0: #{netd_forward.11}
  #allocation0 [shape = 'u32[]', space=smem, size = 0x4, offset = 0x4, fixed_abs, tag = 'smem constant byte address 0x4 - core index']
  #allocation1 [shape = 'u32[144,128]{1,0:T(1,128)}', space=vmem, size = 0x12000, scoped, tag = 'internal scratch']
  %s0 = inlined_call_operand.vmem [shape: bf16[32,256], index: 0, kind: input, shape index: {}]
  %s1 = inlined_call_operand.vmem [shape: bf16[256,128], index: 1, kind: input, shape index: {}]
  %s2 = inlined_call_operand.vmem [shape: f32[32,128], index: 2, kind: output, shape index: {0}]
  %s3 = inlined_call_operand.vmem [shape: f32[1,128], index: 3, kind: output, shape index: {1}]
  %s4 = inlined_call_operand.vmem [shape: f32[1,128], index: 4, kind: output, shape index: {2}]
  %5 = xla_tuple %s2, %s3, %s4
  %s6 = sld [smem:[#allocation0]]
  $region38: #{netd_forward.11} parent=0
    _
  %s8 = ssub.s32 1, %s6
  %s9 = scalar_select 0, %s8, %s6
  // Predicated region
  $region2: #{netd_forward.11} parent=0 // pred_check
    _
  $region3: #{netd_forward.11} parent=0 // pred_check_branch
    %11 = sbr.rel (0) target = $region5
  $region4: #{netd_forward.11} parent=0 // pred_region
    _
  $region5: #{netd_forward.11} parent=0 // pred_fallthru
    _
  // Predicated region
  $region6: #{netd_forward.11} parent=0 // pred_check
    _
  $region7: #{netd_forward.11} parent=0 // pred_check_branch
    %13 = sbr.rel (0) target = $region9
  $region8: #{netd_forward.11} parent=0 // pred_region
    _
  $region9: #{netd_forward.11} parent=0 // pred_fallthru
    _
  %v15 = vld [vmem:[%s0] sm:$0xff]
  %v16 = vld [vmem:[%s0 + $0x8] sm:$0xff]
  %v17 = vld [vmem:[%s0 + $0x10] sm:$0xff]
  %v18 = vld [vmem:[%s0 + $0x18] sm:$0xff]
  %v19 = vld [vmem:[%s1] sm:$0xf]
  %v20 = vld [vmem:[%s1 + $0x4] sm:$0xf]
  %v21 = vld [vmem:[%s1 + $0x8] sm:$0xf]
  %v22 = vld [vmem:[%s1 + $0xc] sm:$0xf]
  %v23 = vld [vmem:[%s1 + $0x10] sm:$0xf]
  %v24 = vld [vmem:[%s1 + $0x14] sm:$0xf]
  %v25 = vld [vmem:[%s1 + $0x18] sm:$0xf]
  %v26 = vld [vmem:[%s1 + $0x1c] sm:$0xf]
  %v27 = vld [vmem:[%s1 + $0x20] sm:$0xf]
  %v28 = vld [vmem:[%s1 + $0x24] sm:$0xf]
  %v29 = vld [vmem:[%s1 + $0x28] sm:$0xf]
  %v30 = vld [vmem:[%s1 + $0x2c] sm:$0xf]
  %v31 = vld [vmem:[%s1 + $0x30] sm:$0xf]
  %v32 = vld [vmem:[%s1 + $0x34] sm:$0xf]
  %v33 = vld [vmem:[%s1 + $0x38] sm:$0xf]
  %v34 = vld [vmem:[%s1 + $0x3c] sm:$0xf]
  %v35 = vld [vmem:[%s1 + $0x40] sm:$0xf]
  %v36 = vld [vmem:[%s1 + $0x44] sm:$0xf]
  %v37 = vld [vmem:[%s1 + $0x48] sm:$0xf]
  %v38 = vld [vmem:[%s1 + $0x4c] sm:$0xf]
  %v39 = vld [vmem:[%s1 + $0x50] sm:$0xf]
  %v40 = vld [vmem:[%s1 + $0x54] sm:$0xf]
  %v41 = vld [vmem:[%s1 + $0x58] sm:$0xf]
  %v42 = vld [vmem:[%s1 + $0x5c] sm:$0xf]
  %v43 = vld [vmem:[%s1 + $0x60] sm:$0xf]
  %v44 = vld [vmem:[%s1 + $0x64] sm:$0xf]
  %v45 = vld [vmem:[%s1 + $0x68] sm:$0xf]
  %v46 = vld [vmem:[%s1 + $0x6c] sm:$0xf]
  %v47 = vld [vmem:[%s1 + $0x70] sm:$0xf]
  %v48 = vld [vmem:[%s1 + $0x74] sm:$0xf]
  %v49 = vld [vmem:[%s1 + $0x78] sm:$0xf]
  %v50 = vld [vmem:[%s1 + $0x7c] sm:$0xf]
  %v55 = vunpack.c.l.b16 %v15
  %v56 = vunpack.c.h.b16 %v15
  %v57 = vunpack.c.l.b16 %v16
  %v58 = vunpack.c.h.b16 %v16
  %v59 = vunpack.c.l.b16 %v17
  %v60 = vunpack.c.h.b16 %v17
  %v61 = vunpack.c.l.b16 %v18
  %v62 = vunpack.c.h.b16 %v18
  %v63 = vpack.c.b16 %v57, %v55
  %v64 = vpack.c.b16 %v58, %v56
  %v65 = vpack.c.b16 %v61, %v59
  %v66 = vpack.c.b16 %v62, %v60
  %v103 = vunpack.c.l.b16 %v19
  %v104 = vunpack.c.l.b16 %v20
  %v105 = vunpack.c.l.b16 %v21
  %v106 = vunpack.c.l.b16 %v22
  %v107 = vunpack.c.l.b16 %v23
  %v108 = vunpack.c.l.b16 %v24
  %v109 = vunpack.c.l.b16 %v25
  %v110 = vunpack.c.l.b16 %v26
  %v111 = vunpack.c.l.b16 %v27
  %v112 = vunpack.c.l.b16 %v28
  %v113 = vunpack.c.l.b16 %v29
  %v114 = vunpack.c.l.b16 %v30
  %v115 = vunpack.c.l.b16 %v31
  %v116 = vunpack.c.l.b16 %v32
  %v117 = vunpack.c.l.b16 %v33
  %v118 = vunpack.c.l.b16 %v34
  %v119 = vunpack.c.l.b16 %v35
  %v120 = vunpack.c.l.b16 %v36
  %v121 = vunpack.c.l.b16 %v37
  %v122 = vunpack.c.l.b16 %v38
  %v123 = vunpack.c.l.b16 %v39
  %v124 = vunpack.c.l.b16 %v40
  %v125 = vunpack.c.l.b16 %v41
  %v126 = vunpack.c.l.b16 %v42
  %v127 = vunpack.c.l.b16 %v43
  %v128 = vunpack.c.l.b16 %v44
  %v129 = vunpack.c.l.b16 %v45
  %v130 = vunpack.c.l.b16 %v46
  %v131 = vunpack.c.l.b16 %v47
  %v132 = vunpack.c.l.b16 %v48
  %v133 = vunpack.c.l.b16 %v49
  %v134 = vunpack.c.l.b16 %v50
  %v135 = vpack.c.b16 %v104, %v103
  %v136 = vpack.c.b16 %v106, %v105
  %v137 = vpack.c.b16 %v108, %v107
  %v138 = vpack.c.b16 %v110, %v109
  %v139 = vpack.c.b16 %v112, %v111
  %v140 = vpack.c.b16 %v114, %v113
  %v141 = vpack.c.b16 %v116, %v115
  %v142 = vpack.c.b16 %v118, %v117
  %v143 = vpack.c.b16 %v120, %v119
  %v144 = vpack.c.b16 %v122, %v121
  %v145 = vpack.c.b16 %v124, %v123
  %v146 = vpack.c.b16 %v126, %v125
  %v147 = vpack.c.b16 %v128, %v127
  %v148 = vpack.c.b16 %v130, %v129
  %v149 = vpack.c.b16 %v132, %v131
  %v150 = vpack.c.b16 %v134, %v133
  %167 = vmatprep.subr.bf16.mxu0 0
  %168 = vmatpush1.bf16.msra.mxu0 %v142
  %169 = vmatprep.subr.bf16.mxu0 0
  %170 = vmatpush1.bf16.msra.mxu0 %v141
  %171 = vmatprep.subr.bf16.mxu0 0
  %172 = vmatpush1.bf16.msra.mxu0 %v140
  %173 = vmatprep.subr.bf16.mxu0 0
  %174 = vmatpush1.bf16.msra.mxu0 %v139
  %175 = vmatprep.subr.bf16.mxu0 0
  %176 = vmatpush1.bf16.msra.mxu0 %v138
  %177 = vmatprep.subr.bf16.mxu0 0
  %178 = vmatpush1.bf16.msra.mxu0 %v137
  %179 = vmatprep.subr.bf16.mxu0 0
  %180 = vmatpush1.bf16.msra.mxu0 %v136
  %181 = vmatprep.subr.bf16.mxu0 0
  %182 = vmatpush1.bf16.msra.mxu0 %v135
  %183 = vmatprep.subr.bf16.mxu0 0
  %184 = vmatpush2.bf16.msra.mxu0 %v150
  %185 = vmatprep.subr.bf16.mxu0 0
  %186 = vmatpush2.bf16.msra.mxu0 %v149
  %187 = vmatprep.subr.bf16.mxu0 0
  %188 = vmatpush2.bf16.msra.mxu0 %v148
  %189 = vmatprep.subr.bf16.mxu0 0
  %190 = vmatpush2.bf16.msra.mxu0 %v147
  %191 = vmatprep.subr.bf16.mxu0 0
  %192 = vmatpush2.bf16.msra.mxu0 %v146
  %193 = vmatprep.subr.bf16.mxu0 0
  %194 = vmatpush2.bf16.msra.mxu0 %v145
  %195 = vmatprep.subr.bf16.mxu0 0
  %196 = vmatpush2.bf16.msra.mxu0 %v144
  %197 = vmatprep.subr.bf16.mxu0 0
  %198 = vmatpush2.bf16.msra.mxu0 %v143
  %199 = vmatprep.mubr.bf16.mxu0 %v64
  %200 = vmatmul.mubr.bf16.gmra.mxu0 %v63
  %v201 = vpop.f32.mrf.mxu0
  %v202 = vadd.f32 0.0, %v201
  %v203 = vpop.f32.mrf.mxu0
  %v204 = vpop.f32.mrf.mxu0
  %v205 = vadd.f32 0.0, %v204
  %v206 = vpop.f32.mrf.mxu0
  %207 = vmatprep.mubr.bf16.mxu0 %v66
  %208 = vmatmul.mubr.bf16.gmra.mxu0 %v65
  %v209 = vpop.f32.mrf.mxu0
  %v210 = vadd.f32 0.0, %v209
  %v211 = vpop.f32.mrf.mxu0
  %v212 = vpop.f32.mrf.mxu0
  %v213 = vadd.f32 0.0, %v212
  %v214 = vpop.f32.mrf.mxu0
  %215 = vdwg.mxu0
  %216 = vst [vmem:[%s2] sm:$0xff] %v202
  %217 = vst [vmem:[%s2 + $0x8] sm:$0xff] %v205
  %218 = vst [vmem:[%s2 + $0x10] sm:$0xff] %v210
  %219 = vst [vmem:[%s2 + $0x18] sm:$0xff] %v213
  %p220 = scmp.eq.s32.totalorder 0, 0
  // Predicated region
  $region10: #{netd_forward.11} parent=0 // pred_check
    %p221 = pneg %p220
  $region11: #{netd_forward.11} parent=0 // pred_check_branch
    %223 = sbr.rel (%p221) target = $region13
  $region12: #{netd_forward.11} parent=0 // pred_region
    %224 = vst [vmem:[%s3] sm:$0x1] 0.0
    %225 = vst [vmem:[%s4] sm:$0x1] 0.0
  $region13: #{netd_forward.11} parent=0 // pred_fallthru
    _
  %v226 = vld [vmem:[%s3] sm:$0x1]
  %v227 = vadd.f32 %v202, %v205
  %v228 = vadd.f32 %v227, %v210
  %v229 = vadd.f32 %v228, %v213
  %v230 = vrot.slane %v229, 4
  %v231 = vadd.f32 %v229, %v230
  %v232 = vrot.slane %v231, 2
  %v233 = vadd.f32 %v231, %v232
  %v234 = vrot.slane %v233, 1
  %v235 = vadd.f32 %v233, %v234
  %v236 = vadd.f32 %v226, %v235
  %237 = vst [vmem:[%s3] sm:$0x1] %v236
  %v238 = vld [vmem:[%s4] sm:$0x1]
  %v239 = vmul.f32 %v202, %v202
  %v240 = vmul.f32 %v205, %v205
  %v241 = vmul.f32 %v210, %v210
  %v242 = vmul.f32 %v213, %v213
  %v243 = vadd.f32 %v239, %v240
  %v244 = vadd.f32 %v243, %v241
  %v245 = vadd.f32 %v244, %v242
  %v246 = vrot.slane %v245, 4
  %v247 = vadd.f32 %v245, %v246
  %v248 = vrot.slane %v247, 2
  %v249 = vadd.f32 %v247, %v248
  %v250 = vrot.slane %v249, 1
  %v251 = vadd.f32 %v249, %v250
  %v252 = vadd.f32 %v238, %v251
  %253 = vst [vmem:[%s4] sm:$0x1] %v252
  // Predicated region
  $region14: #{netd_forward.11} parent=0 // pred_check
    _
  $region15: #{netd_forward.11} parent=0 // pred_check_branch
    %255 = sbr.rel (0) target = $region17
  $region16: #{netd_forward.11} parent=0 // pred_region
    _
  $region17: #{netd_forward.11} parent=0 // pred_fallthru
    _
  // Predicated region
  $region18: #{netd_forward.11} parent=0 // pred_check
    _
  $region19: #{netd_forward.11} parent=0 // pred_check_branch
    %257 = sbr.rel (0) target = $region21
  $region20: #{netd_forward.11} parent=0 // pred_region
    _
  $region21: #{netd_forward.11} parent=0 // pred_fallthru
    _
  // Predicated region
  $region22: #{netd_forward.11} parent=0 // pred_check
    _
  $region23: #{netd_forward.11} parent=0 // pred_check_branch
    %259 = sbr.rel (0) target = $region25
  $region24: #{netd_forward.11} parent=0 // pred_region
    _
  $region25: #{netd_forward.11} parent=0 // pred_fallthru
    _
  // Predicated region
  $region26: #{netd_forward.11} parent=0 // pred_check
    _
  $region27: #{netd_forward.11} parent=0 // pred_check_branch
    %261 = sbr.rel (0) target = $region29
  $region28: #{netd_forward.11} parent=0 // pred_region
    _
  $region29: #{netd_forward.11} parent=0 // pred_fallthru
    _
  // Predicated region
  $region30: #{netd_forward.11} parent=0 // pred_check
    _
  $region31: #{netd_forward.11} parent=0 // pred_check_branch
    %263 = sbr.rel (0) target = $region33
  $region32: #{netd_forward.11} parent=0 // pred_region
    _
  $region33: #{netd_forward.11} parent=0 // pred_fallthru
    _
  // Predicated region
  $region34: #{netd_forward.11} parent=0 // pred_check
    _
  $region35: #{netd_forward.11} parent=0 // pred_check_branch
    %265 = sbr.rel (0) target = $region37
  $region36: #{netd_forward.11} parent=0 // pred_region
    _
  $region37: #{netd_forward.11} parent=0 // pred_fallthru
    _

// kernel: netd_forward.13
$region0: #{netd_forward.13}
  #allocation0 [shape = 'u32[]', space=smem, size = 0x4, offset = 0x4, fixed_abs, tag = 'smem constant byte address 0x4 - core index']
  #allocation1 [shape = 'u32[144,128]{1,0:T(1,128)}', space=vmem, size = 0x12000, scoped, tag = 'internal scratch']
  %s0 = inlined_call_operand.vmem [shape: bf16[24,512], index: 0, kind: input, shape index: {}]
  %s1 = inlined_call_operand.vmem [shape: bf16[512,128], index: 1, kind: input, shape index: {}]
  %s2 = inlined_call_operand.vmem [shape: f32[24,128], index: 2, kind: output, shape index: {0}]
  %s3 = inlined_call_operand.vmem [shape: f32[1,128], index: 3, kind: output, shape index: {1}]
  %s4 = inlined_call_operand.vmem [shape: f32[1,128], index: 4, kind: output, shape index: {2}]
  %5 = xla_tuple %s2, %s3, %s4
  %s6 = sld [smem:[#allocation0]]
  $region38: #{netd_forward.13} parent=0
    _
  %s8 = ssub.s32 1, %s6
  %s9 = scalar_select 0, %s8, %s6
  // Predicated region
  $region2: #{netd_forward.13} parent=0 // pred_check
    _
  $region3: #{netd_forward.13} parent=0 // pred_check_branch
    %11 = sbr.rel (0) target = $region5
  $region4: #{netd_forward.13} parent=0 // pred_region
    _
  $region5: #{netd_forward.13} parent=0 // pred_fallthru
    _
  // Predicated region
  $region6: #{netd_forward.13} parent=0 // pred_check
    _
  $region7: #{netd_forward.13} parent=0 // pred_check_branch
    %13 = sbr.rel (0) target = $region9
  $region8: #{netd_forward.13} parent=0 // pred_region
    _
  $region9: #{netd_forward.13} parent=0 // pred_fallthru
    _
  %v15 = vld [vmem:[%s0] sm:$0xff]
  %v16 = vld [vmem:[%s0 + $0x8] sm:$0xff]
  %v17 = vld [vmem:[%s0 + $0x10] sm:$0xff]
  %v18 = vld [vmem:[%s0 + $0x18] sm:$0xff]
  %v19 = vld [vmem:[%s0 + $0x20] sm:$0xff]
  %v20 = vld [vmem:[%s0 + $0x28] sm:$0xff]
  %v21 = vld [vmem:[%s1] sm:$0xf]
  %v22 = vld [vmem:[%s1 + $0x4] sm:$0xf]
  %v23 = vld [vmem:[%s1 + $0x8] sm:$0xf]
  %v24 = vld [vmem:[%s1 + $0xc] sm:$0xf]
  %v25 = vld [vmem:[%s1 + $0x10] sm:$0xf]
  %v26 = vld [vmem:[%s1 + $0x14] sm:$0xf]
  %v27 = vld [vmem:[%s1 + $0x18] sm:$0xf]
  %v28 = vld [vmem:[%s1 + $0x1c] sm:$0xf]
  %v29 = vld [vmem:[%s1 + $0x20] sm:$0xf]
  %v30 = vld [vmem:[%s1 + $0x24] sm:$0xf]
  %v31 = vld [vmem:[%s1 + $0x28] sm:$0xf]
  %v32 = vld [vmem:[%s1 + $0x2c] sm:$0xf]
  %v33 = vld [vmem:[%s1 + $0x30] sm:$0xf]
  %v34 = vld [vmem:[%s1 + $0x34] sm:$0xf]
  %v35 = vld [vmem:[%s1 + $0x38] sm:$0xf]
  %v36 = vld [vmem:[%s1 + $0x3c] sm:$0xf]
  %v37 = vld [vmem:[%s1 + $0x40] sm:$0xf]
  %v38 = vld [vmem:[%s1 + $0x44] sm:$0xf]
  %v39 = vld [vmem:[%s1 + $0x48] sm:$0xf]
  %v40 = vld [vmem:[%s1 + $0x4c] sm:$0xf]
  %v41 = vld [vmem:[%s1 + $0x50] sm:$0xf]
  %v42 = vld [vmem:[%s1 + $0x54] sm:$0xf]
  %v43 = vld [vmem:[%s1 + $0x58] sm:$0xf]
  %v44 = vld [vmem:[%s1 + $0x5c] sm:$0xf]
  %v45 = vld [vmem:[%s1 + $0x60] sm:$0xf]
  %v46 = vld [vmem:[%s1 + $0x64] sm:$0xf]
  %v47 = vld [vmem:[%s1 + $0x68] sm:$0xf]
  %v48 = vld [vmem:[%s1 + $0x6c] sm:$0xf]
  %v49 = vld [vmem:[%s1 + $0x70] sm:$0xf]
  %v50 = vld [vmem:[%s1 + $0x74] sm:$0xf]
  %v51 = vld [vmem:[%s1 + $0x78] sm:$0xf]
  %v52 = vld [vmem:[%s1 + $0x7c] sm:$0xf]
  %v53 = vld [vmem:[%s1 + $0x80] sm:$0xf]
  %v54 = vld [vmem:[%s1 + $0x84] sm:$0xf]
  %v55 = vld [vmem:[%s1 + $0x88] sm:$0xf]
  %v56 = vld [vmem:[%s1 + $0x8c] sm:$0xf]
  %v57 = vld [vmem:[%s1 + $0x90] sm:$0xf]
  %v58 = vld [vmem:[%s1 + $0x94] sm:$0xf]
  %v59 = vld [vmem:[%s1 + $0x98] sm:$0xf]
  %v60 = vld [vmem:[%s1 + $0x9c] sm:$0xf]
  %v61 = vld [vmem:[%s1 + $0xa0] sm:$0xf]
  %v62 = vld [vmem:[%s1 + $0xa4] sm:$0xf]
  %v63 = vld [vmem:[%s1 + $0xa8] sm:$0xf]
  %v64 = vld [vmem:[%s1 + $0xac] sm:$0xf]
  %v65 = vld [vmem:[%s1 + $0xb0] sm:$0xf]
  %v66 = vld [vmem:[%s1 + $0xb4] sm:$0xf]
  %v67 = vld [vmem:[%s1 + $0xb8] sm:$0xf]
  %v68 = vld [vmem:[%s1 + $0xbc] sm:$0xf]
  %v69 = vld [vmem:[%s1 + $0xc0] sm:$0xf]
  %v70 = vld [vmem:[%s1 + $0xc4] sm:$0xf]
  %v71 = vld [vmem:[%s1 + $0xc8] sm:$0xf]
  %v72 = vld [vmem:[%s1 + $0xcc] sm:$0xf]
  %v73 = vld [vmem:[%s1 + $0xd0] sm:$0xf]
  %v74 = vld [vmem:[%s1 + $0xd4] sm:$0xf]
  %v75 = vld [vmem:[%s1 + $0xd8] sm:$0xf]
  %v76 = vld [vmem:[%s1 + $0xdc] sm:$0xf]
  %v77 = vld [vmem:[%s1 + $0xe0] sm:$0xf]
  %v78 = vld [vmem:[%s1 + $0xe4] sm:$0xf]
  %v79 = vld [vmem:[%s1 + $0xe8] sm:$0xf]
  %v80 = vld [vmem:[%s1 + $0xec] sm:$0xf]
  %v81 = vld [vmem:[%s1 + $0xf0] sm:$0xf]
  %v82 = vld [vmem:[%s1 + $0xf4] sm:$0xf]
  %v83 = vld [vmem:[%s1 + $0xf8] sm:$0xf]
  %v84 = vld [vmem:[%s1 + $0xfc] sm:$0xf]
  %v91 = vunpack.c.l.b16 %v15
  %v92 = vunpack.c.h.b16 %v15
  %v93 = vunpack.c.l.b16 %v16
  %v94 = vunpack.c.h.b16 %v16
  %v95 = vunpack.c.l.b16 %v17
  %v96 = vunpack.c.h.b16 %v17
  %v97 = vunpack.c.l.b16 %v18
  %v98 = vunpack.c.h.b16 %v18
  %v99 = vunpack.c.l.b16 %v19
  %v100 = vunpack.c.h.b16 %v19
  %v101 = vunpack.c.l.b16 %v20
  %v102 = vunpack.c.h.b16 %v20
  %v103 = vpack.c.b16 %v95, %v91
  %v104 = vpack.c.b16 %v96, %v92
  %v105 = vpack.c.b16 %v97, %v93
  %v106 = vpack.c.b16 %v98, %v94
  %v107 = vpack.c.b16 %v99, %v99
  %v108 = vpack.c.b16 %v100, %v100
  %v109 = vpack.c.b16 %v101, %v101
  %v110 = vpack.c.b16 %v102, %v102
  %v183 = vunpack.c.l.b16 %v21
  %v184 = vunpack.c.l.b16 %v22
  %v185 = vunpack.c.l.b16 %v23
  %v186 = vunpack.c.l.b16 %v24
  %v187 = vunpack.c.l.b16 %v25
  %v188 = vunpack.c.l.b16 %v26
  %v189 = vunpack.c.l.b16 %v27
  %v190 = vunpack.c.l.b16 %v28
  %v191 = vunpack.c.l.b16 %v29
  %v192 = vunpack.c.l.b16 %v30
  %v193 = vunpack.c.l.b16 %v31
  %v194 = vunpack.c.l.b16 %v32
  %v195 = vunpack.c.l.b16 %v33
  %v196 = vunpack.c.l.b16 %v34
  %v197 = vunpack.c.l.b16 %v35
  %v198 = vunpack.c.l.b16 %v36
  %v199 = vunpack.c.l.b16 %v37
  %v200 = vunpack.c.l.b16 %v38
  %v201 = vunpack.c.l.b16 %v39
  %v202 = vunpack.c.l.b16 %v40
  %v203 = vunpack.c.l.b16 %v41
  %v204 = vunpack.c.l.b16 %v42
  %v205 = vunpack.c.l.b16 %v43
  %v206 = vunpack.c.l.b16 %v44
  %v207 = vunpack.c.l.b16 %v45
  %v208 = vunpack.c.l.b16 %v46
  %v209 = vunpack.c.l.b16 %v47
  %v210 = vunpack.c.l.b16 %v48
  %v211 = vunpack.c.l.b16 %v49
  %v212 = vunpack.c.l.b16 %v50
  %v213 = vunpack.c.l.b16 %v51
  %v214 = vunpack.c.l.b16 %v52
  %v215 = vunpack.c.l.b16 %v53
  %v216 = vunpack.c.l.b16 %v54
  %v217 = vunpack.c.l.b16 %v55
  %v218 = vunpack.c.l.b16 %v56
  %v219 = vunpack.c.l.b16 %v57
  %v220 = vunpack.c.l.b16 %v58
  %v221 = vunpack.c.l.b16 %v59
  %v222 = vunpack.c.l.b16 %v60
  %v223 = vunpack.c.l.b16 %v61
  %v224 = vunpack.c.l.b16 %v62
  %v225 = vunpack.c.l.b16 %v63
  %v226 = vunpack.c.l.b16 %v64
  %v227 = vunpack.c.l.b16 %v65
  %v228 = vunpack.c.l.b16 %v66
  %v229 = vunpack.c.l.b16 %v67
  %v230 = vunpack.c.l.b16 %v68
  %v231 = vunpack.c.l.b16 %v69
  %v232 = vunpack.c.l.b16 %v70
  %v233 = vunpack.c.l.b16 %v71
  %v234 = vunpack.c.l.b16 %v72
  %v235 = vunpack.c.l.b16 %v73
  %v236 = vunpack.c.l.b16 %v74
  %v237 = vunpack.c.l.b16 %v75
  %v238 = vunpack.c.l.b16 %v76
  %v239 = vunpack.c.l.b16 %v77
  %v240 = vunpack.c.l.b16 %v78
  %v241 = vunpack.c.l.b16 %v79
  %v242 = vunpack.c.l.b16 %v80
  %v243 = vunpack.c.l.b16 %v81
  %v244 = vunpack.c.l.b16 %v82
  %v245 = vunpack.c.l.b16 %v83
  %v246 = vunpack.c.l.b16 %v84
  %v247 = vpack.c.b16 %v184, %v183
  %v248 = vpack.c.b16 %v186, %v185
  %v249 = vpack.c.b16 %v188, %v187
  %v250 = vpack.c.b16 %v190, %v189
  %v251 = vpack.c.b16 %v192, %v191
  %v252 = vpack.c.b16 %v194, %v193
  %v253 = vpack.c.b16 %v196, %v195
  %v254 = vpack.c.b16 %v198, %v197
  %v255 = vpack.c.b16 %v200, %v199
  %v256 = vpack.c.b16 %v202, %v201
  %v257 = vpack.c.b16 %v204, %v203
  %v258 = vpack.c.b16 %v206, %v205
  %v259 = vpack.c.b16 %v208, %v207
  %v260 = vpack.c.b16 %v210, %v209
  %v261 = vpack.c.b16 %v212, %v211
  %v262 = vpack.c.b16 %v214, %v213
  %v263 = vpack.c.b16 %v216, %v215
  %v264 = vpack.c.b16 %v218, %v217
  %v265 = vpack.c.b16 %v220, %v219
  %v266 = vpack.c.b16 %v222, %v221
  %v267 = vpack.c.b16 %v224, %v223
  %v268 = vpack.c.b16 %v226, %v225
  %v269 = vpack.c.b16 %v228, %v227
  %v270 = vpack.c.b16 %v230, %v229
  %v271 = vpack.c.b16 %v232, %v231
  %v272 = vpack.c.b16 %v234, %v233
  %v273 = vpack.c.b16 %v236, %v235
  %v274 = vpack.c.b16 %v238, %v237
  %v275 = vpack.c.b16 %v240, %v239
  %v276 = vpack.c.b16 %v242, %v241
  %v277 = vpack.c.b16 %v244, %v243
  %v278 = vpack.c.b16 %v246, %v245
  %311 = vmatprep.subr.bf16.mxu0 0
  %312 = vmatpush1.bf16.msra.mxu0 %v254
  %313 = vmatprep.subr.bf16.mxu0 0
  %314 = vmatpush1.bf16.msra.mxu0 %v253
  %315 = vmatprep.subr.bf16.mxu0 0
  %316 = vmatpush1.bf16.msra.mxu0 %v252
  %317 = vmatprep.subr.bf16.mxu0 0
  %318 = vmatpush1.bf16.msra.mxu0 %v251
  %319 = vmatprep.subr.bf16.mxu0 0
  %320 = vmatpush1.bf16.msra.mxu0 %v250
  %321 = vmatprep.subr.bf16.mxu0 0
  %322 = vmatpush1.bf16.msra.mxu0 %v249
  %323 = vmatprep.subr.bf16.mxu0 0
  %324 = vmatpush1.bf16.msra.mxu0 %v248
  %325 = vmatprep.subr.bf16.mxu0 0
  %326 = vmatpush1.bf16.msra.mxu0 %v247
  %327 = vmatprep.subr.bf16.mxu0 0
  %328 = vmatpush2.bf16.msra.mxu0 %v262
  %329 = vmatprep.subr.bf16.mxu0 0
  %330 = vmatpush2.bf16.msra.mxu0 %v261
  %331 = vmatprep.subr.bf16.mxu0 0
  %332 = vmatpush2.bf16.msra.mxu0 %v260
  %333 = vmatprep.subr.bf16.mxu0 0
  %334 = vmatpush2.bf16.msra.mxu0 %v259
  %335 = vmatprep.subr.bf16.mxu0 0
  %336 = vmatpush2.bf16.msra.mxu0 %v258
  %337 = vmatprep.subr.bf16.mxu0 0
  %338 = vmatpush2.bf16.msra.mxu0 %v257
  %339 = vmatprep.subr.bf16.mxu0 0
  %340 = vmatpush2.bf16.msra.mxu0 %v256
  %341 = vmatprep.subr.bf16.mxu0 0
  %342 = vmatpush2.bf16.msra.mxu0 %v255
  %343 = vmatprep.mubr.bf16.mxu0 %v104
  %344 = vmatmul.mubr.bf16.gmra.mxu0 %v103
  %v345 = vpop.f32.mrf.mxu0
  %v346 = vadd.f32 0.0, %v345
  %v347 = vpop.f32.mrf.mxu0
  %v348 = vpop.f32.mrf.mxu0
  %v349 = vadd.f32 0.0, %v348
  %v350 = vpop.f32.mrf.mxu0
  %351 = vmatprep.mubr.bf16.mxu0 %v108
  %352 = vmatmul.mubr.bf16.gmra.mxu0 %v107
  %v353 = vpop.f32.mrf.mxu0
  %v354 = vadd.f32 0.0, %v353
  %v355 = vpop.f32.mrf.mxu0
  %v356 = vpop.f32.mrf.mxu0
  %v357 = vpop.f32.mrf.mxu0
  %358 = vdwg.mxu0
  %359 = vmatprep.subr.bf16.mxu0 0
  %360 = vmatpush1.bf16.msra.mxu0 %v270
  %361 = vmatprep.subr.bf16.mxu0 0
  %362 = vmatpush1.bf16.msra.mxu0 %v269
  %363 = vmatprep.subr.bf16.mxu0 0
  %364 = vmatpush1.bf16.msra.mxu0 %v268
  %365 = vmatprep.subr.bf16.mxu0 0
  %366 = vmatpush1.bf16.msra.mxu0 %v267
  %367 = vmatprep.subr.bf16.mxu0 0
  %368 = vmatpush1.bf16.msra.mxu0 %v266
  %369 = vmatprep.subr.bf16.mxu0 0
  %370 = vmatpush1.bf16.msra.mxu0 %v265
  %371 = vmatprep.subr.bf16.mxu0 0
  %372 = vmatpush1.bf16.msra.mxu0 %v264
  %373 = vmatprep.subr.bf16.mxu0 0
  %374 = vmatpush1.bf16.msra.mxu0 %v263
  %375 = vmatprep.subr.bf16.mxu0 0
  %376 = vmatpush2.bf16.msra.mxu0 %v278
  %377 = vmatprep.subr.bf16.mxu0 0
  %378 = vmatpush2.bf16.msra.mxu0 %v277
  %379 = vmatprep.subr.bf16.mxu0 0
  %380 = vmatpush2.bf16.msra.mxu0 %v276
  %381 = vmatprep.subr.bf16.mxu0 0
  %382 = vmatpush2.bf16.msra.mxu0 %v275
  %383 = vmatprep.subr.bf16.mxu0 0
  %384 = vmatpush2.bf16.msra.mxu0 %v274
  %385 = vmatprep.subr.bf16.mxu0 0
  %386 = vmatpush2.bf16.msra.mxu0 %v273
  %387 = vmatprep.subr.bf16.mxu0 0
  %388 = vmatpush2.bf16.msra.mxu0 %v272
  %389 = vmatprep.subr.bf16.mxu0 0
  %390 = vmatpush2.bf16.msra.mxu0 %v271
  %391 = vmatprep.mubr.bf16.mxu0 %v106
  %392 = vmatmul.mubr.bf16.gmra.mxu0 %v105
  %v393 = vpop.f32.mrf.mxu0
  %v394 = vadd.f32 %v346, %v393
  %v395 = vpop.f32.mrf.mxu0
  %v396 = vpop.f32.mrf.mxu0
  %v397 = vadd.f32 %v349, %v396
  %v398 = vpop.f32.mrf.mxu0
  %399 = vmatprep.mubr.bf16.mxu0 %v110
  %400 = vmatmul.mubr.bf16.gmra.mxu0 %v109
  %v401 = vpop.f32.mrf.mxu0
  %v402 = vadd.f32 %v354, %v401
  %v403 = vpop.f32.mrf.mxu0
  %v404 = vpop.f32.mrf.mxu0
  %v405 = vpop.f32.mrf.mxu0
  %406 = vdwg.mxu0
  %407 = vst [vmem:[%s2] sm:$0xff] %v394
  %408 = vst [vmem:[%s2 + $0x8] sm:$0xff] %v397
  %409 = vst [vmem:[%s2 + $0x10] sm:$0xff] %v402
  %p410 = scmp.eq.s32.totalorder 0, 0
  // Predicated region
  $region10: #{netd_forward.13} parent=0 // pred_check
    %p411 = pneg %p410
  $region11: #{netd_forward.13} parent=0 // pred_check_branch
    %413 = sbr.rel (%p411) target = $region13
  $region12: #{netd_forward.13} parent=0 // pred_region
    %414 = vst [vmem:[%s3] sm:$0x1] 0.0
    %415 = vst [vmem:[%s4] sm:$0x1] 0.0
  $region13: #{netd_forward.13} parent=0 // pred_fallthru
    _
  %v416 = vld [vmem:[%s3] sm:$0x1]
  %v417 = vadd.f32 %v394, %v397
  %v418 = vadd.f32 %v417, %v402
  %v419 = vrot.slane %v418, 4
  %v420 = vadd.f32 %v418, %v419
  %v421 = vrot.slane %v420, 2
  %v422 = vadd.f32 %v420, %v421
  %v423 = vrot.slane %v422, 1
  %v424 = vadd.f32 %v422, %v423
  %v425 = vadd.f32 %v416, %v424
  %426 = vst [vmem:[%s3] sm:$0x1] %v425
  %v427 = vld [vmem:[%s4] sm:$0x1]
  %v428 = vmul.f32 %v394, %v394
  %v429 = vmul.f32 %v397, %v397
  %v430 = vmul.f32 %v402, %v402
  %v431 = vadd.f32 %v428, %v429
  %v432 = vadd.f32 %v431, %v430
  %v433 = vrot.slane %v432, 4
  %v434 = vadd.f32 %v432, %v433
  %v435 = vrot.slane %v434, 2
  %v436 = vadd.f32 %v434, %v435
  %v437 = vrot.slane %v436, 1
  %v438 = vadd.f32 %v436, %v437
  %v439 = vadd.f32 %v427, %v438
  %440 = vst [vmem:[%s4] sm:$0x1] %v439
  // Predicated region
  $region14: #{netd_forward.13} parent=0 // pred_check
    _
  $region15: #{netd_forward.13} parent=0 // pred_check_branch
    %442 = sbr.rel (0) target = $region17
  $region16: #{netd_forward.13} parent=0 // pred_region
    _
  $region17: #{netd_forward.13} parent=0 // pred_fallthru
    _
  // Predicated region
  $region18: #{netd_forward.13} parent=0 // pred_check
    _
  $region19: #{netd_forward.13} parent=0 // pred_check_branch
    %444 = sbr.rel (0) target = $region21
  $region20: #{netd_forward.13} parent=0 // pred_region
    _
  $region21: #{netd_forward.13} parent=0 // pred_fallthru
    _
  // Predicated region
  $region22: #{netd_forward.13} parent=0 // pred_check
    _
  $region23: #{netd_forward.13} parent=0 // pred_check_branch
    %446 = sbr.rel (0) target = $region25
  $region24: #{netd_forward.13} parent=0 // pred_region
    _
  $region25: #{netd_forward.13} parent=0 // pred_fallthru
    _
  // Predicated region
  $region26: #{netd_forward.13} parent=0 // pred_check
    _
  $region27: #{netd_forward.13} parent=0 // pred_check_branch
    %448 = sbr.rel (0) target = $region29
  $region28: #{netd_forward.13} parent=0 // pred_region
    _
  $region29: #{netd_forward.13} parent=0 // pred_fallthru
    _
  // Predicated region
  $region30: #{netd_forward.13} parent=0 // pred_check
    _
  $region31: #{netd_forward.13} parent=0 // pred_check_branch
    %450 = sbr.rel (0) target = $region33
  $region32: #{netd_forward.13} parent=0 // pred_region
    _
  $region33: #{netd_forward.13} parent=0 // pred_fallthru
    _
  // Predicated region
  $region34: #{netd_forward.13} parent=0 // pred_check
    _
  $region35: #{netd_forward.13} parent=0 // pred_check_branch
    %452 = sbr.rel (0) target = $region37
  $region36: #{netd_forward.13} parent=0 // pred_region
    _
  $region37: #{netd_forward.13} parent=0 // pred_fallthru
    _

// kernel: netd_forward.14
$region0: #{netd_forward.14}
  #allocation0 [shape = 'u32[]', space=smem, size = 0x4, offset = 0x4, fixed_abs, tag = 'smem constant byte address 0x4 - core index']
  #allocation1 [shape = 'u32[144,128]{1,0:T(1,128)}', space=vmem, size = 0x12000, scoped, tag = 'internal scratch']
  %s0 = inlined_call_operand.vmem [shape: f32[24,128], index: 0, kind: input, shape index: {}]
  %s1 = inlined_call_operand.vmem [shape: f32[1,128], index: 1, kind: input, shape index: {}]
  %s2 = inlined_call_operand.vmem [shape: f32[1,128], index: 2, kind: input, shape index: {}]
  %s3 = inlined_call_operand.vmem [shape: f32[24,128], index: 3, kind: output, shape index: {}]
  %s4 = sld [smem:[#allocation0]]
  $region22: #{netd_forward.14} parent=0
    _
  %s6 = ssub.s32 1, %s4
  %s7 = scalar_select 0, %s6, %s4
  // Predicated region
  $region2: #{netd_forward.14} parent=0 // pred_check
    _
  $region3: #{netd_forward.14} parent=0 // pred_check_branch
    %9 = sbr.rel (0) target = $region5
  $region4: #{netd_forward.14} parent=0 // pred_region
    _
  $region5: #{netd_forward.14} parent=0 // pred_fallthru
    _
  // Predicated region
  $region6: #{netd_forward.14} parent=0 // pred_check
    _
  $region7: #{netd_forward.14} parent=0 // pred_check_branch
    %11 = sbr.rel (0) target = $region9
  $region8: #{netd_forward.14} parent=0 // pred_region
    _
  $region9: #{netd_forward.14} parent=0 // pred_fallthru
    _
  // Predicated region
  $region10: #{netd_forward.14} parent=0 // pred_check
    _
  $region11: #{netd_forward.14} parent=0 // pred_check_branch
    %13 = sbr.rel (0) target = $region13
  $region12: #{netd_forward.14} parent=0 // pred_region
    _
  $region13: #{netd_forward.14} parent=0 // pred_fallthru
    _
  %v14 = vld [vmem:[%s0] sm:$0xff]
  %v15 = vld [vmem:[%s0 + $0x8] sm:$0xff]
  %v16 = vld [vmem:[%s0 + $0x10] sm:$0xff]
  %v17 = vld [vmem:[%s1] sm:$0x1]
  %v19 = vlaneseq
  %v20 = vshrl.u32 %v19, 7
  %v21 = vsub.s32 0, %v20
  %v22 = vrot.slane %v17, %v21
  %v24 = vmul.f32 %v14, %v22
  %v25 = vmul.f32 %v15, %v22
  %v26 = vmul.f32 %v16, %v22
  %v27 = vld [vmem:[%s2] sm:$0x1]
  %v29 = vlaneseq
  %v30 = vshrl.u32 %v29, 7
  %v31 = vsub.s32 0, %v30
  %v32 = vrot.slane %v27, %v31
  %v34 = vadd.f32 %v24, %v32
  %v35 = vadd.f32 %v25, %v32
  %v36 = vadd.f32 %v26, %v32
  %vm37 = vcmp.ge.f32.partialorder %v34, 0.0
  %vm38 = vcmp.ge.f32.partialorder %v35, 0.0
  %vm39 = vcmp.ge.f32.partialorder %v36, 0.0
  %v40 = vmul.f32 %v34, 0.2
  %v41 = vmul.f32 %v35, 0.2
  %v42 = vmul.f32 %v36, 0.2
  %v43 = vsel %vm37, %v34, %v40
  %v44 = vsel %vm38, %v35, %v41
  %v45 = vsel %vm39, %v36, %v42
  %46 = vst [vmem:[%s3] sm:$0xff] %v43
  %47 = vst [vmem:[%s3 + $0x8] sm:$0xff] %v44
  %48 = vst [vmem:[%s3 + $0x10] sm:$0xff] %v45
  // Predicated region
  $region14: #{netd_forward.14} parent=0 // pred_check
    _
  $region15: #{netd_forward.14} parent=0 // pred_check_branch
    %50 = sbr.rel (0) target = $region17
  $region16: #{netd_forward.14} parent=0 // pred_region
    _
  $region17: #{netd_forward.14} parent=0 // pred_fallthru
    _
  // Predicated region
  $region18: #{netd_forward.14} parent=0 // pred_check
    _
  $region19: #{netd_forward.14} parent=0 // pred_check_branch
    %52 = sbr.rel (0) target = $region21
  $region20: #{netd_forward.14} parent=0 // pred_region
    _
  $region21: #{netd_forward.14} parent=0 // pred_fallthru
    _

// kernel: netd_forward.15
$region0: #{netd_forward.15}
  #allocation0 [shape = 'u32[]', space=smem, size = 0x4, offset = 0x4, fixed_abs, tag = 'smem constant byte address 0x4 - core index']
  #allocation1 [shape = 'u32[144,128]{1,0:T(1,128)}', space=vmem, size = 0x12000, scoped, tag = 'internal scratch']
  %s0 = inlined_call_operand.vmem [shape: bf16[8,1024], index: 0, kind: input, shape index: {}]
  %s1 = inlined_call_operand.vmem [shape: bf16[1024,128], index: 1, kind: input, shape index: {}]
  %s2 = inlined_call_operand.vmem [shape: f32[8,128], index: 2, kind: output, shape index: {}]
  %s3 = sld [smem:[#allocation0]]
  $region18: #{netd_forward.15} parent=0
    _
  %s5 = ssub.s32 1, %s3
  %s6 = scalar_select 0, %s5, %s3
  // Predicated region
  $region2: #{netd_forward.15} parent=0 // pred_check
    _
  $region3: #{netd_forward.15} parent=0 // pred_check_branch
    %8 = sbr.rel (0) target = $region5
  $region4: #{netd_forward.15} parent=0 // pred_region
    _
  $region5: #{netd_forward.15} parent=0 // pred_fallthru
    _
  // Predicated region
  $region6: #{netd_forward.15} parent=0 // pred_check
    _
  $region7: #{netd_forward.15} parent=0 // pred_check_branch
    %10 = sbr.rel (0) target = $region9
  $region8: #{netd_forward.15} parent=0 // pred_region
    _
  $region9: #{netd_forward.15} parent=0 // pred_fallthru
    _
  %v12 = vld [vmem:[%s0] sm:$0xff]
  %v13 = vld [vmem:[%s0 + $0x8] sm:$0xff]
  %v14 = vld [vmem:[%s0 + $0x10] sm:$0xff]
  %v15 = vld [vmem:[%s0 + $0x18] sm:$0xff]
  %v16 = vld [vmem:[%s1] sm:$0xf]
  %v17 = vld [vmem:[%s1 + $0x4] sm:$0xf]
  %v18 = vld [vmem:[%s1 + $0x8] sm:$0xf]
  %v19 = vld [vmem:[%s1 + $0xc] sm:$0xf]
  %v20 = vld [vmem:[%s1 + $0x10] sm:$0xf]
  %v21 = vld [vmem:[%s1 + $0x14] sm:$0xf]
  %v22 = vld [vmem:[%s1 + $0x18] sm:$0xf]
  %v23 = vld [vmem:[%s1 + $0x1c] sm:$0xf]
  %v24 = vld [vmem:[%s1 + $0x20] sm:$0xf]
  %v25 = vld [vmem:[%s1 + $0x24] sm:$0xf]
  %v26 = vld [vmem:[%s1 + $0x28] sm:$0xf]
  %v27 = vld [vmem:[%s1 + $0x2c] sm:$0xf]
  %v28 = vld [vmem:[%s1 + $0x30] sm:$0xf]
  %v29 = vld [vmem:[%s1 + $0x34] sm:$0xf]
  %v30 = vld [vmem:[%s1 + $0x38] sm:$0xf]
  %v31 = vld [vmem:[%s1 + $0x3c] sm:$0xf]
  %v32 = vld [vmem:[%s1 + $0x40] sm:$0xf]
  %v33 = vld [vmem:[%s1 + $0x44] sm:$0xf]
  %v34 = vld [vmem:[%s1 + $0x48] sm:$0xf]
  %v35 = vld [vmem:[%s1 + $0x4c] sm:$0xf]
  %v36 = vld [vmem:[%s1 + $0x50] sm:$0xf]
  %v37 = vld [vmem:[%s1 + $0x54] sm:$0xf]
  %v38 = vld [vmem:[%s1 + $0x58] sm:$0xf]
  %v39 = vld [vmem:[%s1 + $0x5c] sm:$0xf]
  %v40 = vld [vmem:[%s1 + $0x60] sm:$0xf]
  %v41 = vld [vmem:[%s1 + $0x64] sm:$0xf]
  %v42 = vld [vmem:[%s1 + $0x68] sm:$0xf]
  %v43 = vld [vmem:[%s1 + $0x6c] sm:$0xf]
  %v44 = vld [vmem:[%s1 + $0x70] sm:$0xf]
  %v45 = vld [vmem:[%s1 + $0x74] sm:$0xf]
  %v46 = vld [vmem:[%s1 + $0x78] sm:$0xf]
  %v47 = vld [vmem:[%s1 + $0x7c] sm:$0xf]
  %v48 = vld [vmem:[%s1 + $0x80] sm:$0xf]
  %v49 = vld [vmem:[%s1 + $0x84] sm:$0xf]
  %v50 = vld [vmem:[%s1 + $0x88] sm:$0xf]
  %v51 = vld [vmem:[%s1 + $0x8c] sm:$0xf]
  %v52 = vld [vmem:[%s1 + $0x90] sm:$0xf]
  %v53 = vld [vmem:[%s1 + $0x94] sm:$0xf]
  %v54 = vld [vmem:[%s1 + $0x98] sm:$0xf]
  %v55 = vld [vmem:[%s1 + $0x9c] sm:$0xf]
  %v56 = vld [vmem:[%s1 + $0xa0] sm:$0xf]
  %v57 = vld [vmem:[%s1 + $0xa4] sm:$0xf]
  %v58 = vld [vmem:[%s1 + $0xa8] sm:$0xf]
  %v59 = vld [vmem:[%s1 + $0xac] sm:$0xf]
  %v60 = vld [vmem:[%s1 + $0xb0] sm:$0xf]
  %v61 = vld [vmem:[%s1 + $0xb4] sm:$0xf]
  %v62 = vld [vmem:[%s1 + $0xb8] sm:$0xf]
  %v63 = vld [vmem:[%s1 + $0xbc] sm:$0xf]
  %v64 = vld [vmem:[%s1 + $0xc0] sm:$0xf]
  %v65 = vld [vmem:[%s1 + $0xc4] sm:$0xf]
  %v66 = vld [vmem:[%s1 + $0xc8] sm:$0xf]
  %v67 = vld [vmem:[%s1 + $0xcc] sm:$0xf]
  %v68 = vld [vmem:[%s1 + $0xd0] sm:$0xf]
  %v69 = vld [vmem:[%s1 + $0xd4] sm:$0xf]
  %v70 = vld [vmem:[%s1 + $0xd8] sm:$0xf]
  %v71 = vld [vmem:[%s1 + $0xdc] sm:$0xf]
  %v72 = vld [vmem:[%s1 + $0xe0] sm:$0xf]
  %v73 = vld [vmem:[%s1 + $0xe4] sm:$0xf]
  %v74 = vld [vmem:[%s1 + $0xe8] sm:$0xf]
  %v75 = vld [vmem:[%s1 + $0xec] sm:$0xf]
  %v76 = vld [vmem:[%s1 + $0xf0] sm:$0xf]
  %v77 = vld [vmem:[%s1 + $0xf4] sm:$0xf]
  %v78 = vld [vmem:[%s1 + $0xf8] sm:$0xf]
  %v79 = vld [vmem:[%s1 + $0xfc] sm:$0xf]
  %v80 = vld [vmem:[%s1 + $0x100] sm:$0xf]
  %v81 = vld [vmem:[%s1 + $0x104] sm:$0xf]
  %v82 = vld [vmem:[%s1 + $0x108] sm:$0xf]
  %v83 = vld [vmem:[%s1 + $0x10c] sm:$0xf]
  %v84 = vld [vmem:[%s1 + $0x110] sm:$0xf]
  %v85 = vld [vmem:[%s1 + $0x114] sm:$0xf]
  %v86 = vld [vmem:[%s1 + $0x118] sm:$0xf]
  %v87 = vld [vmem:[%s1 + $0x11c] sm:$0xf]
  %v88 = vld [vmem:[%s1 + $0x120] sm:$0xf]
  %v89 = vld [vmem:[%s1 + $0x124] sm:$0xf]
  %v90 = vld [vmem:[%s1 + $0x128] sm:$0xf]
  %v91 = vld [vmem:[%s1 + $0x12c] sm:$0xf]
  %v92 = vld [vmem:[%s1 + $0x130] sm:$0xf]
  %v93 = vld [vmem:[%s1 + $0x134] sm:$0xf]
  %v94 = vld [vmem:[%s1 + $0x138] sm:$0xf]
  %v95 = vld [vmem:[%s1 + $0x13c] sm:$0xf]
  %v96 = vld [vmem:[%s1 + $0x140] sm:$0xf]
  %v97 = vld [vmem:[%s1 + $0x144] sm:$0xf]
  %v98 = vld [vmem:[%s1 + $0x148] sm:$0xf]
  %v99 = vld [vmem:[%s1 + $0x14c] sm:$0xf]
  %v100 = vld [vmem:[%s1 + $0x150] sm:$0xf]
  %v101 = vld [vmem:[%s1 + $0x154] sm:$0xf]
  %v102 = vld [vmem:[%s1 + $0x158] sm:$0xf]
  %v103 = vld [vmem:[%s1 + $0x15c] sm:$0xf]
  %v104 = vld [vmem:[%s1 + $0x160] sm:$0xf]
  %v105 = vld [vmem:[%s1 + $0x164] sm:$0xf]
  %v106 = vld [vmem:[%s1 + $0x168] sm:$0xf]
  %v107 = vld [vmem:[%s1 + $0x16c] sm:$0xf]
  %v108 = vld [vmem:[%s1 + $0x170] sm:$0xf]
  %v109 = vld [vmem:[%s1 + $0x174] sm:$0xf]
  %v110 = vld [vmem:[%s1 + $0x178] sm:$0xf]
  %v111 = vld [vmem:[%s1 + $0x17c] sm:$0xf]
  %v112 = vld [vmem:[%s1 + $0x180] sm:$0xf]
  %v113 = vld [vmem:[%s1 + $0x184] sm:$0xf]
  %v114 = vld [vmem:[%s1 + $0x188] sm:$0xf]
  %v115 = vld [vmem:[%s1 + $0x18c] sm:$0xf]
  %v116 = vld [vmem:[%s1 + $0x190] sm:$0xf]
  %v117 = vld [vmem:[%s1 + $0x194] sm:$0xf]
  %v118 = vld [vmem:[%s1 + $0x198] sm:$0xf]
  %v119 = vld [vmem:[%s1 + $0x19c] sm:$0xf]
  %v120 = vld [vmem:[%s1 + $0x1a0] sm:$0xf]
  %v121 = vld [vmem:[%s1 + $0x1a4] sm:$0xf]
  %v122 = vld [vmem:[%s1 + $0x1a8] sm:$0xf]
  %v123 = vld [vmem:[%s1 + $0x1ac] sm:$0xf]
  %v124 = vld [vmem:[%s1 + $0x1b0] sm:$0xf]
  %v125 = vld [vmem:[%s1 + $0x1b4] sm:$0xf]
  %v126 = vld [vmem:[%s1 + $0x1b8] sm:$0xf]
  %v127 = vld [vmem:[%s1 + $0x1bc] sm:$0xf]
  %v128 = vld [vmem:[%s1 + $0x1c0] sm:$0xf]
  %v129 = vld [vmem:[%s1 + $0x1c4] sm:$0xf]
  %v130 = vld [vmem:[%s1 + $0x1c8] sm:$0xf]
  %v131 = vld [vmem:[%s1 + $0x1cc] sm:$0xf]
  %v132 = vld [vmem:[%s1 + $0x1d0] sm:$0xf]
  %v133 = vld [vmem:[%s1 + $0x1d4] sm:$0xf]
  %v134 = vld [vmem:[%s1 + $0x1d8] sm:$0xf]
  %v135 = vld [vmem:[%s1 + $0x1dc] sm:$0xf]
  %v136 = vld [vmem:[%s1 + $0x1e0] sm:$0xf]
  %v137 = vld [vmem:[%s1 + $0x1e4] sm:$0xf]
  %v138 = vld [vmem:[%s1 + $0x1e8] sm:$0xf]
  %v139 = vld [vmem:[%s1 + $0x1ec] sm:$0xf]
  %v140 = vld [vmem:[%s1 + $0x1f0] sm:$0xf]
  %v141 = vld [vmem:[%s1 + $0x1f4] sm:$0xf]
  %v142 = vld [vmem:[%s1 + $0x1f8] sm:$0xf]
  %v143 = vld [vmem:[%s1 + $0x1fc] sm:$0xf]
  %v148 = vunpack.c.l.b16 %v12
  %v149 = vunpack.c.h.b16 %v12
  %v150 = vunpack.c.l.b16 %v13
  %v151 = vunpack.c.h.b16 %v13
  %v152 = vunpack.c.l.b16 %v14
  %v153 = vunpack.c.h.b16 %v14
  %v154 = vunpack.c.l.b16 %v15
  %v155 = vunpack.c.h.b16 %v15
  %v156 = vpack.c.b16 %v148, %v148
  %v157 = vpack.c.b16 %v149, %v149
  %v158 = vpack.c.b16 %v150, %v150
  %v159 = vpack.c.b16 %v151, %v151
  %v160 = vpack.c.b16 %v152, %v152
  %v161 = vpack.c.b16 %v153, %v153
  %v162 = vpack.c.b16 %v154, %v154
  %v163 = vpack.c.b16 %v155, %v155
  %v300 = vunpack.c.l.b16 %v16
  %v301 = vunpack.c.l.b16 %v17
  %v302 = vunpack.c.l.b16 %v18
  %v303 = vunpack.c.l.b16 %v19
  %v304 = vunpack.c.l.b16 %v20
  %v305 = vunpack.c.l.b16 %v21
  %v306 = vunpack.c.l.b16 %v22
  %v307 = vunpack.c.l.b16 %v23
  %v308 = vunpack.c.l.b16 %v24
  %v309 = vunpack.c.l.b16 %v25
  %v310 = vunpack.c.l.b16 %v26
  %v311 = vunpack.c.l.b16 %v27
  %v312 = vunpack.c.l.b16 %v28
  %v313 = vunpack.c.l.b16 %v29
  %v314 = vunpack.c.l.b16 %v30
  %v315 = vunpack.c.l.b16 %v31
  %v316 = vunpack.c.l.b16 %v32
  %v317 = vunpack.c.l.b16 %v33
  %v318 = vunpack.c.l.b16 %v34
  %v319 = vunpack.c.l.b16 %v35
  %v320 = vunpack.c.l.b16 %v36
  %v321 = vunpack.c.l.b16 %v37
  %v322 = vunpack.c.l.b16 %v38
  %v323 = vunpack.c.l.b16 %v39
  %v324 = vunpack.c.l.b16 %v40
  %v325 = vunpack.c.l.b16 %v41
  %v326 = vunpack.c.l.b16 %v42
  %v327 = vunpack.c.l.b16 %v43
  %v328 = vunpack.c.l.b16 %v44
  %v329 = vunpack.c.l.b16 %v45
  %v330 = vunpack.c.l.b16 %v46
  %v331 = vunpack.c.l.b16 %v47
  %v332 = vunpack.c.l.b16 %v48
  %v333 = vunpack.c.l.b16 %v49
  %v334 = vunpack.c.l.b16 %v50
  %v335 = vunpack.c.l.b16 %v51
  %v336 = vunpack.c.l.b16 %v52
  %v337 = vunpack.c.l.b16 %v53
  %v338 = vunpack.c.l.b16 %v54
  %v339 = vunpack.c.l.b16 %v55
  %v340 = vunpack.c.l.b16 %v56
  %v341 = vunpack.c.l.b16 %v57
  %v342 = vunpack.c.l.b16 %v58
  %v343 = vunpack.c.l.b16 %v59
  %v344 = vunpack.c.l.b16 %v60
  %v345 = vunpack.c.l.b16 %v61
  %v346 = vunpack.c.l.b16 %v62
  %v347 = vunpack.c.l.b16 %v63
  %v348 = vunpack.c.l.b16 %v64
  %v349 = vunpack.c.l.b16 %v65
  %v350 = vunpack.c.l.b16 %v66
  %v351 = vunpack.c.l.b16 %v67
  %v352 = vunpack.c.l.b16 %v68
  %v353 = vunpack.c.l.b16 %v69
  %v354 = vunpack.c.l.b16 %v70
  %v355 = vunpack.c.l.b16 %v71
  %v356 = vunpack.c.l.b16 %v72
  %v357 = vunpack.c.l.b16 %v73
  %v358 = vunpack.c.l.b16 %v74
  %v359 = vunpack.c.l.b16 %v75
  %v360 = vunpack.c.l.b16 %v76
  %v361 = vunpack.c.l.b16 %v77
  %v362 = vunpack.c.l.b16 %v78
  %v363 = vunpack.c.l.b16 %v79
  %v364 = vunpack.c.l.b16 %v80
  %v365 = vunpack.c.l.b16 %v81
  %v366 = vunpack.c.l.b16 %v82
  %v367 = vunpack.c.l.b16 %v83
  %v368 = vunpack.c.l.b16 %v84
  %v369 = vunpack.c.l.b16 %v85
  %v370 = vunpack.c.l.b16 %v86
  %v371 = vunpack.c.l.b16 %v87
  %v372 = vunpack.c.l.b16 %v88
  %v373 = vunpack.c.l.b16 %v89
  %v374 = vunpack.c.l.b16 %v90
  %v375 = vunpack.c.l.b16 %v91
  %v376 = vunpack.c.l.b16 %v92
  %v377 = vunpack.c.l.b16 %v93
  %v378 = vunpack.c.l.b16 %v94
  %v379 = vunpack.c.l.b16 %v95
  %v380 = vunpack.c.l.b16 %v96
  %v381 = vunpack.c.l.b16 %v97
  %v382 = vunpack.c.l.b16 %v98
  %v383 = vunpack.c.l.b16 %v99
  %v384 = vunpack.c.l.b16 %v100
  %v385 = vunpack.c.l.b16 %v101
  %v386 = vunpack.c.l.b16 %v102
  %v387 = vunpack.c.l.b16 %v103
  %v388 = vunpack.c.l.b16 %v104
  %v389 = vunpack.c.l.b16 %v105
  %v390 = vunpack.c.l.b16 %v106
  %v391 = vunpack.c.l.b16 %v107
  %v392 = vunpack.c.l.b16 %v108
  %v393 = vunpack.c.l.b16 %v109
  %v394 = vunpack.c.l.b16 %v110
  %v395 = vunpack.c.l.b16 %v111
  %v396 = vunpack.c.l.b16 %v112
  %v397 = vunpack.c.l.b16 %v113
  %v398 = vunpack.c.l.b16 %v114
  %v399 = vunpack.c.l.b16 %v115
  %v400 = vunpack.c.l.b16 %v116
  %v401 = vunpack.c.l.b16 %v117
  %v402 = vunpack.c.l.b16 %v118
  %v403 = vunpack.c.l.b16 %v119
  %v404 = vunpack.c.l.b16 %v120
  %v405 = vunpack.c.l.b16 %v121
  %v406 = vunpack.c.l.b16 %v122
  %v407 = vunpack.c.l.b16 %v123
  %v408 = vunpack.c.l.b16 %v124
  %v409 = vunpack.c.l.b16 %v125
  %v410 = vunpack.c.l.b16 %v126
  %v411 = vunpack.c.l.b16 %v127
  %v412 = vunpack.c.l.b16 %v128
  %v413 = vunpack.c.l.b16 %v129
  %v414 = vunpack.c.l.b16 %v130
  %v415 = vunpack.c.l.b16 %v131
  %v416 = vunpack.c.l.b16 %v132
  %v417 = vunpack.c.l.b16 %v133
  %v418 = vunpack.c.l.b16 %v134
  %v419 = vunpack.c.l.b16 %v135
  %v420 = vunpack.c.l.b16 %v136
  %v421 = vunpack.c.l.b16 %v137
  %v422 = vunpack.c.l.b16 %v138
  %v423 = vunpack.c.l.b16 %v139
  %v424 = vunpack.c.l.b16 %v140
  %v425 = vunpack.c.l.b16 %v141
  %v426 = vunpack.c.l.b16 %v142
  %v427 = vunpack.c.l.b16 %v143
  %v428 = vpack.c.b16 %v301, %v300
  %v429 = vpack.c.b16 %v303, %v302
  %v430 = vpack.c.b16 %v305, %v304
  %v431 = vpack.c.b16 %v307, %v306
  %v432 = vpack.c.b16 %v309, %v308
  %v433 = vpack.c.b16 %v311, %v310
  %v434 = vpack.c.b16 %v313, %v312
  %v435 = vpack.c.b16 %v315, %v314
  %v436 = vpack.c.b16 %v317, %v316
  %v437 = vpack.c.b16 %v319, %v318
  %v438 = vpack.c.b16 %v321, %v320
  %v439 = vpack.c.b16 %v323, %v322
  %v440 = vpack.c.b16 %v325, %v324
  %v441 = vpack.c.b16 %v327, %v326
  %v442 = vpack.c.b16 %v329, %v328
  %v443 = vpack.c.b16 %v331, %v330
  %v444 = vpack.c.b16 %v333, %v332
  %v445 = vpack.c.b16 %v335, %v334
  %v446 = vpack.c.b16 %v337, %v336
  %v447 = vpack.c.b16 %v339, %v338
  %v448 = vpack.c.b16 %v341, %v340
  %v449 = vpack.c.b16 %v343, %v342
  %v450 = vpack.c.b16 %v345, %v344
  %v451 = vpack.c.b16 %v347, %v346
  %v452 = vpack.c.b16 %v349, %v348
  %v453 = vpack.c.b16 %v351, %v350
  %v454 = vpack.c.b16 %v353, %v352
  %v455 = vpack.c.b16 %v355, %v354
  %v456 = vpack.c.b16 %v357, %v356
  %v457 = vpack.c.b16 %v359, %v358
  %v458 = vpack.c.b16 %v361, %v360
  %v459 = vpack.c.b16 %v363, %v362
  %v460 = vpack.c.b16 %v365, %v364
  %v461 = vpack.c.b16 %v367, %v366
  %v462 = vpack.c.b16 %v369, %v368
  %v463 = vpack.c.b16 %v371, %v370
  %v464 = vpack.c.b16 %v373, %v372
  %v465 = vpack.c.b16 %v375, %v374
  %v466 = vpack.c.b16 %v377, %v376
  %v467 = vpack.c.b16 %v379, %v378
  %v468 = vpack.c.b16 %v381, %v380
  %v469 = vpack.c.b16 %v383, %v382
  %v470 = vpack.c.b16 %v385, %v384
  %v471 = vpack.c.b16 %v387, %v386
  %v472 = vpack.c.b16 %v389, %v388
  %v473 = vpack.c.b16 %v391, %v390
  %v474 = vpack.c.b16 %v393, %v392
  %v475 = vpack.c.b16 %v395, %v394
  %v476 = vpack.c.b16 %v397, %v396
  %v477 = vpack.c.b16 %v399, %v398
  %v478 = vpack.c.b16 %v401, %v400
  %v479 = vpack.c.b16 %v403, %v402
  %v480 = vpack.c.b16 %v405, %v404
  %v481 = vpack.c.b16 %v407, %v406
  %v482 = vpack.c.b16 %v409, %v408
  %v483 = vpack.c.b16 %v411, %v410
  %v484 = vpack.c.b16 %v413, %v412
  %v485 = vpack.c.b16 %v415, %v414
  %v486 = vpack.c.b16 %v417, %v416
  %v487 = vpack.c.b16 %v419, %v418
  %v488 = vpack.c.b16 %v421, %v420
  %v489 = vpack.c.b16 %v423, %v422
  %v490 = vpack.c.b16 %v425, %v424
  %v491 = vpack.c.b16 %v427, %v426
  %556 = vmatprep.subr.bf16.mxu0 0
  %557 = vmatpush1.bf16.msra.mxu0 %v435
  %558 = vmatprep.subr.bf16.mxu0 0
  %559 = vmatpush1.bf16.msra.mxu0 %v434
  %560 = vmatprep.subr.bf16.mxu0 0
  %561 = vmatpush1.bf16.msra.mxu0 %v433
  %562 = vmatprep.subr.bf16.mxu0 0
  %563 = vmatpush1.bf16.msra.mxu0 %v432
  %564 = vmatprep.subr.bf16.mxu0 0
  %565 = vmatpush1.bf16.msra.mxu0 %v431
  %566 = vmatprep.subr.bf16.mxu0 0
  %567 = vmatpush1.bf16.msra.mxu0 %v430
  %568 = vmatprep.subr.bf16.mxu0 0
  %569 = vmatpush1.bf16.msra.mxu0 %v429
  %570 = vmatprep.subr.bf16.mxu0 0
  %571 = vmatpush1.bf16.msra.mxu0 %v428
  %572 = vmatprep.subr.bf16.mxu0 0
  %573 = vmatpush2.bf16.msra.mxu0 %v443
  %574 = vmatprep.subr.bf16.mxu0 0
  %575 = vmatpush2.bf16.msra.mxu0 %v442
  %576 = vmatprep.subr.bf16.mxu0 0
  %577 = vmatpush2.bf16.msra.mxu0 %v441
  %578 = vmatprep.subr.bf16.mxu0 0
  %579 = vmatpush2.bf16.msra.mxu0 %v440
  %580 = vmatprep.subr.bf16.mxu0 0
  %581 = vmatpush2.bf16.msra.mxu0 %v439
  %582 = vmatprep.subr.bf16.mxu0 0
  %583 = vmatpush2.bf16.msra.mxu0 %v438
  %584 = vmatprep.subr.bf16.mxu0 0
  %585 = vmatpush2.bf16.msra.mxu0 %v437
  %586 = vmatprep.subr.bf16.mxu0 0
  %587 = vmatpush2.bf16.msra.mxu0 %v436
  %588 = vmatprep.mubr.bf16.mxu0 %v157
  %589 = vmatmul.mubr.bf16.gmra.mxu0 %v156
  %v590 = vpop.f32.mrf.mxu0
  %v591 = vadd.f32 0.0, %v590
  %v592 = vpop.f32.mrf.mxu0
  %v593 = vpop.f32.mrf.mxu0
  %v594 = vpop.f32.mrf.mxu0
  %595 = vdwg.mxu0
  %596 = vmatprep.subr.bf16.mxu0 0
  %597 = vmatpush1.bf16.msra.mxu0 %v451
  %598 = vmatprep.subr.bf16.mxu0 0
  %599 = vmatpush1.bf16.msra.mxu0 %v450
  %600 = vmatprep.subr.bf16.mxu0 0
  %601 = vmatpush1.bf16.msra.mxu0 %v449
  %602 = vmatprep.subr.bf16.mxu0 0
  %603 = vmatpush1.bf16.msra.mxu0 %v448
  %604 = vmatprep.subr.bf16.mxu0 0
  %605 = vmatpush1.bf16.msra.mxu0 %v447
  %606 = vmatprep.subr.bf16.mxu0 0
  %607 = vmatpush1.bf16.msra.mxu0 %v446
  %608 = vmatprep.subr.bf16.mxu0 0
  %609 = vmatpush1.bf16.msra.mxu0 %v445
  %610 = vmatprep.subr.bf16.mxu0 0
  %611 = vmatpush1.bf16.msra.mxu0 %v444
  %612 = vmatprep.subr.bf16.mxu0 0
  %613 = vmatpush2.bf16.msra.mxu0 %v459
  %614 = vmatprep.subr.bf16.mxu0 0
  %615 = vmatpush2.bf16.msra.mxu0 %v458
  %616 = vmatprep.subr.bf16.mxu0 0
  %617 = vmatpush2.bf16.msra.mxu0 %v457
  %618 = vmatprep.subr.bf16.mxu0 0
  %619 = vmatpush2.bf16.msra.mxu0 %v456
  %620 = vmatprep.subr.bf16.mxu0 0
  %621 = vmatpush2.bf16.msra.mxu0 %v455
  %622 = vmatprep.subr.bf16.mxu0 0
  %623 = vmatpush2.bf16.msra.mxu0 %v454
  %624 = vmatprep.subr.bf16.mxu0 0
  %625 = vmatpush2.bf16.msra.mxu0 %v453
  %626 = vmatprep.subr.bf16.mxu0 0
  %627 = vmatpush2.bf16.msra.mxu0 %v452
  %628 = vmatprep.mubr.bf16.mxu0 %v159
  %629 = vmatmul.mubr.bf16.gmra.mxu0 %v158
  %v630 = vpop.f32.mrf.mxu0
  %v631 = vadd.f32 %v591, %v630
  %v632 = vpop.f32.mrf.mxu0
  %v633 = vpop.f32.mrf.mxu0
  %v634 = vpop.f32.mrf.mxu0
  %635 = vdwg.mxu0
  %636 = vmatprep.subr.bf16.mxu0 0
  %637 = vmatpush1.bf16.msra.mxu0 %v467
  %638 = vmatprep.subr.bf16.mxu0 0
  %639 = vmatpush1.bf16.msra.mxu0 %v466
  %640 = vmatprep.subr.bf16.mxu0 0
  %641 = vmatpush1.bf16.msra.mxu0 %v465
  %642 = vmatprep.subr.bf16.mxu0 0
  %643 = vmatpush1.bf16.msra.mxu0 %v464
  %644 = vmatprep.subr.bf16.mxu0 0
  %645 = vmatpush1.bf16.msra.mxu0 %v463
  %646 = vmatprep.subr.bf16.mxu0 0
  %647 = vmatpush1.bf16.msra.mxu0 %v462
  %648 = vmatprep.subr.bf16.mxu0 0
  %649 = vmatpush1.bf16.msra.mxu0 %v461
  %650 = vmatprep.subr.bf16.mxu0 0
  %651 = vmatpush1.bf16.msra.mxu0 %v460
  %652 = vmatprep.subr.bf16.mxu0 0
  %653 = vmatpush2.bf16.msra.mxu0 %v475
  %654 = vmatprep.subr.bf16.mxu0 0
  %655 = vmatpush2.bf16.msra.mxu0 %v474
  %656 = vmatprep.subr.bf16.mxu0 0
  %657 = vmatpush2.bf16.msra.mxu0 %v473
  %658 = vmatprep.subr.bf16.mxu0 0
  %659 = vmatpush2.bf16.msra.mxu0 %v472
  %660 = vmatprep.subr.bf16.mxu0 0
  %661 = vmatpush2.bf16.msra.mxu0 %v471
  %662 = vmatprep.subr.bf16.mxu0 0
  %663 = vmatpush2.bf16.msra.mxu0 %v470
  %664 = vmatprep.subr.bf16.mxu0 0
  %665 = vmatpush2.bf16.msra.mxu0 %v469
  %666 = vmatprep.subr.bf16.mxu0 0
  %667 = vmatpush2.bf16.msra.mxu0 %v468
  %668 = vmatprep.mubr.bf16.mxu0 %v161
  %669 = vmatmul.mubr.bf16.gmra.mxu0 %v160
  %v670 = vpop.f32.mrf.mxu0
  %v671 = vadd.f32 %v631, %v670
  %v672 = vpop.f32.mrf.mxu0
  %v673 = vpop.f32.mrf.mxu0
  %v674 = vpop.f32.mrf.mxu0
  %675 = vdwg.mxu0
  %676 = vmatprep.subr.bf16.mxu0 0
  %677 = vmatpush1.bf16.msra.mxu0 %v483
  %678 = vmatprep.subr.bf16.mxu0 0
  %679 = vmatpush1.bf16.msra.mxu0 %v482
  %680 = vmatprep.subr.bf16.mxu0 0
  %681 = vmatpush1.bf16.msra.mxu0 %v481
  %682 = vmatprep.subr.bf16.mxu0 0
  %683 = vmatpush1.bf16.msra.mxu0 %v480
  %684 = vmatprep.subr.bf16.mxu0 0
  %685 = vmatpush1.bf16.msra.mxu0 %v479
  %686 = vmatprep.subr.bf16.mxu0 0
  %687 = vmatpush1.bf16.msra.mxu0 %v478
  %688 = vmatprep.subr.bf16.mxu0 0
  %689 = vmatpush1.bf16.msra.mxu0 %v477
  %690 = vmatprep.subr.bf16.mxu0 0
  %691 = vmatpush1.bf16.msra.mxu0 %v476
  %692 = vmatprep.subr.bf16.mxu0 0
  %693 = vmatpush2.bf16.msra.mxu0 %v491
  %694 = vmatprep.subr.bf16.mxu0 0
  %695 = vmatpush2.bf16.msra.mxu0 %v490
  %696 = vmatprep.subr.bf16.mxu0 0
  %697 = vmatpush2.bf16.msra.mxu0 %v489
  %698 = vmatprep.subr.bf16.mxu0 0
  %699 = vmatpush2.bf16.msra.mxu0 %v488
  %700 = vmatprep.subr.bf16.mxu0 0
  %701 = vmatpush2.bf16.msra.mxu0 %v487
  %702 = vmatprep.subr.bf16.mxu0 0
  %703 = vmatpush2.bf16.msra.mxu0 %v486
  %704 = vmatprep.subr.bf16.mxu0 0
  %705 = vmatpush2.bf16.msra.mxu0 %v485
  %706 = vmatprep.subr.bf16.mxu0 0
  %707 = vmatpush2.bf16.msra.mxu0 %v484
  %708 = vmatprep.mubr.bf16.mxu0 %v163
  %709 = vmatmul.mubr.bf16.gmra.mxu0 %v162
  %v710 = vpop.f32.mrf.mxu0
  %v711 = vadd.f32 %v671, %v710
  %v712 = vpop.f32.mrf.mxu0
  %v713 = vpop.f32.mrf.mxu0
  %v714 = vpop.f32.mrf.mxu0
  %715 = vdwg.mxu0
  %v716 = vxor.u32 %v711, 2147483648
  %v717 = vmul.f32 %v716, 1.442695
  %v718 = vpow.pop %v717
  %v719 = vadd.f32 %v718, 1.0
  %v720 = vrcp.pop %v719
  %v721 = vmul.f32 1.0, %v720
  %722 = vst [vmem:[%s2] sm:$0xff] %v721
  // Predicated region
  $region10: #{netd_forward.15} parent=0 // pred_check
    _
  $region11: #{netd_forward.15} parent=0 // pred_check_branch
    %724 = sbr.rel (0) target = $region13
  $region12: #{netd_forward.15} parent=0 // pred_region
    _
  $region13: #{netd_forward.15} parent=0 // pred_fallthru
    _
  // Predicated region
  $region14: #{netd_forward.15} parent=0 // pred_check
    _
  $region15: #{netd_forward.15} parent=0 // pred_check_branch
    %726 = sbr.rel (0) target = $region17
  $region16: #{netd_forward.15} parent=0 // pred_region
    _
  $region17: #{netd_forward.15} parent=0 // pred_fallthru
    _

</llo_original>
